<compile_context>
chip_gen: v7x
topology: tpu7x:2x2x1
jax: 0.10.0
libtpu: 0.0.40
codegen_flags: <defaults>
</compile_context>

<pallas_src>
import functools

import numpy as np
import jax
import jax.numpy as jnp
from jax import lax
from jax.experimental import pallas as pl
from jax.experimental.pallas import tpu as pltpu


# ----------------------------------------------------------------------------
# Fused decoder kernel (one invocation, everything resident in VMEM).
# ----------------------------------------------------------------------------
def _fused_decoder_kernel(cols_ref, w1_ref, gamma_ref, beta_ref, w2_ref,
                          b2_ref, ukt_ref, out_ref, *, batch, hw, nc):
    # conv1 (3x3 via im2col): (M, 9*Cin) @ (9*Cin, 256) -> (M, 256) f32. Single MXU pass.
    y = jnp.dot(cols_ref[...], w1_ref[...], preferred_element_type=jnp.float32)

    # BatchNorm2d(256), train-mode batch statistics (biased var, eps=1e-5) + affine, then ReLU.
    mean = jnp.mean(y, axis=0, keepdims=True)
    var = jnp.mean(jnp.square(y - mean), axis=0, keepdims=True)
    y = (y - mean) * lax.rsqrt(var + 1e-5)
    y = jnp.maximum(y * gamma_ref[...] + beta_ref[...], 0.0).astype(jnp.bfloat16)

    # conv2 1x1 + bias, fused epilogue (never a lane-sparse N=6 HBM store).
    z = jnp.dot(y, w2_ref[...], preferred_element_type=jnp.float32) + b2_ref[...]  # (M, nc)

    # Bilinear upsample (align_corners=True) folded in as a matmul with kron(Uh,Uw)^T,
    # emitted channel-major per image so the output slab is lane-dense and already NCHW.
    # TODO(synk): tile over batch via a grid axis instead of a static loop for large B.
    for b in range(batch):
        zb = z[b * hw:(b + 1) * hw, :].astype(jnp.bfloat16)          # (HW, nc)
        out_ref[b] = lax.dot_general(                                 # (nc, Ho*Wo)
            zb, ukt_ref[...], (((0,), (0,)), ((), ())),
            preferred_element_type=jnp.float32)


def _im2col_nhwc(x_nhwc):
    """Channel-last im2col for a 3x3, pad=1 conv: one concat of shifted views."""
    B, H, W, C = x_nhwc.shape
    xp = jnp.pad(x_nhwc, ((0, 0), (1, 1), (1, 1), (0, 0)))
    cols = jnp.concatenate(
        [xp[:, dh:dh + H, dw:dw + W, :] for dh in range(3) for dw in range(3)], axis=-1)
    return cols.reshape(B * H * W, 9 * C)


def _decoder_pallas(x_nhwc, params):
    """Fused Pallas forward: NHWC input -> NCHW logits (B, nc, Ho, Wo)."""
    B, H, W, _ = x_nhwc.shape
    nc = params["w2k"].shape[1]
    hw = H * W
    howo = params["ukt"].shape[1]
    ho, wo = params["uh"].shape[0], params["uw"].shape[0]

    # TODO(synk): build the 9 im2col taps inside the kernel (shifted VMEM reads) to drop this
    # small XLA pad/concat; kept outside for lowering robustness at tiny channel widths.
    cols = _im2col_nhwc(x_nhwc.astype(jnp.bfloat16))                  # (M, 9*Cin) bf16

    out = pl.pallas_call(
        functools.partial(_fused_decoder_kernel, batch=B, hw=hw, nc=nc),
        out_shape=jax.ShapeDtypeStruct((B, nc, howo), jnp.float32),
        in_specs=[pl.BlockSpec(memory_space=pltpu.MemorySpace.VMEM)] * 7,
        out_specs=pl.BlockSpec(memory_space=pltpu.MemorySpace.VMEM),
    )(cols, params["w1k"], params["gamma"], params["beta"],
      params["w2k"], params["b2"], params["ukt"])
    return out.reshape(B, nc, ho, wo)                                  # free view reshape


# ----------------------------------------------------------------------------
# Plain-JAX f32 reference of the same decoder — used ONLY inside the custom-VJP
# backward (tiny math; XLA fuses it), per the "de-Pallas the backward" feedback.
# ----------------------------------------------------------------------------
def _decoder_ref(x_nhwc, params):
    B, H, W, _ = x_nhwc.shape
    cols = _im2col_nhwc(x_nhwc)
    y = jnp.dot(cols, params["w1k"].astype(jnp.float32))
    mean = jnp.mean(y, axis=0, keepdims=True)
    var = jnp.mean(jnp.square(y - mean), axis=0, keepdims=True)
    y = (y - mean) * lax.rsqrt(var + 1e-5)
    y = jnp.maximum(y * params["gamma"] + params["beta"], 0.0)
    z = jnp.dot(y, params["w2k"].astype(jnp.float32)) + params["b2"]
    nc = z.shape[-1]
    z = z.reshape(B, H, W, nc)
    z = jnp.einsum("oh,bhwc->bowc", params["uh"], z)
    z = jnp.einsum("pw,bowc->bopc", params["uw"], z)
    return jnp.transpose(z, (0, 3, 1, 2))                              # NCHW


@jax.custom_vjp
def decoder_forward(x_nhwc, params):
    return _decoder_pallas(x_nhwc, params)


def _dec_fwd(x_nhwc, params):
    return _decoder_pallas(x_nhwc, params), (x_nhwc, params)


def _dec_bwd(res, g):
    # Backward via remat of the f32 reference: plain lax.dot_general, no extra pallas_calls.
    # Grad flows through BN train-mode batch stats (PyTorch behavior).
    x_nhwc, params = res
    _, vjp = jax.vjp(_decoder_ref, x_nhwc, params)
    return vjp(g)


decoder_forward.defvjp(_dec_fwd, _dec_bwd)


# ----------------------------------------------------------------------------
# VAT (get_r_adv) + VATDecoder.forward
# ----------------------------------------------------------------------------
def _l2_normalize(d):
    axes = tuple(range(1, d.ndim))
    norm = jnp.sqrt(jnp.sum(d * d, axis=axes, keepdims=True))
    return d / (norm + 1e-8)


def vat_decoder_forward(x_nchw, params, key, xi=0.1, eps=10.0, it=1):
    """Matches VATDecoder.forward: returns upsample(x + r_adv) in NCHW."""
    B = x_nchw.shape[0]
    x = jnp.transpose(x_nchw, (0, 2, 3, 1))                 # NCHW -> NHWC once

    # pred = softmax(decoder(x_detached)) under no_grad; log_softmax for the xlogy-safe log.
    logits = lax.stop_gradient(decoder_forward(x, params))  # (B, nc, Ho, Wo)
    pred = jax.nn.softmax(logits, axis=1)
    log_pred = jax.nn.log_softmax(logits, axis=1)

    d = jax.random.uniform(key, x.shape, dtype=x.dtype) - 0.5
    d = _l2_normalize(d)

    def kl_loss(d_):
        logp_hat = jax.nn.log_softmax(decoder_forward(x + xi * d_, params), axis=1)
        return jnp.sum(pred * (log_pred - logp_hat)) / B    # F.kl_div 'batchmean'

    for _ in range(it):
        g = jax.grad(kl_loss)(d)
        d = _l2_normalize(g)

    return decoder_forward(x + d * eps, params)             # already NCHW


# ----------------------------------------------------------------------------
# Parameter init (shapes from VATDecoder.__init__ / upsample()); weights pre-reshaped
# and pre-cast to bf16 ONCE here, upsample folded into kron(Uh,Uw)^T once.
# ----------------------------------------------------------------------------
def _bilinear_matrix(in_size, out_size):
    """Row-stochastic interpolation matrix for align_corners=True bilinear upsampling."""
    U = np.zeros((out_size, in_size), dtype=np.float32)
    if out_size == 1 or in_size == 1:
        U[:, 0] = 1.0
        return U
    scale = (in_size - 1) / (out_size - 1)
    for i in range(out_size):
        src = i * scale
        i0 = min(int(np.floor(src)), in_size - 1)
        i1 = min(i0 + 1, in_size - 1)
        w1 = src - i0
        U[i, i0] += 1.0 - w1
        U[i, i1] += w1
    return U


def init_params(key, conv_in_ch, num_classes, upscale, H, W):
    k1, k2, k3 = jax.random.split(key, 3)
    fan1 = conv_in_ch * 9
    w1 = jax.random.normal(k1, (256, conv_in_ch, 3, 3), jnp.float32) / np.sqrt(fan1)
    w2 = jax.random.normal(k2, (num_classes, 256, 1, 1), jnp.float32) / np.sqrt(256.0)
    b2 = 0.01 * jax.random.normal(k3, (num_classes,), jnp.float32)

    # (Cout, Cin, KH, KW) -> ((kh,kw,cin), Cout); matches channel-last im2col column order.
    w1k = jnp.transpose(w1, (2, 3, 1, 0)).reshape(9 * conv_in_ch, 256).astype(jnp.bfloat16)
    w2k = jnp.transpose(w2.reshape(num_classes, 256), (1, 0)).astype(jnp.bfloat16)

    Uh = _bilinear_matrix(H, H * upscale)
    Uw = _bilinear_matrix(W, W * upscale)
    ukt = np.kron(Uh, Uw).T                                  # (H*W, Ho*Wo)

    return {
        "w1k": w1k,                                          # (9*Cin, 256) bf16
        "gamma": jnp.ones((1, 256), jnp.float32),
        "beta": jnp.zeros((1, 256), jnp.float32),
        "w2k": w2k,                                          # (256, nc) bf16
        "b2": b2.reshape(1, num_classes),                    # (1, nc) f32
        "ukt": jnp.asarray(ukt, jnp.bfloat16),               # fused upsample matrix (kernel)
        "uh": jnp.asarray(Uh),                               # f32, backward reference only
        "uw": jnp.asarray(Uw),
    }


if __name__ == "__main__":
    B, Cin, H, W = 2, 4, 16, 16
    num_classes, upscale = 6, 2
    xi, eps, iterations = 0.1, 10.0, 1

    root = jax.random.PRNGKey(0)
    kx, kp, kd = jax.random.split(root, 3)
    x = jax.random.normal(kx, (B, Cin, H, W), jnp.float32)
    params = init_params(kp, Cin, num_classes, upscale, H, W)

    fwd = jax.jit(functools.partial(vat_decoder_forward, xi=xi, eps=eps, it=iterations))
    out = jax.block_until_ready(fwd(x, params, kd))

    assert out.shape == (B, num_classes, H * upscale, W * upscale), out.shape
    assert bool(jnp.all(jnp.isfinite(out)))
    print("KERNEL_OK")
</pallas_src>

<mosaic_0001>
module attributes {stable_mosaic.version = 11 : i64} {
  func.func @_fused_decoder_kernel(%arg0: memref<512x36xbf16, #tpu.memory_space<vmem>>, %arg1: memref<36x256xbf16, #tpu.memory_space<vmem>>, %arg2: memref<1x256xf32, #tpu.memory_space<vmem>>, %arg3: memref<1x256xf32, #tpu.memory_space<vmem>>, %arg4: memref<256x6xbf16, #tpu.memory_space<vmem>>, %arg5: memref<1x6xf32, #tpu.memory_space<vmem>>, %arg6: memref<256x1024xbf16, #tpu.memory_space<vmem>>, %arg7: memref<2x6x1024xf32, #tpu.memory_space<vmem>>) attributes {dimension_semantics = [], scalar_prefetch = 0 : i64, scratch_operands = 0 : i64, tpu.core_type = #tpu.core_type<tc>} {
    %c0 = arith.constant 0 : index
    %c0_0 = arith.constant 0 : index
    %0 = vector.load %arg0[%c0, %c0_0] : memref<512x36xbf16, #tpu.memory_space<vmem>>, vector<512x36xbf16>
    %c0_1 = arith.constant 0 : index
    %c0_2 = arith.constant 0 : index
    %1 = vector.load %arg1[%c0_1, %c0_2] : memref<36x256xbf16, #tpu.memory_space<vmem>>, vector<36x256xbf16>
    %cst = arith.constant dense<0.000000e+00> : vector<512x256xf32>
    %2 = tpu.matmul %0, %1, %cst {dimension_numbers = #tpu.dot_dimension_numbers<[1], [0], [0], [1], [0, 0, 1, 1], [], []>} : vector<512x36xbf16>, vector<36x256xbf16>, vector<512x256xf32> -> vector<512x256xf32>
    %cst_3 = arith.constant dense<0.000000e+00> : vector<256xf32>
    %3 = vector.multi_reduction <add>, %2, %cst_3 [0] : vector<512x256xf32> to vector<256xf32>
    %4 = vector.shape_cast %3 : vector<256xf32> to vector<1x256xf32>
    %cst_4 = arith.constant 5.120000e+02 : f32
    %5 = vector.broadcast %cst_4 : f32 to vector<1x256xf32>
    %6 = arith.divf %4, %5 : vector<1x256xf32>
    %7 = vector.broadcast %6 : vector<1x256xf32> to vector<512x256xf32>
    %8 = arith.subf %2, %7 : vector<512x256xf32>
    %9 = arith.mulf %8, %8 : vector<512x256xf32>
    %cst_5 = arith.constant dense<0.000000e+00> : vector<256xf32>
    %10 = vector.multi_reduction <add>, %9, %cst_5 [0] : vector<512x256xf32> to vector<256xf32>
    %11 = vector.shape_cast %10 : vector<256xf32> to vector<1x256xf32>
    %cst_6 = arith.constant 5.120000e+02 : f32
    %12 = vector.broadcast %cst_6 : f32 to vector<1x256xf32>
    %13 = arith.divf %11, %12 : vector<1x256xf32>
    %14 = vector.broadcast %6 : vector<1x256xf32> to vector<512x256xf32>
    %15 = arith.subf %2, %14 : vector<512x256xf32>
    %cst_7 = arith.constant 9.99999974E-6 : f32
    %16 = vector.broadcast %cst_7 : f32 to vector<1x256xf32>
    %17 = arith.addf %13, %16 : vector<1x256xf32>
    %18 = math.rsqrt %17 : vector<1x256xf32>
    %19 = vector.broadcast %18 : vector<1x256xf32> to vector<512x256xf32>
    %20 = arith.mulf %15, %19 : vector<512x256xf32>
    %c0_8 = arith.constant 0 : index
    %c0_9 = arith.constant 0 : index
    %21 = vector.load %arg2[%c0_8, %c0_9] : memref<1x256xf32, #tpu.memory_space<vmem>>, vector<1x256xf32>
    %22 = vector.broadcast %21 : vector<1x256xf32> to vector<512x256xf32>
    %23 = arith.mulf %20, %22 : vector<512x256xf32>
    %c0_10 = arith.constant 0 : index
    %c0_11 = arith.constant 0 : index
    %24 = vector.load %arg3[%c0_10, %c0_11] : memref<1x256xf32, #tpu.memory_space<vmem>>, vector<1x256xf32>
    %25 = vector.broadcast %24 : vector<1x256xf32> to vector<512x256xf32>
    %26 = arith.addf %23, %25 : vector<512x256xf32>
    %cst_12 = arith.constant 0.000000e+00 : f32
    %27 = vector.broadcast %cst_12 : f32 to vector<512x256xf32>
    %28 = arith.maximumf %26, %27 : vector<512x256xf32>
    %29 = arith.truncf %28 : vector<512x256xf32> to vector<512x256xbf16>
    %c0_13 = arith.constant 0 : index
    %c0_14 = arith.constant 0 : index
    %30 = vector.load %arg4[%c0_13, %c0_14] : memref<256x6xbf16, #tpu.memory_space<vmem>>, vector<256x6xbf16>
    %cst_15 = arith.constant dense<0.000000e+00> : vector<512x6xf32>
    %31 = tpu.matmul %29, %30, %cst_15 {dimension_numbers = #tpu.dot_dimension_numbers<[1], [0], [0], [1], [0, 0, 1, 1], [], []>} : vector<512x256xbf16>, vector<256x6xbf16>, vector<512x6xf32> -> vector<512x6xf32>
    %c0_16 = arith.constant 0 : index
    %c0_17 = arith.constant 0 : index
    %32 = vector.load %arg5[%c0_16, %c0_17] : memref<1x6xf32, #tpu.memory_space<vmem>>, vector<1x6xf32>
    %33 = vector.broadcast %32 : vector<1x6xf32> to vector<512x6xf32>
    %34 = arith.addf %31, %33 : vector<512x6xf32>
    %35 = vector.extract_strided_slice %34 {offsets = [0, 0], sizes = [256, 6], strides = [1, 1]} : vector<512x6xf32> to vector<256x6xf32>
    %36 = arith.truncf %35 : vector<256x6xf32> to vector<256x6xbf16>
    %c0_18 = arith.constant 0 : index
    %c0_19 = arith.constant 0 : index
    %37 = vector.load %arg6[%c0_18, %c0_19] : memref<256x1024xbf16, #tpu.memory_space<vmem>>, vector<256x1024xbf16>
    %cst_20 = arith.constant dense<0.000000e+00> : vector<6x1024xf32>
    %38 = tpu.matmul %36, %37, %cst_20 {dimension_numbers = #tpu.dot_dimension_numbers<[0], [0], [1], [1], [0, 1, 1, 1], [], []>} : vector<256x6xbf16>, vector<256x1024xbf16>, vector<6x1024xf32> -> vector<6x1024xf32>
    %c0_21 = arith.constant 0 : index
    %c0_22 = arith.constant 0 : index
    %c0_23 = arith.constant 0 : index
    %39 = vector.load %arg7[%c0_21, %c0_22, %c0_23] : memref<2x6x1024xf32, #tpu.memory_space<vmem>>, vector<1x6x1024xf32>
    %40 = vector.shape_cast %39 : vector<1x6x1024xf32> to vector<6x1024xf32>
    %41 = vector.shape_cast %38 : vector<6x1024xf32> to vector<1x6x1024xf32>
    tpu.vector_store %arg7[%c0_21, %c0_22, %c0_23], %41 {strides = array<i32>} : memref<2x6x1024xf32, #tpu.memory_space<vmem>>, vector<1x6x1024xf32>,
    %42 = vector.extract_strided_slice %34 {offsets = [256, 0], sizes = [256, 6], strides = [1, 1]} : vector<512x6xf32> to vector<256x6xf32>
    %43 = arith.truncf %42 : vector<256x6xf32> to vector<256x6xbf16>
    %c0_24 = arith.constant 0 : index
    %c0_25 = arith.constant 0 : index
    %44 = vector.load %arg6[%c0_24, %c0_25] : memref<256x1024xbf16, #tpu.memory_space<vmem>>, vector<256x1024xbf16>
    %cst_26 = arith.constant dense<0.000000e+00> : vector<6x1024xf32>
    %45 = tpu.matmul %43, %44, %cst_26 {dimension_numbers = #tpu.dot_dimension_numbers<[0], [0], [1], [1], [0, 1, 1, 1], [], []>} : vector<256x6xbf16>, vector<256x1024xbf16>, vector<6x1024xf32> -> vector<6x1024xf32>
    %c1 = arith.constant 1 : index
    %c0_27 = arith.constant 0 : index
    %c0_28 = arith.constant 0 : index
    %46 = vector.load %arg7[%c1, %c0_27, %c0_28] : memref<2x6x1024xf32, #tpu.memory_space<vmem>>, vector<1x6x1024xf32>
    %47 = vector.shape_cast %46 : vector<1x6x1024xf32> to vector<6x1024xf32>
    %48 = vector.shape_cast %45 : vector<6x1024xf32> to vector<1x6x1024xf32>
    tpu.vector_store %arg7[%c1, %c0_27, %c0_28], %48 {strides = array<i32>} : memref<2x6x1024xf32, #tpu.memory_space<vmem>>, vector<1x6x1024xf32>,
    return
  }
}

</mosaic_0001>

<llo_original>
// kernel: div.8
$region0: #{div.8}
  #allocation0 [shape = 's32[1]{0}', space=sflag, size = 0x4, scoped, tag = 'scoped memory for div.8']
  %s0 = inlined_call_operand.vmem [shape: f32[2,1024], index: 0, kind: input, shape index: {}]
  %s1 = inlined_call_operand.vmem [shape: f32[2,1024], index: 1, kind: input, shape index: {}]
  %s2 = inlined_call_operand.vmem [shape: f32[2,1024], index: 2, kind: output, shape index: {}]
  %v3 = vld [vmem:[%s0] sm:$0x3]
  %v4 = vld [vmem:[%s1] sm:$0x3]
  %5 = xla_tuple %v3, %v4
  %6 = xla_tuple %5
  %v7 = vrcp.pop %v4
  %v8 = vmul.f32 %v3, %v7
  %9 = xla_tuple %v8
  %10 = vst [vmem:[%s2] sm:$0x3] %v8
  %s11 = scalar_lea.vmem %s0, 2
  %v12 = vld [vmem:[%s11] sm:$0x3]
  %s13 = scalar_lea.vmem %s1, 2
  %v14 = vld [vmem:[%s13] sm:$0x3]
  %15 = xla_tuple %v12, %v14
  %16 = xla_tuple %15
  %v17 = vrcp.pop %v14
  %v18 = vmul.f32 %v12, %v17
  %19 = xla_tuple %v18
  %s20 = scalar_lea.vmem %s2, 2
  %21 = vst [vmem:[%s20] sm:$0x3] %v18
  %s22 = scalar_lea.vmem %s0, 4
  %v23 = vld [vmem:[%s22] sm:$0x3]
  %s24 = scalar_lea.vmem %s1, 4
  %v25 = vld [vmem:[%s24] sm:$0x3]
  %26 = xla_tuple %v23, %v25
  %27 = xla_tuple %26
  %v28 = vrcp.pop %v25
  %v29 = vmul.f32 %v23, %v28
  %30 = xla_tuple %v29
  %s31 = scalar_lea.vmem %s2, 4
  %32 = vst [vmem:[%s31] sm:$0x3] %v29
  %s33 = scalar_lea.vmem %s0, 6
  %v34 = vld [vmem:[%s33] sm:$0x3]
  %s35 = scalar_lea.vmem %s1, 6
  %v36 = vld [vmem:[%s35] sm:$0x3]
  %37 = xla_tuple %v34, %v36
  %38 = xla_tuple %37
  %v39 = vrcp.pop %v36
  %v40 = vmul.f32 %v34, %v39
  %41 = xla_tuple %v40
  %s42 = scalar_lea.vmem %s2, 6
  %43 = vst [vmem:[%s42] sm:$0x3] %v40
  %s44 = scalar_lea.vmem %s0, 8
  %v45 = vld [vmem:[%s44] sm:$0x3]
  %s46 = scalar_lea.vmem %s1, 8
  %v47 = vld [vmem:[%s46] sm:$0x3]
  %48 = xla_tuple %v45, %v47
  %49 = xla_tuple %48
  %v50 = vrcp.pop %v47
  %v51 = vmul.f32 %v45, %v50
  %52 = xla_tuple %v51
  %s53 = scalar_lea.vmem %s2, 8
  %54 = vst [vmem:[%s53] sm:$0x3] %v51
  %s55 = scalar_lea.vmem %s0, 10
  %v56 = vld [vmem:[%s55] sm:$0x3]
  %s57 = scalar_lea.vmem %s1, 10
  %v58 = vld [vmem:[%s57] sm:$0x3]
  %59 = xla_tuple %v56, %v58
  %60 = xla_tuple %59
  %v61 = vrcp.pop %v58
  %v62 = vmul.f32 %v56, %v61
  %63 = xla_tuple %v62
  %s64 = scalar_lea.vmem %s2, 10
  %65 = vst [vmem:[%s64] sm:$0x3] %v62
  %s66 = scalar_lea.vmem %s0, 12
  %v67 = vld [vmem:[%s66] sm:$0x3]
  %s68 = scalar_lea.vmem %s1, 12
  %v69 = vld [vmem:[%s68] sm:$0x3]
  %70 = xla_tuple %v67, %v69
  %71 = xla_tuple %70
  %v72 = vrcp.pop %v69
  %v73 = vmul.f32 %v67, %v72
  %74 = xla_tuple %v73
  %s75 = scalar_lea.vmem %s2, 12
  %76 = vst [vmem:[%s75] sm:$0x3] %v73
  %s77 = scalar_lea.vmem %s0, 14
  %v78 = vld [vmem:[%s77] sm:$0x3]
  %s79 = scalar_lea.vmem %s1, 14
  %v80 = vld [vmem:[%s79] sm:$0x3]
  %81 = xla_tuple %v78, %v80
  %82 = xla_tuple %81
  %v83 = vrcp.pop %v80
  %v84 = vmul.f32 %v78, %v83
  %85 = xla_tuple %v84
  %s86 = scalar_lea.vmem %s2, 14
  %87 = vst [vmem:[%s86] sm:$0x3] %v84

// kernel: jvp__.1
$region0: #{jvp__.1}
  #allocation0 [shape = 'u32[]', space=smem, size = 0x4, offset = 0x4, fixed_abs, tag = 'smem constant byte address 0x4 - core index']
  #allocation1 [shape = 'u32[144,128]{1,0:T(1,128)}', space=vmem, size = 0x12000, scoped, tag = 'internal scratch']
  %s0 = inlined_call_operand.vmem [shape: bf16[512,36], index: 0, kind: input, shape index: {}]
  %s1 = inlined_call_operand.vmem [shape: bf16[36,256], index: 1, kind: input, shape index: {}]
  %s2 = inlined_call_operand.vmem [shape: f32[1,256], index: 2, kind: input, shape index: {}]
  %s3 = inlined_call_operand.vmem [shape: f32[1,256], index: 3, kind: input, shape index: {}]
  %s4 = inlined_call_operand.vmem [shape: bf16[256,6], index: 4, kind: input, shape index: {}]
  %s5 = inlined_call_operand.vmem [shape: f32[1,6], index: 5, kind: input, shape index: {}]
  %s6 = inlined_call_operand.vmem [shape: bf16[256,1024], index: 6, kind: input, shape index: {}]
  %s7 = inlined_call_operand.vmem [shape: f32[2,6,1024], index: 7, kind: output, shape index: {}]
  %s8 = sld [smem:[#allocation0]]
  $region38: #{jvp__.1} parent=0
    _
  %s10 = ssub.s32 1, %s8
  %s11 = scalar_select 0, %s10, %s8
  // Predicated region
  $region2: #{jvp__.1} parent=0 // pred_check
    _
  $region3: #{jvp__.1} parent=0 // pred_check_branch
    %13 = sbr.rel (0) target = $region5
  $region4: #{jvp__.1} parent=0 // pred_region
    _
  $region5: #{jvp__.1} parent=0 // pred_fallthru
    _
  // Predicated region
  $region6: #{jvp__.1} parent=0 // pred_check
    _
  $region7: #{jvp__.1} parent=0 // pred_check_branch
    %15 = sbr.rel (0) target = $region9
  $region8: #{jvp__.1} parent=0 // pred_region
    _
  $region9: #{jvp__.1} parent=0 // pred_fallthru
    _
  // Predicated region
  $region10: #{jvp__.1} parent=0 // pred_check
    _
  $region11: #{jvp__.1} parent=0 // pred_check_branch
    %17 = sbr.rel (0) target = $region13
  $region12: #{jvp__.1} parent=0 // pred_region
    _
  $region13: #{jvp__.1} parent=0 // pred_fallthru
    _
  // Predicated region
  $region14: #{jvp__.1} parent=0 // pred_check
    _
  $region15: #{jvp__.1} parent=0 // pred_check_branch
    %19 = sbr.rel (0) target = $region17
  $region16: #{jvp__.1} parent=0 // pred_region
    _
  $region17: #{jvp__.1} parent=0 // pred_fallthru
    _
  // Predicated region
  $region18: #{jvp__.1} parent=0 // pred_check
    _
  $region19: #{jvp__.1} parent=0 // pred_check_branch
    %21 = sbr.rel (0) target = $region21
  $region20: #{jvp__.1} parent=0 // pred_region
    _
  $region21: #{jvp__.1} parent=0 // pred_fallthru
    _
  // Predicated region
  $region22: #{jvp__.1} parent=0 // pred_check
    _
  $region23: #{jvp__.1} parent=0 // pred_check_branch
    %23 = sbr.rel (0) target = $region25
  $region24: #{jvp__.1} parent=0 // pred_region
    _
  $region25: #{jvp__.1} parent=0 // pred_fallthru
    _
  // Predicated region
  $region26: #{jvp__.1} parent=0 // pred_check
    _
  $region27: #{jvp__.1} parent=0 // pred_check_branch
    %25 = sbr.rel (0) target = $region29
  $region28: #{jvp__.1} parent=0 // pred_region
    _
  $region29: #{jvp__.1} parent=0 // pred_fallthru
    _
  %v27 = vld [vmem:[%s0] sm:$0xf]
  %v28 = vld [vmem:[%s0 + $0x4] sm:$0xf]
  %v29 = vld [vmem:[%s0 + $0x8] sm:$0xf]
  %v30 = vld [vmem:[%s0 + $0xc] sm:$0xf]
  %v31 = vld [vmem:[%s0 + $0x10] sm:$0xf]
  %v32 = vld [vmem:[%s0 + $0x14] sm:$0xf]
  %v33 = vld [vmem:[%s0 + $0x18] sm:$0xf]
  %v34 = vld [vmem:[%s0 + $0x1c] sm:$0xf]
  %v35 = vld [vmem:[%s0 + $0x20] sm:$0xf]
  %v36 = vld [vmem:[%s0 + $0x24] sm:$0xf]
  %v37 = vld [vmem:[%s0 + $0x28] sm:$0xf]
  %v38 = vld [vmem:[%s0 + $0x2c] sm:$0xf]
  %v39 = vld [vmem:[%s0 + $0x30] sm:$0xf]
  %v40 = vld [vmem:[%s0 + $0x34] sm:$0xf]
  %v41 = vld [vmem:[%s0 + $0x38] sm:$0xf]
  %v42 = vld [vmem:[%s0 + $0x3c] sm:$0xf]
  %v43 = vld [vmem:[%s0 + $0x40] sm:$0xf]
  %v44 = vld [vmem:[%s0 + $0x44] sm:$0xf]
  %v45 = vld [vmem:[%s0 + $0x48] sm:$0xf]
  %v46 = vld [vmem:[%s0 + $0x4c] sm:$0xf]
  %v47 = vld [vmem:[%s0 + $0x50] sm:$0xf]
  %v48 = vld [vmem:[%s0 + $0x54] sm:$0xf]
  %v49 = vld [vmem:[%s0 + $0x58] sm:$0xf]
  %v50 = vld [vmem:[%s0 + $0x5c] sm:$0xf]
  %v51 = vld [vmem:[%s0 + $0x60] sm:$0xf]
  %v52 = vld [vmem:[%s0 + $0x64] sm:$0xf]
  %v53 = vld [vmem:[%s0 + $0x68] sm:$0xf]
  %v54 = vld [vmem:[%s0 + $0x6c] sm:$0xf]
  %v55 = vld [vmem:[%s0 + $0x70] sm:$0xf]
  %v56 = vld [vmem:[%s0 + $0x74] sm:$0xf]
  %v57 = vld [vmem:[%s0 + $0x78] sm:$0xf]
  %v58 = vld [vmem:[%s0 + $0x7c] sm:$0xf]
  %v59 = vld [vmem:[%s0 + $0x80] sm:$0xf]
  %v60 = vld [vmem:[%s0 + $0x84] sm:$0xf]
  %v61 = vld [vmem:[%s0 + $0x88] sm:$0xf]
  %v62 = vld [vmem:[%s0 + $0x8c] sm:$0xf]
  %v63 = vld [vmem:[%s0 + $0x90] sm:$0xf]
  %v64 = vld [vmem:[%s0 + $0x94] sm:$0xf]
  %v65 = vld [vmem:[%s0 + $0x98] sm:$0xf]
  %v66 = vld [vmem:[%s0 + $0x9c] sm:$0xf]
  %v67 = vld [vmem:[%s0 + $0xa0] sm:$0xf]
  %v68 = vld [vmem:[%s0 + $0xa4] sm:$0xf]
  %v69 = vld [vmem:[%s0 + $0xa8] sm:$0xf]
  %v70 = vld [vmem:[%s0 + $0xac] sm:$0xf]
  %v71 = vld [vmem:[%s0 + $0xb0] sm:$0xf]
  %v72 = vld [vmem:[%s0 + $0xb4] sm:$0xf]
  %v73 = vld [vmem:[%s0 + $0xb8] sm:$0xf]
  %v74 = vld [vmem:[%s0 + $0xbc] sm:$0xf]
  %v75 = vld [vmem:[%s0 + $0xc0] sm:$0xf]
  %v76 = vld [vmem:[%s0 + $0xc4] sm:$0xf]
  %v77 = vld [vmem:[%s0 + $0xc8] sm:$0xf]
  %v78 = vld [vmem:[%s0 + $0xcc] sm:$0xf]
  %v79 = vld [vmem:[%s0 + $0xd0] sm:$0xf]
  %v80 = vld [vmem:[%s0 + $0xd4] sm:$0xf]
  %v81 = vld [vmem:[%s0 + $0xd8] sm:$0xf]
  %v82 = vld [vmem:[%s0 + $0xdc] sm:$0xf]
  %v83 = vld [vmem:[%s0 + $0xe0] sm:$0xf]
  %v84 = vld [vmem:[%s0 + $0xe4] sm:$0xf]
  %v85 = vld [vmem:[%s0 + $0xe8] sm:$0xf]
  %v86 = vld [vmem:[%s0 + $0xec] sm:$0xf]
  %v87 = vld [vmem:[%s0 + $0xf0] sm:$0xf]
  %v88 = vld [vmem:[%s0 + $0xf4] sm:$0xf]
  %v89 = vld [vmem:[%s0 + $0xf8] sm:$0xf]
  %v90 = vld [vmem:[%s0 + $0xfc] sm:$0xf]
  %v91 = vld [vmem:[%s1] sm:$0xff]
  %v92 = vld [vmem:[%s1 + $0x8] sm:$0xff]
  %v93 = vld [vmem:[%s1 + $0x10] sm:$0xff]
  %v94 = vld [vmem:[%s1 + $0x18] sm:$0xff]
  %v95 = vld [vmem:[%s1 + $0x20] sm:$0x33]
  %v160 = vunpack.c.l.b16 %v27
  %v161 = vunpack.c.l.b16 %v28
  %v162 = vunpack.c.l.b16 %v29
  %v163 = vunpack.c.l.b16 %v30
  %v164 = vunpack.c.l.b16 %v31
  %v165 = vunpack.c.l.b16 %v32
  %v166 = vunpack.c.l.b16 %v33
  %v167 = vunpack.c.l.b16 %v34
  %v168 = vunpack.c.l.b16 %v35
  %v169 = vunpack.c.l.b16 %v36
  %v170 = vunpack.c.l.b16 %v37
  %v171 = vunpack.c.l.b16 %v38
  %v172 = vunpack.c.l.b16 %v39
  %v173 = vunpack.c.l.b16 %v40
  %v174 = vunpack.c.l.b16 %v41
  %v175 = vunpack.c.l.b16 %v42
  %v176 = vunpack.c.l.b16 %v43
  %v177 = vunpack.c.l.b16 %v44
  %v178 = vunpack.c.l.b16 %v45
  %v179 = vunpack.c.l.b16 %v46
  %v180 = vunpack.c.l.b16 %v47
  %v181 = vunpack.c.l.b16 %v48
  %v182 = vunpack.c.l.b16 %v49
  %v183 = vunpack.c.l.b16 %v50
  %v184 = vunpack.c.l.b16 %v51
  %v185 = vunpack.c.l.b16 %v52
  %v186 = vunpack.c.l.b16 %v53
  %v187 = vunpack.c.l.b16 %v54
  %v188 = vunpack.c.l.b16 %v55
  %v189 = vunpack.c.l.b16 %v56
  %v190 = vunpack.c.l.b16 %v57
  %v191 = vunpack.c.l.b16 %v58
  %v192 = vunpack.c.l.b16 %v59
  %v193 = vunpack.c.l.b16 %v60
  %v194 = vunpack.c.l.b16 %v61
  %v195 = vunpack.c.l.b16 %v62
  %v196 = vunpack.c.l.b16 %v63
  %v197 = vunpack.c.l.b16 %v64
  %v198 = vunpack.c.l.b16 %v65
  %v199 = vunpack.c.l.b16 %v66
  %v200 = vunpack.c.l.b16 %v67
  %v201 = vunpack.c.l.b16 %v68
  %v202 = vunpack.c.l.b16 %v69
  %v203 = vunpack.c.l.b16 %v70
  %v204 = vunpack.c.l.b16 %v71
  %v205 = vunpack.c.l.b16 %v72
  %v206 = vunpack.c.l.b16 %v73
  %v207 = vunpack.c.l.b16 %v74
  %v208 = vunpack.c.l.b16 %v75
  %v209 = vunpack.c.l.b16 %v76
  %v210 = vunpack.c.l.b16 %v77
  %v211 = vunpack.c.l.b16 %v78
  %v212 = vunpack.c.l.b16 %v79
  %v213 = vunpack.c.l.b16 %v80
  %v214 = vunpack.c.l.b16 %v81
  %v215 = vunpack.c.l.b16 %v82
  %v216 = vunpack.c.l.b16 %v83
  %v217 = vunpack.c.l.b16 %v84
  %v218 = vunpack.c.l.b16 %v85
  %v219 = vunpack.c.l.b16 %v86
  %v220 = vunpack.c.l.b16 %v87
  %v221 = vunpack.c.l.b16 %v88
  %v222 = vunpack.c.l.b16 %v89
  %v223 = vunpack.c.l.b16 %v90
  %v224 = vpack.c.b16 %v161, %v160
  %v225 = vpack.c.b16 %v163, %v162
  %v226 = vpack.c.b16 %v165, %v164
  %v227 = vpack.c.b16 %v167, %v166
  %v228 = vpack.c.b16 %v169, %v168
  %v229 = vpack.c.b16 %v171, %v170
  %v230 = vpack.c.b16 %v173, %v172
  %v231 = vpack.c.b16 %v175, %v174
  %v232 = vpack.c.b16 %v177, %v176
  %v233 = vpack.c.b16 %v179, %v178
  %v234 = vpack.c.b16 %v181, %v180
  %v235 = vpack.c.b16 %v183, %v182
  %v236 = vpack.c.b16 %v185, %v184
  %v237 = vpack.c.b16 %v187, %v186
  %v238 = vpack.c.b16 %v189, %v188
  %v239 = vpack.c.b16 %v191, %v190
  %v240 = vpack.c.b16 %v193, %v192
  %v241 = vpack.c.b16 %v195, %v194
  %v242 = vpack.c.b16 %v197, %v196
  %v243 = vpack.c.b16 %v199, %v198
  %v244 = vpack.c.b16 %v201, %v200
  %v245 = vpack.c.b16 %v203, %v202
  %v246 = vpack.c.b16 %v205, %v204
  %v247 = vpack.c.b16 %v207, %v206
  %v248 = vpack.c.b16 %v209, %v208
  %v249 = vpack.c.b16 %v211, %v210
  %v250 = vpack.c.b16 %v213, %v212
  %v251 = vpack.c.b16 %v215, %v214
  %v252 = vpack.c.b16 %v217, %v216
  %v253 = vpack.c.b16 %v219, %v218
  %v254 = vpack.c.b16 %v221, %v220
  %v255 = vpack.c.b16 %v223, %v222
  %v261 = vunpack.c.l.b16 %v91
  %v262 = vunpack.c.h.b16 %v91
  %v263 = vunpack.c.l.b16 %v92
  %v264 = vunpack.c.h.b16 %v92
  %v265 = vunpack.c.l.b16 %v93
  %v266 = vunpack.c.h.b16 %v93
  %v267 = vunpack.c.l.b16 %v94
  %v268 = vunpack.c.h.b16 %v94
  %v269 = vunpack.c.l.b16 %v95
  %v270 = vunpack.c.h.b16 %v95
  %v271 = vpack.c.b16 %v263, %v261
  %v272 = vpack.c.b16 %v264, %v262
  %v273 = vpack.c.b16 %v267, %v265
  %v274 = vpack.c.b16 %v268, %v266
  %v275 = vpack.c.b16 %v269, %v269
  %v276 = vpack.c.b16 %v270, %v270
  %vm281 = vcmask 293888
  %v283 = vsel %vm281, %v224, 0
  %v286 = vsel %vm281, %v225, 0
  %v289 = vsel %vm281, %v226, 0
  %v292 = vsel %vm281, %v227, 0
  %v295 = vsel %vm281, %v228, 0
  %v298 = vsel %vm281, %v229, 0
  %v301 = vsel %vm281, %v230, 0
  %v304 = vsel %vm281, %v231, 0
  %v307 = vsel %vm281, %v232, 0
  %v310 = vsel %vm281, %v233, 0
  %v313 = vsel %vm281, %v234, 0
  %v316 = vsel %vm281, %v235, 0
  %v319 = vsel %vm281, %v236, 0
  %v322 = vsel %vm281, %v237, 0
  %v325 = vsel %vm281, %v238, 0
  %v328 = vsel %vm281, %v239, 0
  %v331 = vsel %vm281, %v240, 0
  %v334 = vsel %vm281, %v241, 0
  %v337 = vsel %vm281, %v242, 0
  %v340 = vsel %vm281, %v243, 0
  %v343 = vsel %vm281, %v244, 0
  %v346 = vsel %vm281, %v245, 0
  %v349 = vsel %vm281, %v246, 0
  %v352 = vsel %vm281, %v247, 0
  %v355 = vsel %vm281, %v248, 0
  %v358 = vsel %vm281, %v249, 0
  %v361 = vsel %vm281, %v250, 0
  %v364 = vsel %vm281, %v251, 0
  %v367 = vsel %vm281, %v252, 0
  %v370 = vsel %vm281, %v253, 0
  %v373 = vsel %vm281, %v254, 0
  %v376 = vsel %vm281, %v255, 0
  %vm378 = vcmask 1041408
  %v380 = vsel %vm378, %v275, 0
  %v383 = vsel %vm378, %v276, 0
  %385 = vmatprep.subr.bf16.mxu0 %v272
  %386 = vmatpush1.bf16.msra.mxu0 %v271
  %387 = vmatprep.subr.bf16.mxu0 %v274
  %388 = vmatpush1.bf16.msra.mxu0 %v273
  %389 = vmatprep.subr.bf16.mxu0 %v383
  %390 = vmatpush1.bf16.msra.mxu0 %v380
  %391 = vmatprep.subr.bf16.mxu0 0
  %392 = vmatpush1.bf16.msra.mxu0 0
  %393 = vmatprep.subr.bf16.mxu0 0
  %394 = vmatpush1.bf16.msra.mxu0 0
  %395 = vmatprep.subr.bf16.mxu0 0
  %396 = vmatpush1.bf16.msra.mxu0 0
  %397 = vmatprep.subr.bf16.mxu0 0
  %398 = vmatpush1.bf16.msra.mxu0 0
  %399 = vmatprep.subr.bf16.mxu0 0
  %400 = vmatpush1.bf16.msra.mxu0 0
  %401 = vmatprep.subr.bf16.mxu0 0
  %402 = vmatpush1.bf16.msra.mxu0 0
  %403 = vmatprep.subr.bf16.mxu0 0
  %404 = vmatpush1.bf16.msra.mxu0 0
  %405 = vmatprep.subr.bf16.mxu0 0
  %406 = vmatpush1.bf16.msra.mxu0 0
  %407 = vmatprep.subr.bf16.mxu0 0
  %408 = vmatpush1.bf16.msra.mxu0 0
  %409 = vmatprep.subr.bf16.mxu0 0
  %410 = vmatpush1.bf16.msra.mxu0 0
  %411 = vmatprep.subr.bf16.mxu0 0
  %412 = vmatpush1.bf16.msra.mxu0 0
  %413 = vmatprep.subr.bf16.mxu0 0
  %414 = vmatpush1.bf16.msra.mxu0 0
  %415 = vmatprep.subr.bf16.mxu0 0
  %416 = vmatpush1.bf16.msra.mxu0 0
  %417 = vmatprep.mubr.bf16.mxu0 0
  %418 = vmatmul.mubr.bf16.gmra.mrb[0].mxu0 %v283
  %v419 = vpop.f32.mrb[0].mxu0
  %v420 = vadd.f32 0.0, %v419
  %v421 = vpop.f32.mrb[0].mxu0
  %v422 = vadd.f32 0.0, %v421
  %v423 = vpop.f32.mrb[0].mxu0
  %v424 = vadd.f32 0.0, %v423
  %v425 = vpop.f32.mrb[0].mxu0
  %v426 = vadd.f32 0.0, %v425
  %427 = vmatprep.mubr.bf16.mxu0 0
  %428 = vmatmul.mubr.bf16.gmra.mrb[0].mxu0 %v286
  %v429 = vpop.f32.mrb[0].mxu0
  %v430 = vadd.f32 0.0, %v429
  %v431 = vpop.f32.mrb[0].mxu0
  %v432 = vadd.f32 0.0, %v431
  %v433 = vpop.f32.mrb[0].mxu0
  %v434 = vadd.f32 0.0, %v433
  %v435 = vpop.f32.mrb[0].mxu0
  %v436 = vadd.f32 0.0, %v435
  %437 = vmatprep.mubr.bf16.mxu0 0
  %438 = vmatmul.mubr.bf16.gmra.mrb[0].mxu0 %v289
  %v439 = vpop.f32.mrb[0].mxu0
  %v440 = vadd.f32 0.0, %v439
  %v441 = vpop.f32.mrb[0].mxu0
  %v442 = vadd.f32 0.0, %v441
  %v443 = vpop.f32.mrb[0].mxu0
  %v444 = vadd.f32 0.0, %v443
  %v445 = vpop.f32.mrb[0].mxu0
  %v446 = vadd.f32 0.0, %v445
  %447 = vmatprep.mubr.bf16.mxu0 0
  %448 = vmatmul.mubr.bf16.gmra.mrb[0].mxu0 %v292
  %v449 = vpop.f32.mrb[0].mxu0
  %v450 = vadd.f32 0.0, %v449
  %v451 = vpop.f32.mrb[0].mxu0
  %v452 = vadd.f32 0.0, %v451
  %v453 = vpop.f32.mrb[0].mxu0
  %v454 = vadd.f32 0.0, %v453
  %v455 = vpop.f32.mrb[0].mxu0
  %v456 = vadd.f32 0.0, %v455
  %457 = vmatprep.mubr.bf16.mxu0 0
  %458 = vmatmul.mubr.bf16.gmra.mrb[0].mxu0 %v295
  %v459 = vpop.f32.mrb[0].mxu0
  %v460 = vadd.f32 0.0, %v459
  %v461 = vpop.f32.mrb[0].mxu0
  %v462 = vadd.f32 0.0, %v461
  %v463 = vpop.f32.mrb[0].mxu0
  %v464 = vadd.f32 0.0, %v463
  %v465 = vpop.f32.mrb[0].mxu0
  %v466 = vadd.f32 0.0, %v465
  %467 = vmatprep.mubr.bf16.mxu0 0
  %468 = vmatmul.mubr.bf16.gmra.mrb[0].mxu0 %v298
  %v469 = vpop.f32.mrb[0].mxu0
  %v470 = vadd.f32 0.0, %v469
  %v471 = vpop.f32.mrb[0].mxu0
  %v472 = vadd.f32 0.0, %v471
  %v473 = vpop.f32.mrb[0].mxu0
  %v474 = vadd.f32 0.0, %v473
  %v475 = vpop.f32.mrb[0].mxu0
  %v476 = vadd.f32 0.0, %v475
  %477 = vmatprep.mubr.bf16.mxu0 0
  %478 = vmatmul.mubr.bf16.gmra.mrb[0].mxu0 %v301
  %v479 = vpop.f32.mrb[0].mxu0
  %v480 = vadd.f32 0.0, %v479
  %v481 = vpop.f32.mrb[0].mxu0
  %v482 = vadd.f32 0.0, %v481
  %v483 = vpop.f32.mrb[0].mxu0
  %v484 = vadd.f32 0.0, %v483
  %v485 = vpop.f32.mrb[0].mxu0
  %v486 = vadd.f32 0.0, %v485
  %487 = vmatprep.mubr.bf16.mxu0 0
  %488 = vmatmul.mubr.bf16.gmra.mrb[0].mxu0 %v304
  %v489 = vpop.f32.mrb[0].mxu0
  %v490 = vadd.f32 0.0, %v489
  %v491 = vpop.f32.mrb[0].mxu0
  %v492 = vadd.f32 0.0, %v491
  %v493 = vpop.f32.mrb[0].mxu0
  %v494 = vadd.f32 0.0, %v493
  %v495 = vpop.f32.mrb[0].mxu0
  %v496 = vadd.f32 0.0, %v495
  %497 = vmatprep.mubr.bf16.mxu0 0
  %498 = vmatmul.mubr.bf16.gmra.mrb[0].mxu0 %v307
  %v499 = vpop.f32.mrb[0].mxu0
  %v500 = vadd.f32 0.0, %v499
  %v501 = vpop.f32.mrb[0].mxu0
  %v502 = vadd.f32 0.0, %v501
  %v503 = vpop.f32.mrb[0].mxu0
  %v504 = vadd.f32 0.0, %v503
  %v505 = vpop.f32.mrb[0].mxu0
  %v506 = vadd.f32 0.0, %v505
  %507 = vmatprep.mubr.bf16.mxu0 0
  %508 = vmatmul.mubr.bf16.gmra.mrb[0].mxu0 %v310
  %v509 = vpop.f32.mrb[0].mxu0
  %v510 = vadd.f32 0.0, %v509
  %v511 = vpop.f32.mrb[0].mxu0
  %v512 = vadd.f32 0.0, %v511
  %v513 = vpop.f32.mrb[0].mxu0
  %v514 = vadd.f32 0.0, %v513
  %v515 = vpop.f32.mrb[0].mxu0
  %v516 = vadd.f32 0.0, %v515
  %517 = vmatprep.mubr.bf16.mxu0 0
  %518 = vmatmul.mubr.bf16.gmra.mrb[0].mxu0 %v313
  %v519 = vpop.f32.mrb[0].mxu0
  %v520 = vadd.f32 0.0, %v519
  %v521 = vpop.f32.mrb[0].mxu0
  %v522 = vadd.f32 0.0, %v521
  %v523 = vpop.f32.mrb[0].mxu0
  %v524 = vadd.f32 0.0, %v523
  %v525 = vpop.f32.mrb[0].mxu0
  %v526 = vadd.f32 0.0, %v525
  %527 = vmatprep.mubr.bf16.mxu0 0
  %528 = vmatmul.mubr.bf16.gmra.mrb[0].mxu0 %v316
  %v529 = vpop.f32.mrb[0].mxu0
  %v530 = vadd.f32 0.0, %v529
  %v531 = vpop.f32.mrb[0].mxu0
  %v532 = vadd.f32 0.0, %v531
  %v533 = vpop.f32.mrb[0].mxu0
  %v534 = vadd.f32 0.0, %v533
  %v535 = vpop.f32.mrb[0].mxu0
  %v536 = vadd.f32 0.0, %v535
  %537 = vmatprep.mubr.bf16.mxu0 0
  %538 = vmatmul.mubr.bf16.gmra.mrb[0].mxu0 %v319
  %v539 = vpop.f32.mrb[0].mxu0
  %v540 = vadd.f32 0.0, %v539
  %v541 = vpop.f32.mrb[0].mxu0
  %v542 = vadd.f32 0.0, %v541
  %v543 = vpop.f32.mrb[0].mxu0
  %v544 = vadd.f32 0.0, %v543
  %v545 = vpop.f32.mrb[0].mxu0
  %v546 = vadd.f32 0.0, %v545
  %547 = vmatprep.mubr.bf16.mxu0 0
  %548 = vmatmul.mubr.bf16.gmra.mrb[0].mxu0 %v322
  %v549 = vpop.f32.mrb[0].mxu0
  %v550 = vadd.f32 0.0, %v549
  %v551 = vpop.f32.mrb[0].mxu0
  %v552 = vadd.f32 0.0, %v551
  %v553 = vpop.f32.mrb[0].mxu0
  %v554 = vadd.f32 0.0, %v553
  %v555 = vpop.f32.mrb[0].mxu0
  %v556 = vadd.f32 0.0, %v555
  %557 = vmatprep.mubr.bf16.mxu0 0
  %558 = vmatmul.mubr.bf16.gmra.mrb[0].mxu0 %v325
  %v559 = vpop.f32.mrb[0].mxu0
  %v560 = vadd.f32 0.0, %v559
  %v561 = vpop.f32.mrb[0].mxu0
  %v562 = vadd.f32 0.0, %v561
  %v563 = vpop.f32.mrb[0].mxu0
  %v564 = vadd.f32 0.0, %v563
  %v565 = vpop.f32.mrb[0].mxu0
  %v566 = vadd.f32 0.0, %v565
  %567 = vmatprep.mubr.bf16.mxu0 0
  %568 = vmatmul.mubr.bf16.gmra.mrb[0].mxu0 %v328
  %v569 = vpop.f32.mrb[0].mxu0
  %v570 = vadd.f32 0.0, %v569
  %v571 = vpop.f32.mrb[0].mxu0
  %v572 = vadd.f32 0.0, %v571
  %v573 = vpop.f32.mrb[0].mxu0
  %v574 = vadd.f32 0.0, %v573
  %v575 = vpop.f32.mrb[0].mxu0
  %v576 = vadd.f32 0.0, %v575
  %577 = vmatprep.mubr.bf16.mxu0 0
  %578 = vmatmul.mubr.bf16.gmra.mrb[0].mxu0 %v331
  %v579 = vpop.f32.mrb[0].mxu0
  %v580 = vadd.f32 0.0, %v579
  %v581 = vpop.f32.mrb[0].mxu0
  %v582 = vadd.f32 0.0, %v581
  %v583 = vpop.f32.mrb[0].mxu0
  %v584 = vadd.f32 0.0, %v583
  %v585 = vpop.f32.mrb[0].mxu0
  %v586 = vadd.f32 0.0, %v585
  %587 = vmatprep.mubr.bf16.mxu0 0
  %588 = vmatmul.mubr.bf16.gmra.mrb[0].mxu0 %v334
  %v589 = vpop.f32.mrb[0].mxu0
  %v590 = vadd.f32 0.0, %v589
  %v591 = vpop.f32.mrb[0].mxu0
  %v592 = vadd.f32 0.0, %v591
  %v593 = vpop.f32.mrb[0].mxu0
  %v594 = vadd.f32 0.0, %v593
  %v595 = vpop.f32.mrb[0].mxu0
  %v596 = vadd.f32 0.0, %v595
  %597 = vmatprep.mubr.bf16.mxu0 0
  %598 = vmatmul.mubr.bf16.gmra.mrb[0].mxu0 %v337
  %v599 = vpop.f32.mrb[0].mxu0
  %v600 = vadd.f32 0.0, %v599
  %v601 = vpop.f32.mrb[0].mxu0
  %v602 = vadd.f32 0.0, %v601
  %v603 = vpop.f32.mrb[0].mxu0
  %v604 = vadd.f32 0.0, %v603
  %v605 = vpop.f32.mrb[0].mxu0
  %v606 = vadd.f32 0.0, %v605
  %607 = vmatprep.mubr.bf16.mxu0 0
  %608 = vmatmul.mubr.bf16.gmra.mrb[0].mxu0 %v340
  %v609 = vpop.f32.mrb[0].mxu0
  %v610 = vadd.f32 0.0, %v609
  %v611 = vpop.f32.mrb[0].mxu0
  %v612 = vadd.f32 0.0, %v611
  %v613 = vpop.f32.mrb[0].mxu0
  %v614 = vadd.f32 0.0, %v613
  %v615 = vpop.f32.mrb[0].mxu0
  %v616 = vadd.f32 0.0, %v615
  %617 = vmatprep.mubr.bf16.mxu0 0
  %618 = vmatmul.mubr.bf16.gmra.mrb[0].mxu0 %v343
  %v619 = vpop.f32.mrb[0].mxu0
  %v620 = vadd.f32 0.0, %v619
  %v621 = vpop.f32.mrb[0].mxu0
  %v622 = vadd.f32 0.0, %v621
  %v623 = vpop.f32.mrb[0].mxu0
  %v624 = vadd.f32 0.0, %v623
  %v625 = vpop.f32.mrb[0].mxu0
  %v626 = vadd.f32 0.0, %v625
  %627 = vmatprep.mubr.bf16.mxu0 0
  %628 = vmatmul.mubr.bf16.gmra.mrb[0].mxu0 %v346
  %v629 = vpop.f32.mrb[0].mxu0
  %v630 = vadd.f32 0.0, %v629
  %v631 = vpop.f32.mrb[0].mxu0
  %v632 = vadd.f32 0.0, %v631
  %v633 = vpop.f32.mrb[0].mxu0
  %v634 = vadd.f32 0.0, %v633
  %v635 = vpop.f32.mrb[0].mxu0
  %v636 = vadd.f32 0.0, %v635
  %637 = vmatprep.mubr.bf16.mxu0 0
  %638 = vmatmul.mubr.bf16.gmra.mrb[0].mxu0 %v349
  %v639 = vpop.f32.mrb[0].mxu0
  %v640 = vadd.f32 0.0, %v639
  %v641 = vpop.f32.mrb[0].mxu0
  %v642 = vadd.f32 0.0, %v641
  %v643 = vpop.f32.mrb[0].mxu0
  %v644 = vadd.f32 0.0, %v643
  %v645 = vpop.f32.mrb[0].mxu0
  %v646 = vadd.f32 0.0, %v645
  %647 = vmatprep.mubr.bf16.mxu0 0
  %648 = vmatmul.mubr.bf16.gmra.mrb[0].mxu0 %v352
  %v649 = vpop.f32.mrb[0].mxu0
  %v650 = vadd.f32 0.0, %v649
  %v651 = vpop.f32.mrb[0].mxu0
  %v652 = vadd.f32 0.0, %v651
  %v653 = vpop.f32.mrb[0].mxu0
  %v654 = vadd.f32 0.0, %v653
  %v655 = vpop.f32.mrb[0].mxu0
  %v656 = vadd.f32 0.0, %v655
  %657 = vmatprep.mubr.bf16.mxu0 0
  %658 = vmatmul.mubr.bf16.gmra.mrb[0].mxu0 %v355
  %v659 = vpop.f32.mrb[0].mxu0
  %v660 = vadd.f32 0.0, %v659
  %v661 = vpop.f32.mrb[0].mxu0
  %v662 = vadd.f32 0.0, %v661
  %v663 = vpop.f32.mrb[0].mxu0
  %v664 = vadd.f32 0.0, %v663
  %v665 = vpop.f32.mrb[0].mxu0
  %v666 = vadd.f32 0.0, %v665
  %667 = vmatprep.mubr.bf16.mxu0 0
  %668 = vmatmul.mubr.bf16.gmra.mrb[0].mxu0 %v358
  %v669 = vpop.f32.mrb[0].mxu0
  %v670 = vadd.f32 0.0, %v669
  %v671 = vpop.f32.mrb[0].mxu0
  %v672 = vadd.f32 0.0, %v671
  %v673 = vpop.f32.mrb[0].mxu0
  %v674 = vadd.f32 0.0, %v673
  %v675 = vpop.f32.mrb[0].mxu0
  %v676 = vadd.f32 0.0, %v675
  %677 = vmatprep.mubr.bf16.mxu0 0
  %678 = vmatmul.mubr.bf16.gmra.mrb[0].mxu0 %v361
  %v679 = vpop.f32.mrb[0].mxu0
  %v680 = vadd.f32 0.0, %v679
  %v681 = vpop.f32.mrb[0].mxu0
  %v682 = vadd.f32 0.0, %v681
  %v683 = vpop.f32.mrb[0].mxu0
  %v684 = vadd.f32 0.0, %v683
  %v685 = vpop.f32.mrb[0].mxu0
  %v686 = vadd.f32 0.0, %v685
  %687 = vmatprep.mubr.bf16.mxu0 0
  %688 = vmatmul.mubr.bf16.gmra.mrb[0].mxu0 %v364
  %v689 = vpop.f32.mrb[0].mxu0
  %v690 = vadd.f32 0.0, %v689
  %v691 = vpop.f32.mrb[0].mxu0
  %v692 = vadd.f32 0.0, %v691
  %v693 = vpop.f32.mrb[0].mxu0
  %v694 = vadd.f32 0.0, %v693
  %v695 = vpop.f32.mrb[0].mxu0
  %v696 = vadd.f32 0.0, %v695
  %697 = vmatprep.mubr.bf16.mxu0 0
  %698 = vmatmul.mubr.bf16.gmra.mrb[0].mxu0 %v367
  %v699 = vpop.f32.mrb[0].mxu0
  %v700 = vadd.f32 0.0, %v699
  %v701 = vpop.f32.mrb[0].mxu0
  %v702 = vadd.f32 0.0, %v701
  %v703 = vpop.f32.mrb[0].mxu0
  %v704 = vadd.f32 0.0, %v703
  %v705 = vpop.f32.mrb[0].mxu0
  %v706 = vadd.f32 0.0, %v705
  %707 = vmatprep.mubr.bf16.mxu0 0
  %708 = vmatmul.mubr.bf16.gmra.mrb[0].mxu0 %v370
  %v709 = vpop.f32.mrb[0].mxu0
  %v710 = vadd.f32 0.0, %v709
  %v711 = vpop.f32.mrb[0].mxu0
  %v712 = vadd.f32 0.0, %v711
  %v713 = vpop.f32.mrb[0].mxu0
  %v714 = vadd.f32 0.0, %v713
  %v715 = vpop.f32.mrb[0].mxu0
  %v716 = vadd.f32 0.0, %v715
  %717 = vmatprep.mubr.bf16.mxu0 0
  %718 = vmatmul.mubr.bf16.gmra.mrb[0].mxu0 %v373
  %v719 = vpop.f32.mrb[0].mxu0
  %v720 = vadd.f32 0.0, %v719
  %v721 = vpop.f32.mrb[0].mxu0
  %v722 = vadd.f32 0.0, %v721
  %v723 = vpop.f32.mrb[0].mxu0
  %v724 = vadd.f32 0.0, %v723
  %v725 = vpop.f32.mrb[0].mxu0
  %v726 = vadd.f32 0.0, %v725
  %727 = vmatprep.mubr.bf16.mxu0 0
  %728 = vmatmul.mubr.bf16.gmra.mrb[0].mxu0 %v376
  %v729 = vpop.f32.mrb[0].mxu0
  %v730 = vadd.f32 0.0, %v729
  %v731 = vpop.f32.mrb[0].mxu0
  %v732 = vadd.f32 0.0, %v731
  %v733 = vpop.f32.mrb[0].mxu0
  %v734 = vadd.f32 0.0, %v733
  %v735 = vpop.f32.mrb[0].mxu0
  %v736 = vadd.f32 0.0, %v735
  %737 = vdwg.mxu0
  %v738 = vadd.f32 %v420, %v424
  %v739 = vadd.f32 %v738, %v430
  %v740 = vadd.f32 %v739, %v434
  %v741 = vadd.f32 %v740, %v440
  %v742 = vadd.f32 %v741, %v444
  %v743 = vadd.f32 %v742, %v450
  %v744 = vadd.f32 %v743, %v454
  %v745 = vadd.f32 %v744, %v460
  %v746 = vadd.f32 %v745, %v464
  %v747 = vadd.f32 %v746, %v470
  %v748 = vadd.f32 %v747, %v474
  %v749 = vadd.f32 %v748, %v480
  %v750 = vadd.f32 %v749, %v484
  %v751 = vadd.f32 %v750, %v490
  %v752 = vadd.f32 %v751, %v494
  %v753 = vadd.f32 %v752, %v500
  %v754 = vadd.f32 %v753, %v504
  %v755 = vadd.f32 %v754, %v510
  %v756 = vadd.f32 %v755, %v514
  %v757 = vadd.f32 %v756, %v520
  %v758 = vadd.f32 %v757, %v524
  %v759 = vadd.f32 %v758, %v530
  %v760 = vadd.f32 %v759, %v534
  %v761 = vadd.f32 %v760, %v540
  %v762 = vadd.f32 %v761, %v544
  %v763 = vadd.f32 %v762, %v550
  %v764 = vadd.f32 %v763, %v554
  %v765 = vadd.f32 %v764, %v560
  %v766 = vadd.f32 %v765, %v564
  %v767 = vadd.f32 %v766, %v570
  %v768 = vadd.f32 %v767, %v574
  %v769 = vadd.f32 %v768, %v580
  %v770 = vadd.f32 %v769, %v584
  %v771 = vadd.f32 %v770, %v590
  %v772 = vadd.f32 %v771, %v594
  %v773 = vadd.f32 %v772, %v600
  %v774 = vadd.f32 %v773, %v604
  %v775 = vadd.f32 %v774, %v610
  %v776 = vadd.f32 %v775, %v614
  %v777 = vadd.f32 %v776, %v620
  %v778 = vadd.f32 %v777, %v624
  %v779 = vadd.f32 %v778, %v630
  %v780 = vadd.f32 %v779, %v634
  %v781 = vadd.f32 %v780, %v640
  %v782 = vadd.f32 %v781, %v644
  %v783 = vadd.f32 %v782, %v650
  %v784 = vadd.f32 %v783, %v654
  %v785 = vadd.f32 %v784, %v660
  %v786 = vadd.f32 %v785, %v664
  %v787 = vadd.f32 %v786, %v670
  %v788 = vadd.f32 %v787, %v674
  %v789 = vadd.f32 %v788, %v680
  %v790 = vadd.f32 %v789, %v684
  %v791 = vadd.f32 %v790, %v690
  %v792 = vadd.f32 %v791, %v694
  %v793 = vadd.f32 %v792, %v700
  %v794 = vadd.f32 %v793, %v704
  %v795 = vadd.f32 %v794, %v710
  %v796 = vadd.f32 %v795, %v714
  %v797 = vadd.f32 %v796, %v720
  %v798 = vadd.f32 %v797, %v724
  %v799 = vadd.f32 %v798, %v730
  %v800 = vadd.f32 %v799, %v734
  %v801 = vrot.slane %v800, 4
  %v802 = vadd.f32 %v800, %v801
  %v803 = vrot.slane %v802, 2
  %v804 = vadd.f32 %v802, %v803
  %v805 = vrot.slane %v804, 1
  %v806 = vadd.f32 %v804, %v805
  %v807 = vadd.f32 %v422, %v426
  %v808 = vadd.f32 %v807, %v432
  %v809 = vadd.f32 %v808, %v436
  %v810 = vadd.f32 %v809, %v442
  %v811 = vadd.f32 %v810, %v446
  %v812 = vadd.f32 %v811, %v452
  %v813 = vadd.f32 %v812, %v456
  %v814 = vadd.f32 %v813, %v462
  %v815 = vadd.f32 %v814, %v466
  %v816 = vadd.f32 %v815, %v472
  %v817 = vadd.f32 %v816, %v476
  %v818 = vadd.f32 %v817, %v482
  %v819 = vadd.f32 %v818, %v486
  %v820 = vadd.f32 %v819, %v492
  %v821 = vadd.f32 %v820, %v496
  %v822 = vadd.f32 %v821, %v502
  %v823 = vadd.f32 %v822, %v506
  %v824 = vadd.f32 %v823, %v512
  %v825 = vadd.f32 %v824, %v516
  %v826 = vadd.f32 %v825, %v522
  %v827 = vadd.f32 %v826, %v526
  %v828 = vadd.f32 %v827, %v532
  %v829 = vadd.f32 %v828, %v536
  %v830 = vadd.f32 %v829, %v542
  %v831 = vadd.f32 %v830, %v546
  %v832 = vadd.f32 %v831, %v552
  %v833 = vadd.f32 %v832, %v556
  %v834 = vadd.f32 %v833, %v562
  %v835 = vadd.f32 %v834, %v566
  %v836 = vadd.f32 %v835, %v572
  %v837 = vadd.f32 %v836, %v576
  %v838 = vadd.f32 %v837, %v582
  %v839 = vadd.f32 %v838, %v586
  %v840 = vadd.f32 %v839, %v592
  %v841 = vadd.f32 %v840, %v596
  %v842 = vadd.f32 %v841, %v602
  %v843 = vadd.f32 %v842, %v606
  %v844 = vadd.f32 %v843, %v612
  %v845 = vadd.f32 %v844, %v616
  %v846 = vadd.f32 %v845, %v622
  %v847 = vadd.f32 %v846, %v626
  %v848 = vadd.f32 %v847, %v632
  %v849 = vadd.f32 %v848, %v636
  %v850 = vadd.f32 %v849, %v642
  %v851 = vadd.f32 %v850, %v646
  %v852 = vadd.f32 %v851, %v652
  %v853 = vadd.f32 %v852, %v656
  %v854 = vadd.f32 %v853, %v662
  %v855 = vadd.f32 %v854, %v666
  %v856 = vadd.f32 %v855, %v672
  %v857 = vadd.f32 %v856, %v676
  %v858 = vadd.f32 %v857, %v682
  %v859 = vadd.f32 %v858, %v686
  %v860 = vadd.f32 %v859, %v692
  %v861 = vadd.f32 %v860, %v696
  %v862 = vadd.f32 %v861, %v702
  %v863 = vadd.f32 %v862, %v706
  %v864 = vadd.f32 %v863, %v712
  %v865 = vadd.f32 %v864, %v716
  %v866 = vadd.f32 %v865, %v722
  %v867 = vadd.f32 %v866, %v726
  %v868 = vadd.f32 %v867, %v732
  %v869 = vadd.f32 %v868, %v736
  %v870 = vrot.slane %v869, 4
  %v871 = vadd.f32 %v869, %v870
  %v872 = vrot.slane %v871, 2
  %v873 = vadd.f32 %v871, %v872
  %v874 = vrot.slane %v873, 1
  %v875 = vadd.f32 %v873, %v874
  %v876 = vrcp.pop 512.0
  %v877 = vmul.f32 %v806, %v876
  %v878 = vmul.f32 %v875, %v876
  %v879 = vsub.f32 %v420, %v877
  %v880 = vsub.f32 %v422, %v878
  %v881 = vsub.f32 %v424, %v877
  %v882 = vsub.f32 %v426, %v878
  %v883 = vsub.f32 %v430, %v877
  %v884 = vsub.f32 %v432, %v878
  %v885 = vsub.f32 %v434, %v877
  %v886 = vsub.f32 %v436, %v878
  %v887 = vsub.f32 %v440, %v877
  %v888 = vsub.f32 %v442, %v878
  %v889 = vsub.f32 %v444, %v877
  %v890 = vsub.f32 %v446, %v878
  %v891 = vsub.f32 %v450, %v877
  %v892 = vsub.f32 %v452, %v878
  %v893 = vsub.f32 %v454, %v877
  %v894 = vsub.f32 %v456, %v878
  %v895 = vsub.f32 %v460, %v877
  %v896 = vsub.f32 %v462, %v878
  %v897 = vsub.f32 %v464, %v877
  %v898 = vsub.f32 %v466, %v878
  %v899 = vsub.f32 %v470, %v877
  %v900 = vsub.f32 %v472, %v878
  %v901 = vsub.f32 %v474, %v877
  %v902 = vsub.f32 %v476, %v878
  %v903 = vsub.f32 %v480, %v877
  %v904 = vsub.f32 %v482, %v878
  %v905 = vsub.f32 %v484, %v877
  %v906 = vsub.f32 %v486, %v878
  %v907 = vsub.f32 %v490, %v877
  %v908 = vsub.f32 %v492, %v878
  %v909 = vsub.f32 %v494, %v877
  %v910 = vsub.f32 %v496, %v878
  %v911 = vsub.f32 %v500, %v877
  %v912 = vsub.f32 %v502, %v878
  %v913 = vsub.f32 %v504, %v877
  %v914 = vsub.f32 %v506, %v878
  %v915 = vsub.f32 %v510, %v877
  %v916 = vsub.f32 %v512, %v878
  %v917 = vsub.f32 %v514, %v877
  %v918 = vsub.f32 %v516, %v878
  %v919 = vsub.f32 %v520, %v877
  %v920 = vsub.f32 %v522, %v878
  %v921 = vsub.f32 %v524, %v877
  %v922 = vsub.f32 %v526, %v878
  %v923 = vsub.f32 %v530, %v877
  %v924 = vsub.f32 %v532, %v878
  %v925 = vsub.f32 %v534, %v877
  %v926 = vsub.f32 %v536, %v878
  %v927 = vsub.f32 %v540, %v877
  %v928 = vsub.f32 %v542, %v878
  %v929 = vsub.f32 %v544, %v877
  %v930 = vsub.f32 %v546, %v878
  %v931 = vsub.f32 %v550, %v877
  %v932 = vsub.f32 %v552, %v878
  %v933 = vsub.f32 %v554, %v877
  %v934 = vsub.f32 %v556, %v878
  %v935 = vsub.f32 %v560, %v877
  %v936 = vsub.f32 %v562, %v878
  %v937 = vsub.f32 %v564, %v877
  %v938 = vsub.f32 %v566, %v878
  %v939 = vsub.f32 %v570, %v877
  %v940 = vsub.f32 %v572, %v878
  %v941 = vsub.f32 %v574, %v877
  %v942 = vsub.f32 %v576, %v878
  %v943 = vsub.f32 %v580, %v877
  %v944 = vsub.f32 %v582, %v878
  %v945 = vsub.f32 %v584, %v877
  %v946 = vsub.f32 %v586, %v878
  %v947 = vsub.f32 %v590, %v877
  %v948 = vsub.f32 %v592, %v878
  %v949 = vsub.f32 %v594, %v877
  %v950 = vsub.f32 %v596, %v878
  %v951 = vsub.f32 %v600, %v877
  %v952 = vsub.f32 %v602, %v878
  %v953 = vsub.f32 %v604, %v877
  %v954 = vsub.f32 %v606, %v878
  %v955 = vsub.f32 %v610, %v877
  %v956 = vsub.f32 %v612, %v878
  %v957 = vsub.f32 %v614, %v877
  %v958 = vsub.f32 %v616, %v878
  %v959 = vsub.f32 %v620, %v877
  %v960 = vsub.f32 %v622, %v878
  %v961 = vsub.f32 %v624, %v877
  %v962 = vsub.f32 %v626, %v878
  %v963 = vsub.f32 %v630, %v877
  %v964 = vsub.f32 %v632, %v878
  %v965 = vsub.f32 %v634, %v877
  %v966 = vsub.f32 %v636, %v878
  %v967 = vsub.f32 %v640, %v877
  %v968 = vsub.f32 %v642, %v878
  %v969 = vsub.f32 %v644, %v877
  %v970 = vsub.f32 %v646, %v878
  %v971 = vsub.f32 %v650, %v877
  %v972 = vsub.f32 %v652, %v878
  %v973 = vsub.f32 %v654, %v877
  %v974 = vsub.f32 %v656, %v878
  %v975 = vsub.f32 %v660, %v877
  %v976 = vsub.f32 %v662, %v878
  %v977 = vsub.f32 %v664, %v877
  %v978 = vsub.f32 %v666, %v878
  %v979 = vsub.f32 %v670, %v877
  %v980 = vsub.f32 %v672, %v878
  %v981 = vsub.f32 %v674, %v877
  %v982 = vsub.f32 %v676, %v878
  %v983 = vsub.f32 %v680, %v877
  %v984 = vsub.f32 %v682, %v878
  %v985 = vsub.f32 %v684, %v877
  %v986 = vsub.f32 %v686, %v878
  %v987 = vsub.f32 %v690, %v877
  %v988 = vsub.f32 %v692, %v878
  %v989 = vsub.f32 %v694, %v877
  %v990 = vsub.f32 %v696, %v878
  %v991 = vsub.f32 %v700, %v877
  %v992 = vsub.f32 %v702, %v878
  %v993 = vsub.f32 %v704, %v877
  %v994 = vsub.f32 %v706, %v878
  %v995 = vsub.f32 %v710, %v877
  %v996 = vsub.f32 %v712, %v878
  %v997 = vsub.f32 %v714, %v877
  %v998 = vsub.f32 %v716, %v878
  %v999 = vsub.f32 %v720, %v877
  %v1000 = vsub.f32 %v722, %v878
  %v1001 = vsub.f32 %v724, %v877
  %v1002 = vsub.f32 %v726, %v878
  %v1003 = vsub.f32 %v730, %v877
  %v1004 = vsub.f32 %v732, %v878
  %v1005 = vsub.f32 %v734, %v877
  %v1006 = vsub.f32 %v736, %v878
  %v1007 = vmul.f32 %v879, %v879
  %v1008 = vmul.f32 %v880, %v880
  %v1009 = vmul.f32 %v881, %v881
  %v1010 = vmul.f32 %v882, %v882
  %v1011 = vmul.f32 %v883, %v883
  %v1012 = vmul.f32 %v884, %v884
  %v1013 = vmul.f32 %v885, %v885
  %v1014 = vmul.f32 %v886, %v886
  %v1015 = vmul.f32 %v887, %v887
  %v1016 = vmul.f32 %v888, %v888
  %v1017 = vmul.f32 %v889, %v889
  %v1018 = vmul.f32 %v890, %v890
  %v1019 = vmul.f32 %v891, %v891
  %v1020 = vmul.f32 %v892, %v892
  %v1021 = vmul.f32 %v893, %v893
  %v1022 = vmul.f32 %v894, %v894
  %v1023 = vmul.f32 %v895, %v895
  %v1024 = vmul.f32 %v896, %v896
  %v1025 = vmul.f32 %v897, %v897
  %v1026 = vmul.f32 %v898, %v898
  %v1027 = vmul.f32 %v899, %v899
  %v1028 = vmul.f32 %v900, %v900
  %v1029 = vmul.f32 %v901, %v901
  %v1030 = vmul.f32 %v902, %v902
  %v1031 = vmul.f32 %v903, %v903
  %v1032 = vmul.f32 %v904, %v904
  %v1033 = vmul.f32 %v905, %v905
  %v1034 = vmul.f32 %v906, %v906
  %v1035 = vmul.f32 %v907, %v907
  %v1036 = vmul.f32 %v908, %v908
  %v1037 = vmul.f32 %v909, %v909
  %v1038 = vmul.f32 %v910, %v910
  %v1039 = vmul.f32 %v911, %v911
  %v1040 = vmul.f32 %v912, %v912
  %v1041 = vmul.f32 %v913, %v913
  %v1042 = vmul.f32 %v914, %v914
  %v1043 = vmul.f32 %v915, %v915
  %v1044 = vmul.f32 %v916, %v916
  %v1045 = vmul.f32 %v917, %v917
  %v1046 = vmul.f32 %v918, %v918
  %v1047 = vmul.f32 %v919, %v919
  %v1048 = vmul.f32 %v920, %v920
  %v1049 = vmul.f32 %v921, %v921
  %v1050 = vmul.f32 %v922, %v922
  %v1051 = vmul.f32 %v923, %v923
  %v1052 = vmul.f32 %v924, %v924
  %v1053 = vmul.f32 %v925, %v925
  %v1054 = vmul.f32 %v926, %v926
  %v1055 = vmul.f32 %v927, %v927
  %v1056 = vmul.f32 %v928, %v928
  %v1057 = vmul.f32 %v929, %v929
  %v1058 = vmul.f32 %v930, %v930
  %v1059 = vmul.f32 %v931, %v931
  %v1060 = vmul.f32 %v932, %v932
  %v1061 = vmul.f32 %v933, %v933
  %v1062 = vmul.f32 %v934, %v934
  %v1063 = vmul.f32 %v935, %v935
  %v1064 = vmul.f32 %v936, %v936
  %v1065 = vmul.f32 %v937, %v937
  %v1066 = vmul.f32 %v938, %v938
  %v1067 = vmul.f32 %v939, %v939
  %v1068 = vmul.f32 %v940, %v940
  %v1069 = vmul.f32 %v941, %v941
  %v1070 = vmul.f32 %v942, %v942
  %v1071 = vmul.f32 %v943, %v943
  %v1072 = vmul.f32 %v944, %v944
  %v1073 = vmul.f32 %v945, %v945
  %v1074 = vmul.f32 %v946, %v946
  %v1075 = vmul.f32 %v947, %v947
  %v1076 = vmul.f32 %v948, %v948
  %v1077 = vmul.f32 %v949, %v949
  %v1078 = vmul.f32 %v950, %v950
  %v1079 = vmul.f32 %v951, %v951
  %v1080 = vmul.f32 %v952, %v952
  %v1081 = vmul.f32 %v953, %v953
  %v1082 = vmul.f32 %v954, %v954
  %v1083 = vmul.f32 %v955, %v955
  %v1084 = vmul.f32 %v956, %v956
  %v1085 = vmul.f32 %v957, %v957
  %v1086 = vmul.f32 %v958, %v958
  %v1087 = vmul.f32 %v959, %v959
  %v1088 = vmul.f32 %v960, %v960
  %v1089 = vmul.f32 %v961, %v961
  %v1090 = vmul.f32 %v962, %v962
  %v1091 = vmul.f32 %v963, %v963
  %v1092 = vmul.f32 %v964, %v964
  %v1093 = vmul.f32 %v965, %v965
  %v1094 = vmul.f32 %v966, %v966
  %v1095 = vmul.f32 %v967, %v967
  %v1096 = vmul.f32 %v968, %v968
  %v1097 = vmul.f32 %v969, %v969
  %v1098 = vmul.f32 %v970, %v970
  %v1099 = vmul.f32 %v971, %v971
  %v1100 = vmul.f32 %v972, %v972
  %v1101 = vmul.f32 %v973, %v973
  %v1102 = vmul.f32 %v974, %v974
  %v1103 = vmul.f32 %v975, %v975
  %v1104 = vmul.f32 %v976, %v976
  %v1105 = vmul.f32 %v977, %v977
  %v1106 = vmul.f32 %v978, %v978
  %v1107 = vmul.f32 %v979, %v979
  %v1108 = vmul.f32 %v980, %v980
  %v1109 = vmul.f32 %v981, %v981
  %v1110 = vmul.f32 %v982, %v982
  %v1111 = vmul.f32 %v983, %v983
  %v1112 = vmul.f32 %v984, %v984
  %v1113 = vmul.f32 %v985, %v985
  %v1114 = vmul.f32 %v986, %v986
  %v1115 = vmul.f32 %v987, %v987
  %v1116 = vmul.f32 %v988, %v988
  %v1117 = vmul.f32 %v989, %v989
  %v1118 = vmul.f32 %v990, %v990
  %v1119 = vmul.f32 %v991, %v991
  %v1120 = vmul.f32 %v992, %v992
  %v1121 = vmul.f32 %v993, %v993
  %v1122 = vmul.f32 %v994, %v994
  %v1123 = vmul.f32 %v995, %v995
  %v1124 = vmul.f32 %v996, %v996
  %v1125 = vmul.f32 %v997, %v997
  %v1126 = vmul.f32 %v998, %v998
  %v1127 = vmul.f32 %v999, %v999
  %v1128 = vmul.f32 %v1000, %v1000
  %v1129 = vmul.f32 %v1001, %v1001
  %v1130 = vmul.f32 %v1002, %v1002
  %v1131 = vmul.f32 %v1003, %v1003
  %v1132 = vmul.f32 %v1004, %v1004
  %v1133 = vmul.f32 %v1005, %v1005
  %v1134 = vmul.f32 %v1006, %v1006
  %v1135 = vadd.f32 %v1007, %v1009
  %v1136 = vadd.f32 %v1135, %v1011
  %v1137 = vadd.f32 %v1136, %v1013
  %v1138 = vadd.f32 %v1137, %v1015
  %v1139 = vadd.f32 %v1138, %v1017
  %v1140 = vadd.f32 %v1139, %v1019
  %v1141 = vadd.f32 %v1140, %v1021
  %v1142 = vadd.f32 %v1141, %v1023
  %v1143 = vadd.f32 %v1142, %v1025
  %v1144 = vadd.f32 %v1143, %v1027
  %v1145 = vadd.f32 %v1144, %v1029
  %v1146 = vadd.f32 %v1145, %v1031
  %v1147 = vadd.f32 %v1146, %v1033
  %v1148 = vadd.f32 %v1147, %v1035
  %v1149 = vadd.f32 %v1148, %v1037
  %v1150 = vadd.f32 %v1149, %v1039
  %v1151 = vadd.f32 %v1150, %v1041
  %v1152 = vadd.f32 %v1151, %v1043
  %v1153 = vadd.f32 %v1152, %v1045
  %v1154 = vadd.f32 %v1153, %v1047
  %v1155 = vadd.f32 %v1154, %v1049
  %v1156 = vadd.f32 %v1155, %v1051
  %v1157 = vadd.f32 %v1156, %v1053
  %v1158 = vadd.f32 %v1157, %v1055
  %v1159 = vadd.f32 %v1158, %v1057
  %v1160 = vadd.f32 %v1159, %v1059
  %v1161 = vadd.f32 %v1160, %v1061
  %v1162 = vadd.f32 %v1161, %v1063
  %v1163 = vadd.f32 %v1162, %v1065
  %v1164 = vadd.f32 %v1163, %v1067
  %v1165 = vadd.f32 %v1164, %v1069
  %v1166 = vadd.f32 %v1165, %v1071
  %v1167 = vadd.f32 %v1166, %v1073
  %v1168 = vadd.f32 %v1167, %v1075
  %v1169 = vadd.f32 %v1168, %v1077
  %v1170 = vadd.f32 %v1169, %v1079
  %v1171 = vadd.f32 %v1170, %v1081
  %v1172 = vadd.f32 %v1171, %v1083
  %v1173 = vadd.f32 %v1172, %v1085
  %v1174 = vadd.f32 %v1173, %v1087
  %v1175 = vadd.f32 %v1174, %v1089
  %v1176 = vadd.f32 %v1175, %v1091
  %v1177 = vadd.f32 %v1176, %v1093
  %v1178 = vadd.f32 %v1177, %v1095
  %v1179 = vadd.f32 %v1178, %v1097
  %v1180 = vadd.f32 %v1179, %v1099
  %v1181 = vadd.f32 %v1180, %v1101
  %v1182 = vadd.f32 %v1181, %v1103
  %v1183 = vadd.f32 %v1182, %v1105
  %v1184 = vadd.f32 %v1183, %v1107
  %v1185 = vadd.f32 %v1184, %v1109
  %v1186 = vadd.f32 %v1185, %v1111
  %v1187 = vadd.f32 %v1186, %v1113
  %v1188 = vadd.f32 %v1187, %v1115
  %v1189 = vadd.f32 %v1188, %v1117
  %v1190 = vadd.f32 %v1189, %v1119
  %v1191 = vadd.f32 %v1190, %v1121
  %v1192 = vadd.f32 %v1191, %v1123
  %v1193 = vadd.f32 %v1192, %v1125
  %v1194 = vadd.f32 %v1193, %v1127
  %v1195 = vadd.f32 %v1194, %v1129
  %v1196 = vadd.f32 %v1195, %v1131
  %v1197 = vadd.f32 %v1196, %v1133
  %v1198 = vrot.slane %v1197, 4
  %v1199 = vadd.f32 %v1197, %v1198
  %v1200 = vrot.slane %v1199, 2
  %v1201 = vadd.f32 %v1199, %v1200
  %v1202 = vrot.slane %v1201, 1
  %v1203 = vadd.f32 %v1201, %v1202
  %v1204 = vadd.f32 %v1008, %v1010
  %v1205 = vadd.f32 %v1204, %v1012
  %v1206 = vadd.f32 %v1205, %v1014
  %v1207 = vadd.f32 %v1206, %v1016
  %v1208 = vadd.f32 %v1207, %v1018
  %v1209 = vadd.f32 %v1208, %v1020
  %v1210 = vadd.f32 %v1209, %v1022
  %v1211 = vadd.f32 %v1210, %v1024
  %v1212 = vadd.f32 %v1211, %v1026
  %v1213 = vadd.f32 %v1212, %v1028
  %v1214 = vadd.f32 %v1213, %v1030
  %v1215 = vadd.f32 %v1214, %v1032
  %v1216 = vadd.f32 %v1215, %v1034
  %v1217 = vadd.f32 %v1216, %v1036
  %v1218 = vadd.f32 %v1217, %v1038
  %v1219 = vadd.f32 %v1218, %v1040
  %v1220 = vadd.f32 %v1219, %v1042
  %v1221 = vadd.f32 %v1220, %v1044
  %v1222 = vadd.f32 %v1221, %v1046
  %v1223 = vadd.f32 %v1222, %v1048
  %v1224 = vadd.f32 %v1223, %v1050
  %v1225 = vadd.f32 %v1224, %v1052
  %v1226 = vadd.f32 %v1225, %v1054
  %v1227 = vadd.f32 %v1226, %v1056
  %v1228 = vadd.f32 %v1227, %v1058
  %v1229 = vadd.f32 %v1228, %v1060
  %v1230 = vadd.f32 %v1229, %v1062
  %v1231 = vadd.f32 %v1230, %v1064
  %v1232 = vadd.f32 %v1231, %v1066
  %v1233 = vadd.f32 %v1232, %v1068
  %v1234 = vadd.f32 %v1233, %v1070
  %v1235 = vadd.f32 %v1234, %v1072
  %v1236 = vadd.f32 %v1235, %v1074
  %v1237 = vadd.f32 %v1236, %v1076
  %v1238 = vadd.f32 %v1237, %v1078
  %v1239 = vadd.f32 %v1238, %v1080
  %v1240 = vadd.f32 %v1239, %v1082
  %v1241 = vadd.f32 %v1240, %v1084
  %v1242 = vadd.f32 %v1241, %v1086
  %v1243 = vadd.f32 %v1242, %v1088
  %v1244 = vadd.f32 %v1243, %v1090
  %v1245 = vadd.f32 %v1244, %v1092
  %v1246 = vadd.f32 %v1245, %v1094
  %v1247 = vadd.f32 %v1246, %v1096
  %v1248 = vadd.f32 %v1247, %v1098
  %v1249 = vadd.f32 %v1248, %v1100
  %v1250 = vadd.f32 %v1249, %v1102
  %v1251 = vadd.f32 %v1250, %v1104
  %v1252 = vadd.f32 %v1251, %v1106
  %v1253 = vadd.f32 %v1252, %v1108
  %v1254 = vadd.f32 %v1253, %v1110
  %v1255 = vadd.f32 %v1254, %v1112
  %v1256 = vadd.f32 %v1255, %v1114
  %v1257 = vadd.f32 %v1256, %v1116
  %v1258 = vadd.f32 %v1257, %v1118
  %v1259 = vadd.f32 %v1258, %v1120
  %v1260 = vadd.f32 %v1259, %v1122
  %v1261 = vadd.f32 %v1260, %v1124
  %v1262 = vadd.f32 %v1261, %v1126
  %v1263 = vadd.f32 %v1262, %v1128
  %v1264 = vadd.f32 %v1263, %v1130
  %v1265 = vadd.f32 %v1264, %v1132
  %v1266 = vadd.f32 %v1265, %v1134
  %v1267 = vrot.slane %v1266, 4
  %v1268 = vadd.f32 %v1266, %v1267
  %v1269 = vrot.slane %v1268, 2
  %v1270 = vadd.f32 %v1268, %v1269
  %v1271 = vrot.slane %v1270, 1
  %v1272 = vadd.f32 %v1270, %v1271
  %v1273 = vmul.f32 %v1203, %v876
  %v1274 = vmul.f32 %v1272, %v876
  %v1275 = vadd.f32 %v1273, 1e-05
  %v1276 = vadd.f32 %v1274, 1e-05
  %v1277 = vrsqrt.pop %v1275
  %v1278 = vrsqrt.pop %v1276
  %v1279 = vmul.f32 %v879, %v1277
  %v1280 = vmul.f32 %v880, %v1278
  %v1281 = vmul.f32 %v881, %v1277
  %v1282 = vmul.f32 %v882, %v1278
  %v1283 = vmul.f32 %v883, %v1277
  %v1284 = vmul.f32 %v884, %v1278
  %v1285 = vmul.f32 %v885, %v1277
  %v1286 = vmul.f32 %v886, %v1278
  %v1287 = vmul.f32 %v887, %v1277
  %v1288 = vmul.f32 %v888, %v1278
  %v1289 = vmul.f32 %v889, %v1277
  %v1290 = vmul.f32 %v890, %v1278
  %v1291 = vmul.f32 %v891, %v1277
  %v1292 = vmul.f32 %v892, %v1278
  %v1293 = vmul.f32 %v893, %v1277
  %v1294 = vmul.f32 %v894, %v1278
  %v1295 = vmul.f32 %v895, %v1277
  %v1296 = vmul.f32 %v896, %v1278
  %v1297 = vmul.f32 %v897, %v1277
  %v1298 = vmul.f32 %v898, %v1278
  %v1299 = vmul.f32 %v899, %v1277
  %v1300 = vmul.f32 %v900, %v1278
  %v1301 = vmul.f32 %v901, %v1277
  %v1302 = vmul.f32 %v902, %v1278
  %v1303 = vmul.f32 %v903, %v1277
  %v1304 = vmul.f32 %v904, %v1278
  %v1305 = vmul.f32 %v905, %v1277
  %v1306 = vmul.f32 %v906, %v1278
  %v1307 = vmul.f32 %v907, %v1277
  %v1308 = vmul.f32 %v908, %v1278
  %v1309 = vmul.f32 %v909, %v1277
  %v1310 = vmul.f32 %v910, %v1278
  %v1311 = vmul.f32 %v911, %v1277
  %v1312 = vmul.f32 %v912, %v1278
  %v1313 = vmul.f32 %v913, %v1277
  %v1314 = vmul.f32 %v914, %v1278
  %v1315 = vmul.f32 %v915, %v1277
  %v1316 = vmul.f32 %v916, %v1278
  %v1317 = vmul.f32 %v917, %v1277
  %v1318 = vmul.f32 %v918, %v1278
  %v1319 = vmul.f32 %v919, %v1277
  %v1320 = vmul.f32 %v920, %v1278
  %v1321 = vmul.f32 %v921, %v1277
  %v1322 = vmul.f32 %v922, %v1278
  %v1323 = vmul.f32 %v923, %v1277
  %v1324 = vmul.f32 %v924, %v1278
  %v1325 = vmul.f32 %v925, %v1277
  %v1326 = vmul.f32 %v926, %v1278
  %v1327 = vmul.f32 %v927, %v1277
  %v1328 = vmul.f32 %v928, %v1278
  %v1329 = vmul.f32 %v929, %v1277
  %v1330 = vmul.f32 %v930, %v1278
  %v1331 = vmul.f32 %v931, %v1277
  %v1332 = vmul.f32 %v932, %v1278
  %v1333 = vmul.f32 %v933, %v1277
  %v1334 = vmul.f32 %v934, %v1278
  %v1335 = vmul.f32 %v935, %v1277
  %v1336 = vmul.f32 %v936, %v1278
  %v1337 = vmul.f32 %v937, %v1277
  %v1338 = vmul.f32 %v938, %v1278
  %v1339 = vmul.f32 %v939, %v1277
  %v1340 = vmul.f32 %v940, %v1278
  %v1341 = vmul.f32 %v941, %v1277
  %v1342 = vmul.f32 %v942, %v1278
  %v1343 = vmul.f32 %v943, %v1277
  %v1344 = vmul.f32 %v944, %v1278
  %v1345 = vmul.f32 %v945, %v1277
  %v1346 = vmul.f32 %v946, %v1278
  %v1347 = vmul.f32 %v947, %v1277
  %v1348 = vmul.f32 %v948, %v1278
  %v1349 = vmul.f32 %v949, %v1277
  %v1350 = vmul.f32 %v950, %v1278
  %v1351 = vmul.f32 %v951, %v1277
  %v1352 = vmul.f32 %v952, %v1278
  %v1353 = vmul.f32 %v953, %v1277
  %v1354 = vmul.f32 %v954, %v1278
  %v1355 = vmul.f32 %v955, %v1277
  %v1356 = vmul.f32 %v956, %v1278
  %v1357 = vmul.f32 %v957, %v1277
  %v1358 = vmul.f32 %v958, %v1278
  %v1359 = vmul.f32 %v959, %v1277
  %v1360 = vmul.f32 %v960, %v1278
  %v1361 = vmul.f32 %v961, %v1277
  %v1362 = vmul.f32 %v962, %v1278
  %v1363 = vmul.f32 %v963, %v1277
  %v1364 = vmul.f32 %v964, %v1278
  %v1365 = vmul.f32 %v965, %v1277
  %v1366 = vmul.f32 %v966, %v1278
  %v1367 = vmul.f32 %v967, %v1277
  %v1368 = vmul.f32 %v968, %v1278
  %v1369 = vmul.f32 %v969, %v1277
  %v1370 = vmul.f32 %v970, %v1278
  %v1371 = vmul.f32 %v971, %v1277
  %v1372 = vmul.f32 %v972, %v1278
  %v1373 = vmul.f32 %v973, %v1277
  %v1374 = vmul.f32 %v974, %v1278
  %v1375 = vmul.f32 %v975, %v1277
  %v1376 = vmul.f32 %v976, %v1278
  %v1377 = vmul.f32 %v977, %v1277
  %v1378 = vmul.f32 %v978, %v1278
  %v1379 = vmul.f32 %v979, %v1277
  %v1380 = vmul.f32 %v980, %v1278
  %v1381 = vmul.f32 %v981, %v1277
  %v1382 = vmul.f32 %v982, %v1278
  %v1383 = vmul.f32 %v983, %v1277
  %v1384 = vmul.f32 %v984, %v1278
  %v1385 = vmul.f32 %v985, %v1277
  %v1386 = vmul.f32 %v986, %v1278
  %v1387 = vmul.f32 %v987, %v1277
  %v1388 = vmul.f32 %v988, %v1278
  %v1389 = vmul.f32 %v989, %v1277
  %v1390 = vmul.f32 %v990, %v1278
  %v1391 = vmul.f32 %v991, %v1277
  %v1392 = vmul.f32 %v992, %v1278
  %v1393 = vmul.f32 %v993, %v1277
  %v1394 = vmul.f32 %v994, %v1278
  %v1395 = vmul.f32 %v995, %v1277
  %v1396 = vmul.f32 %v996, %v1278
  %v1397 = vmul.f32 %v997, %v1277
  %v1398 = vmul.f32 %v998, %v1278
  %v1399 = vmul.f32 %v999, %v1277
  %v1400 = vmul.f32 %v1000, %v1278
  %v1401 = vmul.f32 %v1001, %v1277
  %v1402 = vmul.f32 %v1002, %v1278
  %v1403 = vmul.f32 %v1003, %v1277
  %v1404 = vmul.f32 %v1004, %v1278
  %v1405 = vmul.f32 %v1005, %v1277
  %v1406 = vmul.f32 %v1006, %v1278
  %v1407 = vld [vmem:[%s2] sm:$0x3]
  %v1409 = vlaneseq
  %v1410 = vshrl.u32 %v1409, 7
  %v1411 = vsub.s32 0, %v1410
  %v1412 = vrot.slane %v1407, %v1411
  %v1413 = vlaneseq
  %v1414 = vshrl.u32 %v1413, 7
  %v1415 = vsub.s32 1, %v1414
  %v1416 = vrot.slane %v1407, %v1415
  %v1419 = vmul.f32 %v1279, %v1412
  %v1420 = vmul.f32 %v1280, %v1416
  %v1421 = vmul.f32 %v1281, %v1412
  %v1422 = vmul.f32 %v1282, %v1416
  %v1423 = vmul.f32 %v1283, %v1412
  %v1424 = vmul.f32 %v1284, %v1416
  %v1425 = vmul.f32 %v1285, %v1412
  %v1426 = vmul.f32 %v1286, %v1416
  %v1427 = vmul.f32 %v1287, %v1412
  %v1428 = vmul.f32 %v1288, %v1416
  %v1429 = vmul.f32 %v1289, %v1412
  %v1430 = vmul.f32 %v1290, %v1416
  %v1431 = vmul.f32 %v1291, %v1412
  %v1432 = vmul.f32 %v1292, %v1416
  %v1433 = vmul.f32 %v1293, %v1412
  %v1434 = vmul.f32 %v1294, %v1416
  %v1435 = vmul.f32 %v1295, %v1412
  %v1436 = vmul.f32 %v1296, %v1416
  %v1437 = vmul.f32 %v1297, %v1412
  %v1438 = vmul.f32 %v1298, %v1416
  %v1439 = vmul.f32 %v1299, %v1412
  %v1440 = vmul.f32 %v1300, %v1416
  %v1441 = vmul.f32 %v1301, %v1412
  %v1442 = vmul.f32 %v1302, %v1416
  %v1443 = vmul.f32 %v1303, %v1412
  %v1444 = vmul.f32 %v1304, %v1416
  %v1445 = vmul.f32 %v1305, %v1412
  %v1446 = vmul.f32 %v1306, %v1416
  %v1447 = vmul.f32 %v1307, %v1412
  %v1448 = vmul.f32 %v1308, %v1416
  %v1449 = vmul.f32 %v1309, %v1412
  %v1450 = vmul.f32 %v1310, %v1416
  %v1451 = vmul.f32 %v1311, %v1412
  %v1452 = vmul.f32 %v1312, %v1416
  %v1453 = vmul.f32 %v1313, %v1412
  %v1454 = vmul.f32 %v1314, %v1416
  %v1455 = vmul.f32 %v1315, %v1412
  %v1456 = vmul.f32 %v1316, %v1416
  %v1457 = vmul.f32 %v1317, %v1412
  %v1458 = vmul.f32 %v1318, %v1416
  %v1459 = vmul.f32 %v1319, %v1412
  %v1460 = vmul.f32 %v1320, %v1416
  %v1461 = vmul.f32 %v1321, %v1412
  %v1462 = vmul.f32 %v1322, %v1416
  %v1463 = vmul.f32 %v1323, %v1412
  %v1464 = vmul.f32 %v1324, %v1416
  %v1465 = vmul.f32 %v1325, %v1412
  %v1466 = vmul.f32 %v1326, %v1416
  %v1467 = vmul.f32 %v1327, %v1412
  %v1468 = vmul.f32 %v1328, %v1416
  %v1469 = vmul.f32 %v1329, %v1412
  %v1470 = vmul.f32 %v1330, %v1416
  %v1471 = vmul.f32 %v1331, %v1412
  %v1472 = vmul.f32 %v1332, %v1416
  %v1473 = vmul.f32 %v1333, %v1412
  %v1474 = vmul.f32 %v1334, %v1416
  %v1475 = vmul.f32 %v1335, %v1412
  %v1476 = vmul.f32 %v1336, %v1416
  %v1477 = vmul.f32 %v1337, %v1412
  %v1478 = vmul.f32 %v1338, %v1416
  %v1479 = vmul.f32 %v1339, %v1412
  %v1480 = vmul.f32 %v1340, %v1416
  %v1481 = vmul.f32 %v1341, %v1412
  %v1482 = vmul.f32 %v1342, %v1416
  %v1483 = vmul.f32 %v1343, %v1412
  %v1484 = vmul.f32 %v1344, %v1416
  %v1485 = vmul.f32 %v1345, %v1412
  %v1486 = vmul.f32 %v1346, %v1416
  %v1487 = vmul.f32 %v1347, %v1412
  %v1488 = vmul.f32 %v1348, %v1416
  %v1489 = vmul.f32 %v1349, %v1412
  %v1490 = vmul.f32 %v1350, %v1416
  %v1491 = vmul.f32 %v1351, %v1412
  %v1492 = vmul.f32 %v1352, %v1416
  %v1493 = vmul.f32 %v1353, %v1412
  %v1494 = vmul.f32 %v1354, %v1416
  %v1495 = vmul.f32 %v1355, %v1412
  %v1496 = vmul.f32 %v1356, %v1416
  %v1497 = vmul.f32 %v1357, %v1412
  %v1498 = vmul.f32 %v1358, %v1416
  %v1499 = vmul.f32 %v1359, %v1412
  %v1500 = vmul.f32 %v1360, %v1416
  %v1501 = vmul.f32 %v1361, %v1412
  %v1502 = vmul.f32 %v1362, %v1416
  %v1503 = vmul.f32 %v1363, %v1412
  %v1504 = vmul.f32 %v1364, %v1416
  %v1505 = vmul.f32 %v1365, %v1412
  %v1506 = vmul.f32 %v1366, %v1416
  %v1507 = vmul.f32 %v1367, %v1412
  %v1508 = vmul.f32 %v1368, %v1416
  %v1509 = vmul.f32 %v1369, %v1412
  %v1510 = vmul.f32 %v1370, %v1416
  %v1511 = vmul.f32 %v1371, %v1412
  %v1512 = vmul.f32 %v1372, %v1416
  %v1513 = vmul.f32 %v1373, %v1412
  %v1514 = vmul.f32 %v1374, %v1416
  %v1515 = vmul.f32 %v1375, %v1412
  %v1516 = vmul.f32 %v1376, %v1416
  %v1517 = vmul.f32 %v1377, %v1412
  %v1518 = vmul.f32 %v1378, %v1416
  %v1519 = vmul.f32 %v1379, %v1412
  %v1520 = vmul.f32 %v1380, %v1416
  %v1521 = vmul.f32 %v1381, %v1412
  %v1522 = vmul.f32 %v1382, %v1416
  %v1523 = vmul.f32 %v1383, %v1412
  %v1524 = vmul.f32 %v1384, %v1416
  %v1525 = vmul.f32 %v1385, %v1412
  %v1526 = vmul.f32 %v1386, %v1416
  %v1527 = vmul.f32 %v1387, %v1412
  %v1528 = vmul.f32 %v1388, %v1416
  %v1529 = vmul.f32 %v1389, %v1412
  %v1530 = vmul.f32 %v1390, %v1416
  %v1531 = vmul.f32 %v1391, %v1412
  %v1532 = vmul.f32 %v1392, %v1416
  %v1533 = vmul.f32 %v1393, %v1412
  %v1534 = vmul.f32 %v1394, %v1416
  %v1535 = vmul.f32 %v1395, %v1412
  %v1536 = vmul.f32 %v1396, %v1416
  %v1537 = vmul.f32 %v1397, %v1412
  %v1538 = vmul.f32 %v1398, %v1416
  %v1539 = vmul.f32 %v1399, %v1412
  %v1540 = vmul.f32 %v1400, %v1416
  %v1541 = vmul.f32 %v1401, %v1412
  %v1542 = vmul.f32 %v1402, %v1416
  %v1543 = vmul.f32 %v1403, %v1412
  %v1544 = vmul.f32 %v1404, %v1416
  %v1545 = vmul.f32 %v1405, %v1412
  %v1546 = vmul.f32 %v1406, %v1416
  %v1547 = vld [vmem:[%s3] sm:$0x3]
  %v1549 = vlaneseq
  %v1550 = vshrl.u32 %v1549, 7
  %v1551 = vsub.s32 0, %v1550
  %v1552 = vrot.slane %v1547, %v1551
  %v1553 = vlaneseq
  %v1554 = vshrl.u32 %v1553, 7
  %v1555 = vsub.s32 1, %v1554
  %v1556 = vrot.slane %v1547, %v1555
  %v1559 = vadd.f32 %v1419, %v1552
  %v1560 = vadd.f32 %v1420, %v1556
  %v1561 = vadd.f32 %v1421, %v1552
  %v1562 = vadd.f32 %v1422, %v1556
  %v1563 = vadd.f32 %v1423, %v1552
  %v1564 = vadd.f32 %v1424, %v1556
  %v1565 = vadd.f32 %v1425, %v1552
  %v1566 = vadd.f32 %v1426, %v1556
  %v1567 = vadd.f32 %v1427, %v1552
  %v1568 = vadd.f32 %v1428, %v1556
  %v1569 = vadd.f32 %v1429, %v1552
  %v1570 = vadd.f32 %v1430, %v1556
  %v1571 = vadd.f32 %v1431, %v1552
  %v1572 = vadd.f32 %v1432, %v1556
  %v1573 = vadd.f32 %v1433, %v1552
  %v1574 = vadd.f32 %v1434, %v1556
  %v1575 = vadd.f32 %v1435, %v1552
  %v1576 = vadd.f32 %v1436, %v1556
  %v1577 = vadd.f32 %v1437, %v1552
  %v1578 = vadd.f32 %v1438, %v1556
  %v1579 = vadd.f32 %v1439, %v1552
  %v1580 = vadd.f32 %v1440, %v1556
  %v1581 = vadd.f32 %v1441, %v1552
  %v1582 = vadd.f32 %v1442, %v1556
  %v1583 = vadd.f32 %v1443, %v1552
  %v1584 = vadd.f32 %v1444, %v1556
  %v1585 = vadd.f32 %v1445, %v1552
  %v1586 = vadd.f32 %v1446, %v1556
  %v1587 = vadd.f32 %v1447, %v1552
  %v1588 = vadd.f32 %v1448, %v1556
  %v1589 = vadd.f32 %v1449, %v1552
  %v1590 = vadd.f32 %v1450, %v1556
  %v1591 = vadd.f32 %v1451, %v1552
  %v1592 = vadd.f32 %v1452, %v1556
  %v1593 = vadd.f32 %v1453, %v1552
  %v1594 = vadd.f32 %v1454, %v1556
  %v1595 = vadd.f32 %v1455, %v1552
  %v1596 = vadd.f32 %v1456, %v1556
  %v1597 = vadd.f32 %v1457, %v1552
  %v1598 = vadd.f32 %v1458, %v1556
  %v1599 = vadd.f32 %v1459, %v1552
  %v1600 = vadd.f32 %v1460, %v1556
  %v1601 = vadd.f32 %v1461, %v1552
  %v1602 = vadd.f32 %v1462, %v1556
  %v1603 = vadd.f32 %v1463, %v1552
  %v1604 = vadd.f32 %v1464, %v1556
  %v1605 = vadd.f32 %v1465, %v1552
  %v1606 = vadd.f32 %v1466, %v1556
  %v1607 = vadd.f32 %v1467, %v1552
  %v1608 = vadd.f32 %v1468, %v1556
  %v1609 = vadd.f32 %v1469, %v1552
  %v1610 = vadd.f32 %v1470, %v1556
  %v1611 = vadd.f32 %v1471, %v1552
  %v1612 = vadd.f32 %v1472, %v1556
  %v1613 = vadd.f32 %v1473, %v1552
  %v1614 = vadd.f32 %v1474, %v1556
  %v1615 = vadd.f32 %v1475, %v1552
  %v1616 = vadd.f32 %v1476, %v1556
  %v1617 = vadd.f32 %v1477, %v1552
  %v1618 = vadd.f32 %v1478, %v1556
  %v1619 = vadd.f32 %v1479, %v1552
  %v1620 = vadd.f32 %v1480, %v1556
  %v1621 = vadd.f32 %v1481, %v1552
  %v1622 = vadd.f32 %v1482, %v1556
  %v1623 = vadd.f32 %v1483, %v1552
  %v1624 = vadd.f32 %v1484, %v1556
  %v1625 = vadd.f32 %v1485, %v1552
  %v1626 = vadd.f32 %v1486, %v1556
  %v1627 = vadd.f32 %v1487, %v1552
  %v1628 = vadd.f32 %v1488, %v1556
  %v1629 = vadd.f32 %v1489, %v1552
  %v1630 = vadd.f32 %v1490, %v1556
  %v1631 = vadd.f32 %v1491, %v1552
  %v1632 = vadd.f32 %v1492, %v1556
  %v1633 = vadd.f32 %v1493, %v1552
  %v1634 = vadd.f32 %v1494, %v1556
  %v1635 = vadd.f32 %v1495, %v1552
  %v1636 = vadd.f32 %v1496, %v1556
  %v1637 = vadd.f32 %v1497, %v1552
  %v1638 = vadd.f32 %v1498, %v1556
  %v1639 = vadd.f32 %v1499, %v1552
  %v1640 = vadd.f32 %v1500, %v1556
  %v1641 = vadd.f32 %v1501, %v1552
  %v1642 = vadd.f32 %v1502, %v1556
  %v1643 = vadd.f32 %v1503, %v1552
  %v1644 = vadd.f32 %v1504, %v1556
  %v1645 = vadd.f32 %v1505, %v1552
  %v1646 = vadd.f32 %v1506, %v1556
  %v1647 = vadd.f32 %v1507, %v1552
  %v1648 = vadd.f32 %v1508, %v1556
  %v1649 = vadd.f32 %v1509, %v1552
  %v1650 = vadd.f32 %v1510, %v1556
  %v1651 = vadd.f32 %v1511, %v1552
  %v1652 = vadd.f32 %v1512, %v1556
  %v1653 = vadd.f32 %v1513, %v1552
  %v1654 = vadd.f32 %v1514, %v1556
  %v1655 = vadd.f32 %v1515, %v1552
  %v1656 = vadd.f32 %v1516, %v1556
  %v1657 = vadd.f32 %v1517, %v1552
  %v1658 = vadd.f32 %v1518, %v1556
  %v1659 = vadd.f32 %v1519, %v1552
  %v1660 = vadd.f32 %v1520, %v1556
  %v1661 = vadd.f32 %v1521, %v1552
  %v1662 = vadd.f32 %v1522, %v1556
  %v1663 = vadd.f32 %v1523, %v1552
  %v1664 = vadd.f32 %v1524, %v1556
  %v1665 = vadd.f32 %v1525, %v1552
  %v1666 = vadd.f32 %v1526, %v1556
  %v1667 = vadd.f32 %v1527, %v1552
  %v1668 = vadd.f32 %v1528, %v1556
  %v1669 = vadd.f32 %v1529, %v1552
  %v1670 = vadd.f32 %v1530, %v1556
  %v1671 = vadd.f32 %v1531, %v1552
  %v1672 = vadd.f32 %v1532, %v1556
  %v1673 = vadd.f32 %v1533, %v1552
  %v1674 = vadd.f32 %v1534, %v1556
  %v1675 = vadd.f32 %v1535, %v1552
  %v1676 = vadd.f32 %v1536, %v1556
  %v1677 = vadd.f32 %v1537, %v1552
  %v1678 = vadd.f32 %v1538, %v1556
  %v1679 = vadd.f32 %v1539, %v1552
  %v1680 = vadd.f32 %v1540, %v1556
  %v1681 = vadd.f32 %v1541, %v1552
  %v1682 = vadd.f32 %v1542, %v1556
  %v1683 = vadd.f32 %v1543, %v1552
  %v1684 = vadd.f32 %v1544, %v1556
  %v1685 = vadd.f32 %v1545, %v1552
  %v1686 = vadd.f32 %v1546, %v1556
  %v1687 = vmax.f32 %v1559, 0.0
  %v1688 = vmax.f32 %v1560, 0.0
  %v1689 = vmax.f32 %v1561, 0.0
  %v1690 = vmax.f32 %v1562, 0.0
  %v1691 = vmax.f32 %v1563, 0.0
  %v1692 = vmax.f32 %v1564, 0.0
  %v1693 = vmax.f32 %v1565, 0.0
  %v1694 = vmax.f32 %v1566, 0.0
  %v1695 = vmax.f32 %v1567, 0.0
  %v1696 = vmax.f32 %v1568, 0.0
  %v1697 = vmax.f32 %v1569, 0.0
  %v1698 = vmax.f32 %v1570, 0.0
  %v1699 = vmax.f32 %v1571, 0.0
  %v1700 = vmax.f32 %v1572, 0.0
  %v1701 = vmax.f32 %v1573, 0.0
  %v1702 = vmax.f32 %v1574, 0.0
  %v1703 = vmax.f32 %v1575, 0.0
  %v1704 = vmax.f32 %v1576, 0.0
  %v1705 = vmax.f32 %v1577, 0.0
  %v1706 = vmax.f32 %v1578, 0.0
  %v1707 = vmax.f32 %v1579, 0.0
  %v1708 = vmax.f32 %v1580, 0.0
  %v1709 = vmax.f32 %v1581, 0.0
  %v1710 = vmax.f32 %v1582, 0.0
  %v1711 = vmax.f32 %v1583, 0.0
  %v1712 = vmax.f32 %v1584, 0.0
  %v1713 = vmax.f32 %v1585, 0.0
  %v1714 = vmax.f32 %v1586, 0.0
  %v1715 = vmax.f32 %v1587, 0.0
  %v1716 = vmax.f32 %v1588, 0.0
  %v1717 = vmax.f32 %v1589, 0.0
  %v1718 = vmax.f32 %v1590, 0.0
  %v1719 = vmax.f32 %v1591, 0.0
  %v1720 = vmax.f32 %v1592, 0.0
  %v1721 = vmax.f32 %v1593, 0.0
  %v1722 = vmax.f32 %v1594, 0.0
  %v1723 = vmax.f32 %v1595, 0.0
  %v1724 = vmax.f32 %v1596, 0.0
  %v1725 = vmax.f32 %v1597, 0.0
  %v1726 = vmax.f32 %v1598, 0.0
  %v1727 = vmax.f32 %v1599, 0.0
  %v1728 = vmax.f32 %v1600, 0.0
  %v1729 = vmax.f32 %v1601, 0.0
  %v1730 = vmax.f32 %v1602, 0.0
  %v1731 = vmax.f32 %v1603, 0.0
  %v1732 = vmax.f32 %v1604, 0.0
  %v1733 = vmax.f32 %v1605, 0.0
  %v1734 = vmax.f32 %v1606, 0.0
  %v1735 = vmax.f32 %v1607, 0.0
  %v1736 = vmax.f32 %v1608, 0.0
  %v1737 = vmax.f32 %v1609, 0.0
  %v1738 = vmax.f32 %v1610, 0.0
  %v1739 = vmax.f32 %v1611, 0.0
  %v1740 = vmax.f32 %v1612, 0.0
  %v1741 = vmax.f32 %v1613, 0.0
  %v1742 = vmax.f32 %v1614, 0.0
  %v1743 = vmax.f32 %v1615, 0.0
  %v1744 = vmax.f32 %v1616, 0.0
  %v1745 = vmax.f32 %v1617, 0.0
  %v1746 = vmax.f32 %v1618, 0.0
  %v1747 = vmax.f32 %v1619, 0.0
  %v1748 = vmax.f32 %v1620, 0.0
  %v1749 = vmax.f32 %v1621, 0.0
  %v1750 = vmax.f32 %v1622, 0.0
  %v1751 = vmax.f32 %v1623, 0.0
  %v1752 = vmax.f32 %v1624, 0.0
  %v1753 = vmax.f32 %v1625, 0.0
  %v1754 = vmax.f32 %v1626, 0.0
  %v1755 = vmax.f32 %v1627, 0.0
  %v1756 = vmax.f32 %v1628, 0.0
  %v1757 = vmax.f32 %v1629, 0.0
  %v1758 = vmax.f32 %v1630, 0.0
  %v1759 = vmax.f32 %v1631, 0.0
  %v1760 = vmax.f32 %v1632, 0.0
  %v1761 = vmax.f32 %v1633, 0.0
  %v1762 = vmax.f32 %v1634, 0.0
  %v1763 = vmax.f32 %v1635, 0.0
  %v1764 = vmax.f32 %v1636, 0.0
  %v1765 = vmax.f32 %v1637, 0.0
  %v1766 = vmax.f32 %v1638, 0.0
  %v1767 = vmax.f32 %v1639, 0.0
  %v1768 = vmax.f32 %v1640, 0.0
  %v1769 = vmax.f32 %v1641, 0.0
  %v1770 = vmax.f32 %v1642, 0.0
  %v1771 = vmax.f32 %v1643, 0.0
  %v1772 = vmax.f32 %v1644, 0.0
  %v1773 = vmax.f32 %v1645, 0.0
  %v1774 = vmax.f32 %v1646, 0.0
  %v1775 = vmax.f32 %v1647, 0.0
  %v1776 = vmax.f32 %v1648, 0.0
  %v1777 = vmax.f32 %v1649, 0.0
  %v1778 = vmax.f32 %v1650, 0.0
  %v1779 = vmax.f32 %v1651, 0.0
  %v1780 = vmax.f32 %v1652, 0.0
  %v1781 = vmax.f32 %v1653, 0.0
  %v1782 = vmax.f32 %v1654, 0.0
  %v1783 = vmax.f32 %v1655, 0.0
  %v1784 = vmax.f32 %v1656, 0.0
  %v1785 = vmax.f32 %v1657, 0.0
  %v1786 = vmax.f32 %v1658, 0.0
  %v1787 = vmax.f32 %v1659, 0.0
  %v1788 = vmax.f32 %v1660, 0.0
  %v1789 = vmax.f32 %v1661, 0.0
  %v1790 = vmax.f32 %v1662, 0.0
  %v1791 = vmax.f32 %v1663, 0.0
  %v1792 = vmax.f32 %v1664, 0.0
  %v1793 = vmax.f32 %v1665, 0.0
  %v1794 = vmax.f32 %v1666, 0.0
  %v1795 = vmax.f32 %v1667, 0.0
  %v1796 = vmax.f32 %v1668, 0.0
  %v1797 = vmax.f32 %v1669, 0.0
  %v1798 = vmax.f32 %v1670, 0.0
  %v1799 = vmax.f32 %v1671, 0.0
  %v1800 = vmax.f32 %v1672, 0.0
  %v1801 = vmax.f32 %v1673, 0.0
  %v1802 = vmax.f32 %v1674, 0.0
  %v1803 = vmax.f32 %v1675, 0.0
  %v1804 = vmax.f32 %v1676, 0.0
  %v1805 = vmax.f32 %v1677, 0.0
  %v1806 = vmax.f32 %v1678, 0.0
  %v1807 = vmax.f32 %v1679, 0.0
  %v1808 = vmax.f32 %v1680, 0.0
  %v1809 = vmax.f32 %v1681, 0.0
  %v1810 = vmax.f32 %v1682, 0.0
  %v1811 = vmax.f32 %v1683, 0.0
  %v1812 = vmax.f32 %v1684, 0.0
  %v1813 = vmax.f32 %v1685, 0.0
  %v1814 = vmax.f32 %v1686, 0.0
  %v1815 = vpack.c.bf16 %v1689, %v1687
  %v1816 = vpack.c.bf16 %v1690, %v1688
  %v1817 = vpack.c.bf16 %v1693, %v1691
  %v1818 = vpack.c.bf16 %v1694, %v1692
  %v1819 = vpack.c.bf16 %v1697, %v1695
  %v1820 = vpack.c.bf16 %v1698, %v1696
  %v1821 = vpack.c.bf16 %v1701, %v1699
  %v1822 = vpack.c.bf16 %v1702, %v1700
  %v1823 = vpack.c.bf16 %v1705, %v1703
  %v1824 = vpack.c.bf16 %v1706, %v1704
  %v1825 = vpack.c.bf16 %v1709, %v1707
  %v1826 = vpack.c.bf16 %v1710, %v1708
  %v1827 = vpack.c.bf16 %v1713, %v1711
  %v1828 = vpack.c.bf16 %v1714, %v1712
  %v1829 = vpack.c.bf16 %v1717, %v1715
  %v1830 = vpack.c.bf16 %v1718, %v1716
  %v1831 = vpack.c.bf16 %v1721, %v1719
  %v1832 = vpack.c.bf16 %v1722, %v1720
  %v1833 = vpack.c.bf16 %v1725, %v1723
  %v1834 = vpack.c.bf16 %v1726, %v1724
  %v1835 = vpack.c.bf16 %v1729, %v1727
  %v1836 = vpack.c.bf16 %v1730, %v1728
  %v1837 = vpack.c.bf16 %v1733, %v1731
  %v1838 = vpack.c.bf16 %v1734, %v1732
  %v1839 = vpack.c.bf16 %v1737, %v1735
  %v1840 = vpack.c.bf16 %v1738, %v1736
  %v1841 = vpack.c.bf16 %v1741, %v1739
  %v1842 = vpack.c.bf16 %v1742, %v1740
  %v1843 = vpack.c.bf16 %v1745, %v1743
  %v1844 = vpack.c.bf16 %v1746, %v1744
  %v1845 = vpack.c.bf16 %v1749, %v1747
  %v1846 = vpack.c.bf16 %v1750, %v1748
  %v1847 = vpack.c.bf16 %v1753, %v1751
  %v1848 = vpack.c.bf16 %v1754, %v1752
  %v1849 = vpack.c.bf16 %v1757, %v1755
  %v1850 = vpack.c.bf16 %v1758, %v1756
  %v1851 = vpack.c.bf16 %v1761, %v1759
  %v1852 = vpack.c.bf16 %v1762, %v1760
  %v1853 = vpack.c.bf16 %v1765, %v1763
  %v1854 = vpack.c.bf16 %v1766, %v1764
  %v1855 = vpack.c.bf16 %v1769, %v1767
  %v1856 = vpack.c.bf16 %v1770, %v1768
  %v1857 = vpack.c.bf16 %v1773, %v1771
  %v1858 = vpack.c.bf16 %v1774, %v1772
  %v1859 = vpack.c.bf16 %v1777, %v1775
  %v1860 = vpack.c.bf16 %v1778, %v1776
  %v1861 = vpack.c.bf16 %v1781, %v1779
  %v1862 = vpack.c.bf16 %v1782, %v1780
  %v1863 = vpack.c.bf16 %v1785, %v1783
  %v1864 = vpack.c.bf16 %v1786, %v1784
  %v1865 = vpack.c.bf16 %v1789, %v1787
  %v1866 = vpack.c.bf16 %v1790, %v1788
  %v1867 = vpack.c.bf16 %v1793, %v1791
  %v1868 = vpack.c.bf16 %v1794, %v1792
  %v1869 = vpack.c.bf16 %v1797, %v1795
  %v1870 = vpack.c.bf16 %v1798, %v1796
  %v1871 = vpack.c.bf16 %v1801, %v1799
  %v1872 = vpack.c.bf16 %v1802, %v1800
  %v1873 = vpack.c.bf16 %v1805, %v1803
  %v1874 = vpack.c.bf16 %v1806, %v1804
  %v1875 = vpack.c.bf16 %v1809, %v1807
  %v1876 = vpack.c.bf16 %v1810, %v1808
  %v1877 = vpack.c.bf16 %v1813, %v1811
  %v1878 = vpack.c.bf16 %v1814, %v1812
  %v1879 = vld [vmem:[%s4] sm:$0xf]
  %v1880 = vld [vmem:[%s4 + $0x4] sm:$0xf]
  %v1881 = vld [vmem:[%s4 + $0x8] sm:$0xf]
  %v1882 = vld [vmem:[%s4 + $0xc] sm:$0xf]
  %v1883 = vld [vmem:[%s4 + $0x10] sm:$0xf]
  %v1884 = vld [vmem:[%s4 + $0x14] sm:$0xf]
  %v1885 = vld [vmem:[%s4 + $0x18] sm:$0xf]
  %v1886 = vld [vmem:[%s4 + $0x1c] sm:$0xf]
  %v1887 = vld [vmem:[%s4 + $0x20] sm:$0xf]
  %v1888 = vld [vmem:[%s4 + $0x24] sm:$0xf]
  %v1889 = vld [vmem:[%s4 + $0x28] sm:$0xf]
  %v1890 = vld [vmem:[%s4 + $0x2c] sm:$0xf]
  %v1891 = vld [vmem:[%s4 + $0x30] sm:$0xf]
  %v1892 = vld [vmem:[%s4 + $0x34] sm:$0xf]
  %v1893 = vld [vmem:[%s4 + $0x38] sm:$0xf]
  %v1894 = vld [vmem:[%s4 + $0x3c] sm:$0xf]
  %v1895 = vld [vmem:[%s4 + $0x40] sm:$0xf]
  %v1896 = vld [vmem:[%s4 + $0x44] sm:$0xf]
  %v1897 = vld [vmem:[%s4 + $0x48] sm:$0xf]
  %v1898 = vld [vmem:[%s4 + $0x4c] sm:$0xf]
  %v1899 = vld [vmem:[%s4 + $0x50] sm:$0xf]
  %v1900 = vld [vmem:[%s4 + $0x54] sm:$0xf]
  %v1901 = vld [vmem:[%s4 + $0x58] sm:$0xf]
  %v1902 = vld [vmem:[%s4 + $0x5c] sm:$0xf]
  %v1903 = vld [vmem:[%s4 + $0x60] sm:$0xf]
  %v1904 = vld [vmem:[%s4 + $0x64] sm:$0xf]
  %v1905 = vld [vmem:[%s4 + $0x68] sm:$0xf]
  %v1906 = vld [vmem:[%s4 + $0x6c] sm:$0xf]
  %v1907 = vld [vmem:[%s4 + $0x70] sm:$0xf]
  %v1908 = vld [vmem:[%s4 + $0x74] sm:$0xf]
  %v1909 = vld [vmem:[%s4 + $0x78] sm:$0xf]
  %v1910 = vld [vmem:[%s4 + $0x7c] sm:$0xf]
  %v1911 = vld [vmem:[%s5] sm:$0x1]
  %v1913 = vlaneseq
  %v1914 = vshrl.u32 %v1913, 7
  %v1915 = vsub.s32 0, %v1914
  %v1916 = vrot.slane %v1911, %v1915
  %v1950 = vunpack.c.l.b16 %v1879
  %v1951 = vunpack.c.l.b16 %v1880
  %v1952 = vunpack.c.l.b16 %v1881
  %v1953 = vunpack.c.l.b16 %v1882
  %v1954 = vunpack.c.l.b16 %v1883
  %v1955 = vunpack.c.l.b16 %v1884
  %v1956 = vunpack.c.l.b16 %v1885
  %v1957 = vunpack.c.l.b16 %v1886
  %v1958 = vunpack.c.l.b16 %v1887
  %v1959 = vunpack.c.l.b16 %v1888
  %v1960 = vunpack.c.l.b16 %v1889
  %v1961 = vunpack.c.l.b16 %v1890
  %v1962 = vunpack.c.l.b16 %v1891
  %v1963 = vunpack.c.l.b16 %v1892
  %v1964 = vunpack.c.l.b16 %v1893
  %v1965 = vunpack.c.l.b16 %v1894
  %v1966 = vunpack.c.l.b16 %v1895
  %v1967 = vunpack.c.l.b16 %v1896
  %v1968 = vunpack.c.l.b16 %v1897
  %v1969 = vunpack.c.l.b16 %v1898
  %v1970 = vunpack.c.l.b16 %v1899
  %v1971 = vunpack.c.l.b16 %v1900
  %v1972 = vunpack.c.l.b16 %v1901
  %v1973 = vunpack.c.l.b16 %v1902
  %v1974 = vunpack.c.l.b16 %v1903
  %v1975 = vunpack.c.l.b16 %v1904
  %v1976 = vunpack.c.l.b16 %v1905
  %v1977 = vunpack.c.l.b16 %v1906
  %v1978 = vunpack.c.l.b16 %v1907
  %v1979 = vunpack.c.l.b16 %v1908
  %v1980 = vunpack.c.l.b16 %v1909
  %v1981 = vunpack.c.l.b16 %v1910
  %v1982 = vpack.c.b16 %v1951, %v1950
  %v1983 = vpack.c.b16 %v1953, %v1952
  %v1984 = vpack.c.b16 %v1955, %v1954
  %v1985 = vpack.c.b16 %v1957, %v1956
  %v1986 = vpack.c.b16 %v1959, %v1958
  %v1987 = vpack.c.b16 %v1961, %v1960
  %v1988 = vpack.c.b16 %v1963, %v1962
  %v1989 = vpack.c.b16 %v1965, %v1964
  %v1990 = vpack.c.b16 %v1967, %v1966
  %v1991 = vpack.c.b16 %v1969, %v1968
  %v1992 = vpack.c.b16 %v1971, %v1970
  %v1993 = vpack.c.b16 %v1973, %v1972
  %v1994 = vpack.c.b16 %v1975, %v1974
  %v1995 = vpack.c.b16 %v1977, %v1976
  %v1996 = vpack.c.b16 %v1979, %v1978
  %v1997 = vpack.c.b16 %v1981, %v1980
  %2014 = vmatprep.subr.bf16.mxu0 0
  %2015 = vmatpush1.bf16.msra.mxu0 %v1982
  %2016 = vmatprep.subr.bf16.mxu0 0
  %2017 = vmatpush1.bf16.msra.mxu0 %v1983
  %2018 = vmatprep.subr.bf16.mxu0 0
  %2019 = vmatpush1.bf16.msra.mxu0 %v1984
  %2020 = vmatprep.subr.bf16.mxu0 0
  %2021 = vmatpush1.bf16.msra.mxu0 %v1985
  %2022 = vmatprep.subr.bf16.mxu0 0
  %2023 = vmatpush1.bf16.msra.mxu0 %v1986
  %2024 = vmatprep.subr.bf16.mxu0 0
  %2025 = vmatpush1.bf16.msra.mxu0 %v1987
  %2026 = vmatprep.subr.bf16.mxu0 0
  %2027 = vmatpush1.bf16.msra.mxu0 %v1988
  %2028 = vmatprep.subr.bf16.mxu0 0
  %2029 = vmatpush1.bf16.msra.mxu0 %v1989
  %2030 = vmatprep.subr.bf16.mxu0 0
  %2031 = vmatpush1.bf16.msra.mxu0 %v1990
  %2032 = vmatprep.subr.bf16.mxu0 0
  %2033 = vmatpush1.bf16.msra.mxu0 %v1991
  %2034 = vmatprep.subr.bf16.mxu0 0
  %2035 = vmatpush1.bf16.msra.mxu0 %v1992
  %2036 = vmatprep.subr.bf16.mxu0 0
  %2037 = vmatpush1.bf16.msra.mxu0 %v1993
  %2038 = vmatprep.subr.bf16.mxu0 0
  %2039 = vmatpush1.bf16.msra.mxu0 %v1994
  %2040 = vmatprep.subr.bf16.mxu0 0
  %2041 = vmatpush1.bf16.msra.mxu0 %v1995
  %2042 = vmatprep.subr.bf16.mxu0 0
  %2043 = vmatpush1.bf16.msra.mxu0 %v1996
  %2044 = vmatprep.subr.bf16.mxu0 0
  %2045 = vmatpush1.bf16.msra.mxu0 %v1997
  %2046 = vmatprep.mubr.bf16.mxu0 %v1816
  %2047 = vmatmul.mubr.bf16.gmra.mrb[0].mxu0 %v1815
  %v2048 = vpop.f32.mrb[0].mxu0
  %v2049 = vadd.f32 %v1916, %v2048
  %v2050 = vpop.f32.mrb[0].mxu0
  %v2051 = vpop.f32.mrb[0].mxu0
  %v2052 = vadd.f32 %v1916, %v2051
  %v2053 = vpop.f32.mrb[0].mxu0
  %2054 = vmatprep.mubr.bf16.mxu0 %v1818
  %2055 = vmatmul.mubr.bf16.gmra.mrb[0].mxu0 %v1817
  %v2056 = vpop.f32.mrb[0].mxu0
  %v2057 = vadd.f32 %v1916, %v2056
  %v2058 = vpop.f32.mrb[0].mxu0
  %v2059 = vpop.f32.mrb[0].mxu0
  %v2060 = vadd.f32 %v1916, %v2059
  %v2061 = vpop.f32.mrb[0].mxu0
  %2062 = vmatprep.mubr.bf16.mxu0 %v1820
  %2063 = vmatmul.mubr.bf16.gmra.mrb[0].mxu0 %v1819
  %v2064 = vpop.f32.mrb[0].mxu0
  %v2065 = vadd.f32 %v1916, %v2064
  %v2066 = vpop.f32.mrb[0].mxu0
  %v2067 = vpop.f32.mrb[0].mxu0
  %v2068 = vadd.f32 %v1916, %v2067
  %v2069 = vpop.f32.mrb[0].mxu0
  %2070 = vmatprep.mubr.bf16.mxu0 %v1822
  %2071 = vmatmul.mubr.bf16.gmra.mrb[0].mxu0 %v1821
  %v2072 = vpop.f32.mrb[0].mxu0
  %v2073 = vadd.f32 %v1916, %v2072
  %v2074 = vpop.f32.mrb[0].mxu0
  %v2075 = vpop.f32.mrb[0].mxu0
  %v2076 = vadd.f32 %v1916, %v2075
  %v2077 = vpop.f32.mrb[0].mxu0
  %2078 = vmatprep.mubr.bf16.mxu0 %v1824
  %2079 = vmatmul.mubr.bf16.gmra.mrb[0].mxu0 %v1823
  %v2080 = vpop.f32.mrb[0].mxu0
  %v2081 = vadd.f32 %v1916, %v2080
  %v2082 = vpop.f32.mrb[0].mxu0
  %v2083 = vpop.f32.mrb[0].mxu0
  %v2084 = vadd.f32 %v1916, %v2083
  %v2085 = vpop.f32.mrb[0].mxu0
  %2086 = vmatprep.mubr.bf16.mxu0 %v1826
  %2087 = vmatmul.mubr.bf16.gmra.mrb[0].mxu0 %v1825
  %v2088 = vpop.f32.mrb[0].mxu0
  %v2089 = vadd.f32 %v1916, %v2088
  %v2090 = vpop.f32.mrb[0].mxu0
  %v2091 = vpop.f32.mrb[0].mxu0
  %v2092 = vadd.f32 %v1916, %v2091
  %v2093 = vpop.f32.mrb[0].mxu0
  %2094 = vmatprep.mubr.bf16.mxu0 %v1828
  %2095 = vmatmul.mubr.bf16.gmra.mrb[0].mxu0 %v1827
  %v2096 = vpop.f32.mrb[0].mxu0
  %v2097 = vadd.f32 %v1916, %v2096
  %v2098 = vpop.f32.mrb[0].mxu0
  %v2099 = vpop.f32.mrb[0].mxu0
  %v2100 = vadd.f32 %v1916, %v2099
  %v2101 = vpop.f32.mrb[0].mxu0
  %2102 = vmatprep.mubr.bf16.mxu0 %v1830
  %2103 = vmatmul.mubr.bf16.gmra.mrb[0].mxu0 %v1829
  %v2104 = vpop.f32.mrb[0].mxu0
  %v2105 = vadd.f32 %v1916, %v2104
  %v2106 = vpop.f32.mrb[0].mxu0
  %v2107 = vpop.f32.mrb[0].mxu0
  %v2108 = vadd.f32 %v1916, %v2107
  %v2109 = vpop.f32.mrb[0].mxu0
  %2110 = vmatprep.mubr.bf16.mxu0 %v1832
  %2111 = vmatmul.mubr.bf16.gmra.mrb[0].mxu0 %v1831
  %v2112 = vpop.f32.mrb[0].mxu0
  %v2113 = vadd.f32 %v1916, %v2112
  %v2114 = vpop.f32.mrb[0].mxu0
  %v2115 = vpop.f32.mrb[0].mxu0
  %v2116 = vadd.f32 %v1916, %v2115
  %v2117 = vpop.f32.mrb[0].mxu0
  %2118 = vmatprep.mubr.bf16.mxu0 %v1834
  %2119 = vmatmul.mubr.bf16.gmra.mrb[0].mxu0 %v1833
  %v2120 = vpop.f32.mrb[0].mxu0
  %v2121 = vadd.f32 %v1916, %v2120
  %v2122 = vpop.f32.mrb[0].mxu0
  %v2123 = vpop.f32.mrb[0].mxu0
  %v2124 = vadd.f32 %v1916, %v2123
  %v2125 = vpop.f32.mrb[0].mxu0
  %2126 = vmatprep.mubr.bf16.mxu0 %v1836
  %2127 = vmatmul.mubr.bf16.gmra.mrb[0].mxu0 %v1835
  %v2128 = vpop.f32.mrb[0].mxu0
  %v2129 = vadd.f32 %v1916, %v2128
  %v2130 = vpop.f32.mrb[0].mxu0
  %v2131 = vpop.f32.mrb[0].mxu0
  %v2132 = vadd.f32 %v1916, %v2131
  %v2133 = vpop.f32.mrb[0].mxu0
  %2134 = vmatprep.mubr.bf16.mxu0 %v1838
  %2135 = vmatmul.mubr.bf16.gmra.mrb[0].mxu0 %v1837
  %v2136 = vpop.f32.mrb[0].mxu0
  %v2137 = vadd.f32 %v1916, %v2136
  %v2138 = vpop.f32.mrb[0].mxu0
  %v2139 = vpop.f32.mrb[0].mxu0
  %v2140 = vadd.f32 %v1916, %v2139
  %v2141 = vpop.f32.mrb[0].mxu0
  %2142 = vmatprep.mubr.bf16.mxu0 %v1840
  %2143 = vmatmul.mubr.bf16.gmra.mrb[0].mxu0 %v1839
  %v2144 = vpop.f32.mrb[0].mxu0
  %v2145 = vadd.f32 %v1916, %v2144
  %v2146 = vpop.f32.mrb[0].mxu0
  %v2147 = vpop.f32.mrb[0].mxu0
  %v2148 = vadd.f32 %v1916, %v2147
  %v2149 = vpop.f32.mrb[0].mxu0
  %2150 = vmatprep.mubr.bf16.mxu0 %v1842
  %2151 = vmatmul.mubr.bf16.gmra.mrb[0].mxu0 %v1841
  %v2152 = vpop.f32.mrb[0].mxu0
  %v2153 = vadd.f32 %v1916, %v2152
  %v2154 = vpop.f32.mrb[0].mxu0
  %v2155 = vpop.f32.mrb[0].mxu0
  %v2156 = vadd.f32 %v1916, %v2155
  %v2157 = vpop.f32.mrb[0].mxu0
  %2158 = vmatprep.mubr.bf16.mxu0 %v1844
  %2159 = vmatmul.mubr.bf16.gmra.mrb[0].mxu0 %v1843
  %v2160 = vpop.f32.mrb[0].mxu0
  %v2161 = vadd.f32 %v1916, %v2160
  %v2162 = vpop.f32.mrb[0].mxu0
  %v2163 = vpop.f32.mrb[0].mxu0
  %v2164 = vadd.f32 %v1916, %v2163
  %v2165 = vpop.f32.mrb[0].mxu0
  %2166 = vmatprep.mubr.bf16.mxu0 %v1846
  %2167 = vmatmul.mubr.bf16.gmra.mrb[0].mxu0 %v1845
  %v2168 = vpop.f32.mrb[0].mxu0
  %v2169 = vadd.f32 %v1916, %v2168
  %v2170 = vpop.f32.mrb[0].mxu0
  %v2171 = vpop.f32.mrb[0].mxu0
  %v2172 = vadd.f32 %v1916, %v2171
  %v2173 = vpop.f32.mrb[0].mxu0
  %2174 = vmatprep.mubr.bf16.mxu0 %v1848
  %2175 = vmatmul.mubr.bf16.gmra.mrb[0].mxu0 %v1847
  %v2176 = vpop.f32.mrb[0].mxu0
  %v2177 = vadd.f32 %v1916, %v2176
  %v2178 = vpop.f32.mrb[0].mxu0
  %v2179 = vpop.f32.mrb[0].mxu0
  %v2180 = vadd.f32 %v1916, %v2179
  %v2181 = vpop.f32.mrb[0].mxu0
  %2182 = vmatprep.mubr.bf16.mxu0 %v1850
  %2183 = vmatmul.mubr.bf16.gmra.mrb[0].mxu0 %v1849
  %v2184 = vpop.f32.mrb[0].mxu0
  %v2185 = vadd.f32 %v1916, %v2184
  %v2186 = vpop.f32.mrb[0].mxu0
  %v2187 = vpop.f32.mrb[0].mxu0
  %v2188 = vadd.f32 %v1916, %v2187
  %v2189 = vpop.f32.mrb[0].mxu0
  %2190 = vmatprep.mubr.bf16.mxu0 %v1852
  %2191 = vmatmul.mubr.bf16.gmra.mrb[0].mxu0 %v1851
  %v2192 = vpop.f32.mrb[0].mxu0
  %v2193 = vadd.f32 %v1916, %v2192
  %v2194 = vpop.f32.mrb[0].mxu0
  %v2195 = vpop.f32.mrb[0].mxu0
  %v2196 = vadd.f32 %v1916, %v2195
  %v2197 = vpop.f32.mrb[0].mxu0
  %2198 = vmatprep.mubr.bf16.mxu0 %v1854
  %2199 = vmatmul.mubr.bf16.gmra.mrb[0].mxu0 %v1853
  %v2200 = vpop.f32.mrb[0].mxu0
  %v2201 = vadd.f32 %v1916, %v2200
  %v2202 = vpop.f32.mrb[0].mxu0
  %v2203 = vpop.f32.mrb[0].mxu0
  %v2204 = vadd.f32 %v1916, %v2203
  %v2205 = vpop.f32.mrb[0].mxu0
  %2206 = vmatprep.mubr.bf16.mxu0 %v1856
  %2207 = vmatmul.mubr.bf16.gmra.mrb[0].mxu0 %v1855
  %v2208 = vpop.f32.mrb[0].mxu0
  %v2209 = vadd.f32 %v1916, %v2208
  %v2210 = vpop.f32.mrb[0].mxu0
  %v2211 = vpop.f32.mrb[0].mxu0
  %v2212 = vadd.f32 %v1916, %v2211
  %v2213 = vpop.f32.mrb[0].mxu0
  %2214 = vmatprep.mubr.bf16.mxu0 %v1858
  %2215 = vmatmul.mubr.bf16.gmra.mrb[0].mxu0 %v1857
  %v2216 = vpop.f32.mrb[0].mxu0
  %v2217 = vadd.f32 %v1916, %v2216
  %v2218 = vpop.f32.mrb[0].mxu0
  %v2219 = vpop.f32.mrb[0].mxu0
  %v2220 = vadd.f32 %v1916, %v2219
  %v2221 = vpop.f32.mrb[0].mxu0
  %2222 = vmatprep.mubr.bf16.mxu0 %v1860
  %2223 = vmatmul.mubr.bf16.gmra.mrb[0].mxu0 %v1859
  %v2224 = vpop.f32.mrb[0].mxu0
  %v2225 = vadd.f32 %v1916, %v2224
  %v2226 = vpop.f32.mrb[0].mxu0
  %v2227 = vpop.f32.mrb[0].mxu0
  %v2228 = vadd.f32 %v1916, %v2227
  %v2229 = vpop.f32.mrb[0].mxu0
  %2230 = vmatprep.mubr.bf16.mxu0 %v1862
  %2231 = vmatmul.mubr.bf16.gmra.mrb[0].mxu0 %v1861
  %v2232 = vpop.f32.mrb[0].mxu0
  %v2233 = vadd.f32 %v1916, %v2232
  %v2234 = vpop.f32.mrb[0].mxu0
  %v2235 = vpop.f32.mrb[0].mxu0
  %v2236 = vadd.f32 %v1916, %v2235
  %v2237 = vpop.f32.mrb[0].mxu0
  %2238 = vmatprep.mubr.bf16.mxu0 %v1864
  %2239 = vmatmul.mubr.bf16.gmra.mrb[0].mxu0 %v1863
  %v2240 = vpop.f32.mrb[0].mxu0
  %v2241 = vadd.f32 %v1916, %v2240
  %v2242 = vpop.f32.mrb[0].mxu0
  %v2243 = vpop.f32.mrb[0].mxu0
  %v2244 = vadd.f32 %v1916, %v2243
  %v2245 = vpop.f32.mrb[0].mxu0
  %2246 = vmatprep.mubr.bf16.mxu0 %v1866
  %2247 = vmatmul.mubr.bf16.gmra.mrb[0].mxu0 %v1865
  %v2248 = vpop.f32.mrb[0].mxu0
  %v2249 = vadd.f32 %v1916, %v2248
  %v2250 = vpop.f32.mrb[0].mxu0
  %v2251 = vpop.f32.mrb[0].mxu0
  %v2252 = vadd.f32 %v1916, %v2251
  %v2253 = vpop.f32.mrb[0].mxu0
  %2254 = vmatprep.mubr.bf16.mxu0 %v1868
  %2255 = vmatmul.mubr.bf16.gmra.mrb[0].mxu0 %v1867
  %v2256 = vpop.f32.mrb[0].mxu0
  %v2257 = vadd.f32 %v1916, %v2256
  %v2258 = vpop.f32.mrb[0].mxu0
  %v2259 = vpop.f32.mrb[0].mxu0
  %v2260 = vadd.f32 %v1916, %v2259
  %v2261 = vpop.f32.mrb[0].mxu0
  %2262 = vmatprep.mubr.bf16.mxu0 %v1870
  %2263 = vmatmul.mubr.bf16.gmra.mrb[0].mxu0 %v1869
  %v2264 = vpop.f32.mrb[0].mxu0
  %v2265 = vadd.f32 %v1916, %v2264
  %v2266 = vpop.f32.mrb[0].mxu0
  %v2267 = vpop.f32.mrb[0].mxu0
  %v2268 = vadd.f32 %v1916, %v2267
  %v2269 = vpop.f32.mrb[0].mxu0
  %2270 = vmatprep.mubr.bf16.mxu0 %v1872
  %2271 = vmatmul.mubr.bf16.gmra.mrb[0].mxu0 %v1871
  %v2272 = vpop.f32.mrb[0].mxu0
  %v2273 = vadd.f32 %v1916, %v2272
  %v2274 = vpop.f32.mrb[0].mxu0
  %v2275 = vpop.f32.mrb[0].mxu0
  %v2276 = vadd.f32 %v1916, %v2275
  %v2277 = vpop.f32.mrb[0].mxu0
  %2278 = vmatprep.mubr.bf16.mxu0 %v1874
  %2279 = vmatmul.mubr.bf16.gmra.mrb[0].mxu0 %v1873
  %v2280 = vpop.f32.mrb[0].mxu0
  %v2281 = vadd.f32 %v1916, %v2280
  %v2282 = vpop.f32.mrb[0].mxu0
  %v2283 = vpop.f32.mrb[0].mxu0
  %v2284 = vadd.f32 %v1916, %v2283
  %v2285 = vpop.f32.mrb[0].mxu0
  %2286 = vmatprep.mubr.bf16.mxu0 %v1876
  %2287 = vmatmul.mubr.bf16.gmra.mrb[0].mxu0 %v1875
  %v2288 = vpop.f32.mrb[0].mxu0
  %v2289 = vadd.f32 %v1916, %v2288
  %v2290 = vpop.f32.mrb[0].mxu0
  %v2291 = vpop.f32.mrb[0].mxu0
  %v2292 = vadd.f32 %v1916, %v2291
  %v2293 = vpop.f32.mrb[0].mxu0
  %2294 = vmatprep.mubr.bf16.mxu0 %v1878
  %2295 = vmatmul.mubr.bf16.gmra.mrb[0].mxu0 %v1877
  %v2296 = vpop.f32.mrb[0].mxu0
  %v2297 = vadd.f32 %v1916, %v2296
  %v2298 = vpop.f32.mrb[0].mxu0
  %v2299 = vpop.f32.mrb[0].mxu0
  %v2300 = vadd.f32 %v1916, %v2299
  %v2301 = vpop.f32.mrb[0].mxu0
  %2302 = vdwg.mxu0
  %v2303 = vpack.c.bf16 %v2052, %v2049
  %v2304 = vpack.c.bf16 %v2060, %v2057
  %v2305 = vpack.c.bf16 %v2068, %v2065
  %v2306 = vpack.c.bf16 %v2076, %v2073
  %v2307 = vpack.c.bf16 %v2084, %v2081
  %v2308 = vpack.c.bf16 %v2092, %v2089
  %v2309 = vpack.c.bf16 %v2100, %v2097
  %v2310 = vpack.c.bf16 %v2108, %v2105
  %v2311 = vpack.c.bf16 %v2116, %v2113
  %v2312 = vpack.c.bf16 %v2124, %v2121
  %v2313 = vpack.c.bf16 %v2132, %v2129
  %v2314 = vpack.c.bf16 %v2140, %v2137
  %v2315 = vpack.c.bf16 %v2148, %v2145
  %v2316 = vpack.c.bf16 %v2156, %v2153
  %v2317 = vpack.c.bf16 %v2164, %v2161
  %v2318 = vpack.c.bf16 %v2172, %v2169
  %v2319 = vld [vmem:[%s6] sm:$0xff]
  %v2320 = vld [vmem:[%s6 + $0x8] sm:$0xff]
  %v2321 = vld [vmem:[%s6 + $0x10] sm:$0xff]
  %v2322 = vld [vmem:[%s6 + $0x18] sm:$0xff]
  %v2323 = vld [vmem:[%s6 + $0x20] sm:$0xff]
  %v2324 = vld [vmem:[%s6 + $0x28] sm:$0xff]
  %v2325 = vld [vmem:[%s6 + $0x30] sm:$0xff]
  %v2326 = vld [vmem:[%s6 + $0x38] sm:$0xff]
  %v2327 = vld [vmem:[%s6 + $0x40] sm:$0xff]
  %v2328 = vld [vmem:[%s6 + $0x48] sm:$0xff]
  %v2329 = vld [vmem:[%s6 + $0x50] sm:$0xff]
  %v2330 = vld [vmem:[%s6 + $0x58] sm:$0xff]
  %v2331 = vld [vmem:[%s6 + $0x60] sm:$0xff]
  %v2332 = vld [vmem:[%s6 + $0x68] sm:$0xff]
  %v2333 = vld [vmem:[%s6 + $0x70] sm:$0xff]
  %v2334 = vld [vmem:[%s6 + $0x78] sm:$0xff]
  %v2335 = vld [vmem:[%s6 + $0x80] sm:$0xff]
  %v2336 = vld [vmem:[%s6 + $0x88] sm:$0xff]
  %v2337 = vld [vmem:[%s6 + $0x90] sm:$0xff]
  %v2338 = vld [vmem:[%s6 + $0x98] sm:$0xff]
  %v2339 = vld [vmem:[%s6 + $0xa0] sm:$0xff]
  %v2340 = vld [vmem:[%s6 + $0xa8] sm:$0xff]
  %v2341 = vld [vmem:[%s6 + $0xb0] sm:$0xff]
  %v2342 = vld [vmem:[%s6 + $0xb8] sm:$0xff]
  %v2343 = vld [vmem:[%s6 + $0xc0] sm:$0xff]
  %v2344 = vld [vmem:[%s6 + $0xc8] sm:$0xff]
  %v2345 = vld [vmem:[%s6 + $0xd0] sm:$0xff]
  %v2346 = vld [vmem:[%s6 + $0xd8] sm:$0xff]
  %v2347 = vld [vmem:[%s6 + $0xe0] sm:$0xff]
  %v2348 = vld [vmem:[%s6 + $0xe8] sm:$0xff]
  %v2349 = vld [vmem:[%s6 + $0xf0] sm:$0xff]
  %v2350 = vld [vmem:[%s6 + $0xf8] sm:$0xff]
  %v2351 = vld [vmem:[%s6 + $0x100] sm:$0xff]
  %v2352 = vld [vmem:[%s6 + $0x108] sm:$0xff]
  %v2353 = vld [vmem:[%s6 + $0x110] sm:$0xff]
  %v2354 = vld [vmem:[%s6 + $0x118] sm:$0xff]
  %v2355 = vld [vmem:[%s6 + $0x120] sm:$0xff]
  %v2356 = vld [vmem:[%s6 + $0x128] sm:$0xff]
  %v2357 = vld [vmem:[%s6 + $0x130] sm:$0xff]
  %v2358 = vld [vmem:[%s6 + $0x138] sm:$0xff]
  %v2359 = vld [vmem:[%s6 + $0x140] sm:$0xff]
  %v2360 = vld [vmem:[%s6 + $0x148] sm:$0xff]
  %v2361 = vld [vmem:[%s6 + $0x150] sm:$0xff]
  %v2362 = vld [vmem:[%s6 + $0x158] sm:$0xff]
  %v2363 = vld [vmem:[%s6 + $0x160] sm:$0xff]
  %v2364 = vld [vmem:[%s6 + $0x168] sm:$0xff]
  %v2365 = vld [vmem:[%s6 + $0x170] sm:$0xff]
  %v2366 = vld [vmem:[%s6 + $0x178] sm:$0xff]
  %v2367 = vld [vmem:[%s6 + $0x180] sm:$0xff]
  %v2368 = vld [vmem:[%s6 + $0x188] sm:$0xff]
  %v2369 = vld [vmem:[%s6 + $0x190] sm:$0xff]
  %v2370 = vld [vmem:[%s6 + $0x198] sm:$0xff]
  %v2371 = vld [vmem:[%s6 + $0x1a0] sm:$0xff]
  %v2372 = vld [vmem:[%s6 + $0x1a8] sm:$0xff]
  %v2373 = vld [vmem:[%s6 + $0x1b0] sm:$0xff]
  %v2374 = vld [vmem:[%s6 + $0x1b8] sm:$0xff]
  %v2375 = vld [vmem:[%s6 + $0x1c0] sm:$0xff]
  %v2376 = vld [vmem:[%s6 + $0x1c8] sm:$0xff]
  %v2377 = vld [vmem:[%s6 + $0x1d0] sm:$0xff]
  %v2378 = vld [vmem:[%s6 + $0x1d8] sm:$0xff]
  %v2379 = vld [vmem:[%s6 + $0x1e0] sm:$0xff]
  %v2380 = vld [vmem:[%s6 + $0x1e8] sm:$0xff]
  %v2381 = vld [vmem:[%s6 + $0x1f0] sm:$0xff]
  %v2382 = vld [vmem:[%s6 + $0x1f8] sm:$0xff]
  %v2383 = vld [vmem:[%s6 + $0x200] sm:$0xff]
  %v2384 = vld [vmem:[%s6 + $0x208] sm:$0xff]
  %v2385 = vld [vmem:[%s6 + $0x210] sm:$0xff]
  %v2386 = vld [vmem:[%s6 + $0x218] sm:$0xff]
  %v2387 = vld [vmem:[%s6 + $0x220] sm:$0xff]
  %v2388 = vld [vmem:[%s6 + $0x228] sm:$0xff]
  %v2389 = vld [vmem:[%s6 + $0x230] sm:$0xff]
  %v2390 = vld [vmem:[%s6 + $0x238] sm:$0xff]
  %v2391 = vld [vmem:[%s6 + $0x240] sm:$0xff]
  %v2392 = vld [vmem:[%s6 + $0x248] sm:$0xff]
  %v2393 = vld [vmem:[%s6 + $0x250] sm:$0xff]
  %v2394 = vld [vmem:[%s6 + $0x258] sm:$0xff]
  %v2395 = vld [vmem:[%s6 + $0x260] sm:$0xff]
  %v2396 = vld [vmem:[%s6 + $0x268] sm:$0xff]
  %v2397 = vld [vmem:[%s6 + $0x270] sm:$0xff]
  %v2398 = vld [vmem:[%s6 + $0x278] sm:$0xff]
  %v2399 = vld [vmem:[%s6 + $0x280] sm:$0xff]
  %v2400 = vld [vmem:[%s6 + $0x288] sm:$0xff]
  %v2401 = vld [vmem:[%s6 + $0x290] sm:$0xff]
  %v2402 = vld [vmem:[%s6 + $0x298] sm:$0xff]
  %v2403 = vld [vmem:[%s6 + $0x2a0] sm:$0xff]
  %v2404 = vld [vmem:[%s6 + $0x2a8] sm:$0xff]
  %v2405 = vld [vmem:[%s6 + $0x2b0] sm:$0xff]
  %v2406 = vld [vmem:[%s6 + $0x2b8] sm:$0xff]
  %v2407 = vld [vmem:[%s6 + $0x2c0] sm:$0xff]
  %v2408 = vld [vmem:[%s6 + $0x2c8] sm:$0xff]
  %v2409 = vld [vmem:[%s6 + $0x2d0] sm:$0xff]
  %v2410 = vld [vmem:[%s6 + $0x2d8] sm:$0xff]
  %v2411 = vld [vmem:[%s6 + $0x2e0] sm:$0xff]
  %v2412 = vld [vmem:[%s6 + $0x2e8] sm:$0xff]
  %v2413 = vld [vmem:[%s6 + $0x2f0] sm:$0xff]
  %v2414 = vld [vmem:[%s6 + $0x2f8] sm:$0xff]
  %v2415 = vld [vmem:[%s6 + $0x300] sm:$0xff]
  %v2416 = vld [vmem:[%s6 + $0x308] sm:$0xff]
  %v2417 = vld [vmem:[%s6 + $0x310] sm:$0xff]
  %v2418 = vld [vmem:[%s6 + $0x318] sm:$0xff]
  %v2419 = vld [vmem:[%s6 + $0x320] sm:$0xff]
  %v2420 = vld [vmem:[%s6 + $0x328] sm:$0xff]
  %v2421 = vld [vmem:[%s6 + $0x330] sm:$0xff]
  %v2422 = vld [vmem:[%s6 + $0x338] sm:$0xff]
  %v2423 = vld [vmem:[%s6 + $0x340] sm:$0xff]
  %v2424 = vld [vmem:[%s6 + $0x348] sm:$0xff]
  %v2425 = vld [vmem:[%s6 + $0x350] sm:$0xff]
  %v2426 = vld [vmem:[%s6 + $0x358] sm:$0xff]
  %v2427 = vld [vmem:[%s6 + $0x360] sm:$0xff]
  %v2428 = vld [vmem:[%s6 + $0x368] sm:$0xff]
  %v2429 = vld [vmem:[%s6 + $0x370] sm:$0xff]
  %v2430 = vld [vmem:[%s6 + $0x378] sm:$0xff]
  %v2431 = vld [vmem:[%s6 + $0x380] sm:$0xff]
  %v2432 = vld [vmem:[%s6 + $0x388] sm:$0xff]
  %v2433 = vld [vmem:[%s6 + $0x390] sm:$0xff]
  %v2434 = vld [vmem:[%s6 + $0x398] sm:$0xff]
  %v2435 = vld [vmem:[%s6 + $0x3a0] sm:$0xff]
  %v2436 = vld [vmem:[%s6 + $0x3a8] sm:$0xff]
  %v2437 = vld [vmem:[%s6 + $0x3b0] sm:$0xff]
  %v2438 = vld [vmem:[%s6 + $0x3b8] sm:$0xff]
  %v2439 = vld [vmem:[%s6 + $0x3c0] sm:$0xff]
  %v2440 = vld [vmem:[%s6 + $0x3c8] sm:$0xff]
  %v2441 = vld [vmem:[%s6 + $0x3d0] sm:$0xff]
  %v2442 = vld [vmem:[%s6 + $0x3d8] sm:$0xff]
  %v2443 = vld [vmem:[%s6 + $0x3e0] sm:$0xff]
  %v2444 = vld [vmem:[%s6 + $0x3e8] sm:$0xff]
  %v2445 = vld [vmem:[%s6 + $0x3f0] sm:$0xff]
  %v2446 = vld [vmem:[%s6 + $0x3f8] sm:$0xff]
  %2447 = vxpose.xlu0.c.b16.start [1/8] %v2303, 128
  %2448 = vxpose.xlu0.c.b16.cont [2/8] %v2304, 128
  %2449 = vxpose.xlu0.c.b16.cont [3/8] %v2305, 128
  %2450 = vxpose.xlu0.c.b16.cont [4/8] %v2306, 128
  %2451 = vxpose.xlu0.c.b16.cont [5/8] %v2307, 128
  %2452 = vxpose.xlu0.c.b16.cont [6/8] %v2308, 128
  %2453 = vxpose.xlu0.c.b16.cont [7/8] %v2309, 128
  %2454 = vxpose.xlu0.c.b16.end [8/8] %v2310, 128
  %v2455 = vpop.trf.xlu0
  %v2456 = vpop.trf.xlu0
  %v2457 = vpop.trf.xlu0
  %v2458 = vpop.trf.xlu0
  %v2459 = vpop.trf.xlu0
  %v2460 = vpop.trf.xlu0
  %v2461 = vpop.trf.xlu0
  %v2462 = vpop.trf.xlu0
  %2463 = vxpose.xlu0.c.b16.start [1/8] %v2311, 128
  %2464 = vxpose.xlu0.c.b16.cont [2/8] %v2312, 128
  %2465 = vxpose.xlu0.c.b16.cont [3/8] %v2313, 128
  %2466 = vxpose.xlu0.c.b16.cont [4/8] %v2314, 128
  %2467 = vxpose.xlu0.c.b16.cont [5/8] %v2315, 128
  %2468 = vxpose.xlu0.c.b16.cont [6/8] %v2316, 128
  %2469 = vxpose.xlu0.c.b16.cont [7/8] %v2317, 128
  %2470 = vxpose.xlu0.c.b16.end [8/8] %v2318, 128
  %v2471 = vpop.trf.xlu0
  %v2472 = vpop.trf.xlu0
  %v2473 = vpop.trf.xlu0
  %v2474 = vpop.trf.xlu0
  %v2475 = vpop.trf.xlu0
  %v2476 = vpop.trf.xlu0
  %v2477 = vpop.trf.xlu0
  %v2478 = vpop.trf.xlu0
  %v2607 = vunpack.c.l.b16 %v2319
  %v2608 = vunpack.c.h.b16 %v2319
  %v2609 = vunpack.c.l.b16 %v2320
  %v2610 = vunpack.c.h.b16 %v2320
  %v2611 = vunpack.c.l.b16 %v2321
  %v2612 = vunpack.c.h.b16 %v2321
  %v2613 = vunpack.c.l.b16 %v2322
  %v2614 = vunpack.c.h.b16 %v2322
  %v2615 = vunpack.c.l.b16 %v2323
  %v2616 = vunpack.c.h.b16 %v2323
  %v2617 = vunpack.c.l.b16 %v2324
  %v2618 = vunpack.c.h.b16 %v2324
  %v2619 = vunpack.c.l.b16 %v2325
  %v2620 = vunpack.c.h.b16 %v2325
  %v2621 = vunpack.c.l.b16 %v2326
  %v2622 = vunpack.c.h.b16 %v2326
  %v2623 = vunpack.c.l.b16 %v2327
  %v2624 = vunpack.c.h.b16 %v2327
  %v2625 = vunpack.c.l.b16 %v2328
  %v2626 = vunpack.c.h.b16 %v2328
  %v2627 = vunpack.c.l.b16 %v2329
  %v2628 = vunpack.c.h.b16 %v2329
  %v2629 = vunpack.c.l.b16 %v2330
  %v2630 = vunpack.c.h.b16 %v2330
  %v2631 = vunpack.c.l.b16 %v2331
  %v2632 = vunpack.c.h.b16 %v2331
  %v2633 = vunpack.c.l.b16 %v2332
  %v2634 = vunpack.c.h.b16 %v2332
  %v2635 = vunpack.c.l.b16 %v2333
  %v2636 = vunpack.c.h.b16 %v2333
  %v2637 = vunpack.c.l.b16 %v2334
  %v2638 = vunpack.c.h.b16 %v2334
  %v2639 = vunpack.c.l.b16 %v2335
  %v2640 = vunpack.c.h.b16 %v2335
  %v2641 = vunpack.c.l.b16 %v2336
  %v2642 = vunpack.c.h.b16 %v2336
  %v2643 = vunpack.c.l.b16 %v2337
  %v2644 = vunpack.c.h.b16 %v2337
  %v2645 = vunpack.c.l.b16 %v2338
  %v2646 = vunpack.c.h.b16 %v2338
  %v2647 = vunpack.c.l.b16 %v2339
  %v2648 = vunpack.c.h.b16 %v2339
  %v2649 = vunpack.c.l.b16 %v2340
  %v2650 = vunpack.c.h.b16 %v2340
  %v2651 = vunpack.c.l.b16 %v2341
  %v2652 = vunpack.c.h.b16 %v2341
  %v2653 = vunpack.c.l.b16 %v2342
  %v2654 = vunpack.c.h.b16 %v2342
  %v2655 = vunpack.c.l.b16 %v2343
  %v2656 = vunpack.c.h.b16 %v2343
  %v2657 = vunpack.c.l.b16 %v2344
  %v2658 = vunpack.c.h.b16 %v2344
  %v2659 = vunpack.c.l.b16 %v2345
  %v2660 = vunpack.c.h.b16 %v2345
  %v2661 = vunpack.c.l.b16 %v2346
  %v2662 = vunpack.c.h.b16 %v2346
  %v2663 = vunpack.c.l.b16 %v2347
  %v2664 = vunpack.c.h.b16 %v2347
  %v2665 = vunpack.c.l.b16 %v2348
  %v2666 = vunpack.c.h.b16 %v2348
  %v2667 = vunpack.c.l.b16 %v2349
  %v2668 = vunpack.c.h.b16 %v2349
  %v2669 = vunpack.c.l.b16 %v2350
  %v2670 = vunpack.c.h.b16 %v2350
  %v2671 = vunpack.c.l.b16 %v2351
  %v2672 = vunpack.c.h.b16 %v2351
  %v2673 = vunpack.c.l.b16 %v2352
  %v2674 = vunpack.c.h.b16 %v2352
  %v2675 = vunpack.c.l.b16 %v2353
  %v2676 = vunpack.c.h.b16 %v2353
  %v2677 = vunpack.c.l.b16 %v2354
  %v2678 = vunpack.c.h.b16 %v2354
  %v2679 = vunpack.c.l.b16 %v2355
  %v2680 = vunpack.c.h.b16 %v2355
  %v2681 = vunpack.c.l.b16 %v2356
  %v2682 = vunpack.c.h.b16 %v2356
  %v2683 = vunpack.c.l.b16 %v2357
  %v2684 = vunpack.c.h.b16 %v2357
  %v2685 = vunpack.c.l.b16 %v2358
  %v2686 = vunpack.c.h.b16 %v2358
  %v2687 = vunpack.c.l.b16 %v2359
  %v2688 = vunpack.c.h.b16 %v2359
  %v2689 = vunpack.c.l.b16 %v2360
  %v2690 = vunpack.c.h.b16 %v2360
  %v2691 = vunpack.c.l.b16 %v2361
  %v2692 = vunpack.c.h.b16 %v2361
  %v2693 = vunpack.c.l.b16 %v2362
  %v2694 = vunpack.c.h.b16 %v2362
  %v2695 = vunpack.c.l.b16 %v2363
  %v2696 = vunpack.c.h.b16 %v2363
  %v2697 = vunpack.c.l.b16 %v2364
  %v2698 = vunpack.c.h.b16 %v2364
  %v2699 = vunpack.c.l.b16 %v2365
  %v2700 = vunpack.c.h.b16 %v2365
  %v2701 = vunpack.c.l.b16 %v2366
  %v2702 = vunpack.c.h.b16 %v2366
  %v2703 = vunpack.c.l.b16 %v2367
  %v2704 = vunpack.c.h.b16 %v2367
  %v2705 = vunpack.c.l.b16 %v2368
  %v2706 = vunpack.c.h.b16 %v2368
  %v2707 = vunpack.c.l.b16 %v2369
  %v2708 = vunpack.c.h.b16 %v2369
  %v2709 = vunpack.c.l.b16 %v2370
  %v2710 = vunpack.c.h.b16 %v2370
  %v2711 = vunpack.c.l.b16 %v2371
  %v2712 = vunpack.c.h.b16 %v2371
  %v2713 = vunpack.c.l.b16 %v2372
  %v2714 = vunpack.c.h.b16 %v2372
  %v2715 = vunpack.c.l.b16 %v2373
  %v2716 = vunpack.c.h.b16 %v2373
  %v2717 = vunpack.c.l.b16 %v2374
  %v2718 = vunpack.c.h.b16 %v2374
  %v2719 = vunpack.c.l.b16 %v2375
  %v2720 = vunpack.c.h.b16 %v2375
  %v2721 = vunpack.c.l.b16 %v2376
  %v2722 = vunpack.c.h.b16 %v2376
  %v2723 = vunpack.c.l.b16 %v2377
  %v2724 = vunpack.c.h.b16 %v2377
  %v2725 = vunpack.c.l.b16 %v2378
  %v2726 = vunpack.c.h.b16 %v2378
  %v2727 = vunpack.c.l.b16 %v2379
  %v2728 = vunpack.c.h.b16 %v2379
  %v2729 = vunpack.c.l.b16 %v2380
  %v2730 = vunpack.c.h.b16 %v2380
  %v2731 = vunpack.c.l.b16 %v2381
  %v2732 = vunpack.c.h.b16 %v2381
  %v2733 = vunpack.c.l.b16 %v2382
  %v2734 = vunpack.c.h.b16 %v2382
  %v2735 = vunpack.c.l.b16 %v2383
  %v2736 = vunpack.c.h.b16 %v2383
  %v2737 = vunpack.c.l.b16 %v2384
  %v2738 = vunpack.c.h.b16 %v2384
  %v2739 = vunpack.c.l.b16 %v2385
  %v2740 = vunpack.c.h.b16 %v2385
  %v2741 = vunpack.c.l.b16 %v2386
  %v2742 = vunpack.c.h.b16 %v2386
  %v2743 = vunpack.c.l.b16 %v2387
  %v2744 = vunpack.c.h.b16 %v2387
  %v2745 = vunpack.c.l.b16 %v2388
  %v2746 = vunpack.c.h.b16 %v2388
  %v2747 = vunpack.c.l.b16 %v2389
  %v2748 = vunpack.c.h.b16 %v2389
  %v2749 = vunpack.c.l.b16 %v2390
  %v2750 = vunpack.c.h.b16 %v2390
  %v2751 = vunpack.c.l.b16 %v2391
  %v2752 = vunpack.c.h.b16 %v2391
  %v2753 = vunpack.c.l.b16 %v2392
  %v2754 = vunpack.c.h.b16 %v2392
  %v2755 = vunpack.c.l.b16 %v2393
  %v2756 = vunpack.c.h.b16 %v2393
  %v2757 = vunpack.c.l.b16 %v2394
  %v2758 = vunpack.c.h.b16 %v2394
  %v2759 = vunpack.c.l.b16 %v2395
  %v2760 = vunpack.c.h.b16 %v2395
  %v2761 = vunpack.c.l.b16 %v2396
  %v2762 = vunpack.c.h.b16 %v2396
  %v2763 = vunpack.c.l.b16 %v2397
  %v2764 = vunpack.c.h.b16 %v2397
  %v2765 = vunpack.c.l.b16 %v2398
  %v2766 = vunpack.c.h.b16 %v2398
  %v2767 = vunpack.c.l.b16 %v2399
  %v2768 = vunpack.c.h.b16 %v2399
  %v2769 = vunpack.c.l.b16 %v2400
  %v2770 = vunpack.c.h.b16 %v2400
  %v2771 = vunpack.c.l.b16 %v2401
  %v2772 = vunpack.c.h.b16 %v2401
  %v2773 = vunpack.c.l.b16 %v2402
  %v2774 = vunpack.c.h.b16 %v2402
  %v2775 = vunpack.c.l.b16 %v2403
  %v2776 = vunpack.c.h.b16 %v2403
  %v2777 = vunpack.c.l.b16 %v2404
  %v2778 = vunpack.c.h.b16 %v2404
  %v2779 = vunpack.c.l.b16 %v2405
  %v2780 = vunpack.c.h.b16 %v2405
  %v2781 = vunpack.c.l.b16 %v2406
  %v2782 = vunpack.c.h.b16 %v2406
  %v2783 = vunpack.c.l.b16 %v2407
  %v2784 = vunpack.c.h.b16 %v2407
  %v2785 = vunpack.c.l.b16 %v2408
  %v2786 = vunpack.c.h.b16 %v2408
  %v2787 = vunpack.c.l.b16 %v2409
  %v2788 = vunpack.c.h.b16 %v2409
  %v2789 = vunpack.c.l.b16 %v2410
  %v2790 = vunpack.c.h.b16 %v2410
  %v2791 = vunpack.c.l.b16 %v2411
  %v2792 = vunpack.c.h.b16 %v2411
  %v2793 = vunpack.c.l.b16 %v2412
  %v2794 = vunpack.c.h.b16 %v2412
  %v2795 = vunpack.c.l.b16 %v2413
  %v2796 = vunpack.c.h.b16 %v2413
  %v2797 = vunpack.c.l.b16 %v2414
  %v2798 = vunpack.c.h.b16 %v2414
  %v2799 = vunpack.c.l.b16 %v2415
  %v2800 = vunpack.c.h.b16 %v2415
  %v2801 = vunpack.c.l.b16 %v2416
  %v2802 = vunpack.c.h.b16 %v2416
  %v2803 = vunpack.c.l.b16 %v2417
  %v2804 = vunpack.c.h.b16 %v2417
  %v2805 = vunpack.c.l.b16 %v2418
  %v2806 = vunpack.c.h.b16 %v2418
  %v2807 = vunpack.c.l.b16 %v2419
  %v2808 = vunpack.c.h.b16 %v2419
  %v2809 = vunpack.c.l.b16 %v2420
  %v2810 = vunpack.c.h.b16 %v2420
  %v2811 = vunpack.c.l.b16 %v2421
  %v2812 = vunpack.c.h.b16 %v2421
  %v2813 = vunpack.c.l.b16 %v2422
  %v2814 = vunpack.c.h.b16 %v2422
  %v2815 = vunpack.c.l.b16 %v2423
  %v2816 = vunpack.c.h.b16 %v2423
  %v2817 = vunpack.c.l.b16 %v2424
  %v2818 = vunpack.c.h.b16 %v2424
  %v2819 = vunpack.c.l.b16 %v2425
  %v2820 = vunpack.c.h.b16 %v2425
  %v2821 = vunpack.c.l.b16 %v2426
  %v2822 = vunpack.c.h.b16 %v2426
  %v2823 = vunpack.c.l.b16 %v2427
  %v2824 = vunpack.c.h.b16 %v2427
  %v2825 = vunpack.c.l.b16 %v2428
  %v2826 = vunpack.c.h.b16 %v2428
  %v2827 = vunpack.c.l.b16 %v2429
  %v2828 = vunpack.c.h.b16 %v2429
  %v2829 = vunpack.c.l.b16 %v2430
  %v2830 = vunpack.c.h.b16 %v2430
  %v2831 = vunpack.c.l.b16 %v2431
  %v2832 = vunpack.c.h.b16 %v2431
  %v2833 = vunpack.c.l.b16 %v2432
  %v2834 = vunpack.c.h.b16 %v2432
  %v2835 = vunpack.c.l.b16 %v2433
  %v2836 = vunpack.c.h.b16 %v2433
  %v2837 = vunpack.c.l.b16 %v2434
  %v2838 = vunpack.c.h.b16 %v2434
  %v2839 = vunpack.c.l.b16 %v2435
  %v2840 = vunpack.c.h.b16 %v2435
  %v2841 = vunpack.c.l.b16 %v2436
  %v2842 = vunpack.c.h.b16 %v2436
  %v2843 = vunpack.c.l.b16 %v2437
  %v2844 = vunpack.c.h.b16 %v2437
  %v2845 = vunpack.c.l.b16 %v2438
  %v2846 = vunpack.c.h.b16 %v2438
  %v2847 = vunpack.c.l.b16 %v2439
  %v2848 = vunpack.c.h.b16 %v2439
  %v2849 = vunpack.c.l.b16 %v2440
  %v2850 = vunpack.c.h.b16 %v2440
  %v2851 = vunpack.c.l.b16 %v2441
  %v2852 = vunpack.c.h.b16 %v2441
  %v2853 = vunpack.c.l.b16 %v2442
  %v2854 = vunpack.c.h.b16 %v2442
  %v2855 = vunpack.c.l.b16 %v2443
  %v2856 = vunpack.c.h.b16 %v2443
  %v2857 = vunpack.c.l.b16 %v2444
  %v2858 = vunpack.c.h.b16 %v2444
  %v2859 = vunpack.c.l.b16 %v2445
  %v2860 = vunpack.c.h.b16 %v2445
  %v2861 = vunpack.c.l.b16 %v2446
  %v2862 = vunpack.c.h.b16 %v2446
  %v2863 = vpack.c.b16 %v2615, %v2607
  %v2864 = vpack.c.b16 %v2616, %v2608
  %v2865 = vpack.c.b16 %v2617, %v2609
  %v2866 = vpack.c.b16 %v2618, %v2610
  %v2867 = vpack.c.b16 %v2619, %v2611
  %v2868 = vpack.c.b16 %v2620, %v2612
  %v2869 = vpack.c.b16 %v2621, %v2613
  %v2870 = vpack.c.b16 %v2622, %v2614
  %v2871 = vpack.c.b16 %v2631, %v2623
  %v2872 = vpack.c.b16 %v2632, %v2624
  %v2873 = vpack.c.b16 %v2633, %v2625
  %v2874 = vpack.c.b16 %v2634, %v2626
  %v2875 = vpack.c.b16 %v2635, %v2627
  %v2876 = vpack.c.b16 %v2636, %v2628
  %v2877 = vpack.c.b16 %v2637, %v2629
  %v2878 = vpack.c.b16 %v2638, %v2630
  %v2879 = vpack.c.b16 %v2647, %v2639
  %v2880 = vpack.c.b16 %v2648, %v2640
  %v2881 = vpack.c.b16 %v2649, %v2641
  %v2882 = vpack.c.b16 %v2650, %v2642
  %v2883 = vpack.c.b16 %v2651, %v2643
  %v2884 = vpack.c.b16 %v2652, %v2644
  %v2885 = vpack.c.b16 %v2653, %v2645
  %v2886 = vpack.c.b16 %v2654, %v2646
  %v2887 = vpack.c.b16 %v2663, %v2655
  %v2888 = vpack.c.b16 %v2664, %v2656
  %v2889 = vpack.c.b16 %v2665, %v2657
  %v2890 = vpack.c.b16 %v2666, %v2658
  %v2891 = vpack.c.b16 %v2667, %v2659
  %v2892 = vpack.c.b16 %v2668, %v2660
  %v2893 = vpack.c.b16 %v2669, %v2661
  %v2894 = vpack.c.b16 %v2670, %v2662
  %v2895 = vpack.c.b16 %v2679, %v2671
  %v2896 = vpack.c.b16 %v2680, %v2672
  %v2897 = vpack.c.b16 %v2681, %v2673
  %v2898 = vpack.c.b16 %v2682, %v2674
  %v2899 = vpack.c.b16 %v2683, %v2675
  %v2900 = vpack.c.b16 %v2684, %v2676
  %v2901 = vpack.c.b16 %v2685, %v2677
  %v2902 = vpack.c.b16 %v2686, %v2678
  %v2903 = vpack.c.b16 %v2695, %v2687
  %v2904 = vpack.c.b16 %v2696, %v2688
  %v2905 = vpack.c.b16 %v2697, %v2689
  %v2906 = vpack.c.b16 %v2698, %v2690
  %v2907 = vpack.c.b16 %v2699, %v2691
  %v2908 = vpack.c.b16 %v2700, %v2692
  %v2909 = vpack.c.b16 %v2701, %v2693
  %v2910 = vpack.c.b16 %v2702, %v2694
  %v2911 = vpack.c.b16 %v2711, %v2703
  %v2912 = vpack.c.b16 %v2712, %v2704
  %v2913 = vpack.c.b16 %v2713, %v2705
  %v2914 = vpack.c.b16 %v2714, %v2706
  %v2915 = vpack.c.b16 %v2715, %v2707
  %v2916 = vpack.c.b16 %v2716, %v2708
  %v2917 = vpack.c.b16 %v2717, %v2709
  %v2918 = vpack.c.b16 %v2718, %v2710
  %v2919 = vpack.c.b16 %v2727, %v2719
  %v2920 = vpack.c.b16 %v2728, %v2720
  %v2921 = vpack.c.b16 %v2729, %v2721
  %v2922 = vpack.c.b16 %v2730, %v2722
  %v2923 = vpack.c.b16 %v2731, %v2723
  %v2924 = vpack.c.b16 %v2732, %v2724
  %v2925 = vpack.c.b16 %v2733, %v2725
  %v2926 = vpack.c.b16 %v2734, %v2726
  %v2927 = vpack.c.b16 %v2743, %v2735
  %v2928 = vpack.c.b16 %v2744, %v2736
  %v2929 = vpack.c.b16 %v2745, %v2737
  %v2930 = vpack.c.b16 %v2746, %v2738
  %v2931 = vpack.c.b16 %v2747, %v2739
  %v2932 = vpack.c.b16 %v2748, %v2740
  %v2933 = vpack.c.b16 %v2749, %v2741
  %v2934 = vpack.c.b16 %v2750, %v2742
  %v2935 = vpack.c.b16 %v2759, %v2751
  %v2936 = vpack.c.b16 %v2760, %v2752
  %v2937 = vpack.c.b16 %v2761, %v2753
  %v2938 = vpack.c.b16 %v2762, %v2754
  %v2939 = vpack.c.b16 %v2763, %v2755
  %v2940 = vpack.c.b16 %v2764, %v2756
  %v2941 = vpack.c.b16 %v2765, %v2757
  %v2942 = vpack.c.b16 %v2766, %v2758
  %v2943 = vpack.c.b16 %v2775, %v2767
  %v2944 = vpack.c.b16 %v2776, %v2768
  %v2945 = vpack.c.b16 %v2777, %v2769
  %v2946 = vpack.c.b16 %v2778, %v2770
  %v2947 = vpack.c.b16 %v2779, %v2771
  %v2948 = vpack.c.b16 %v2780, %v2772
  %v2949 = vpack.c.b16 %v2781, %v2773
  %v2950 = vpack.c.b16 %v2782, %v2774
  %v2951 = vpack.c.b16 %v2791, %v2783
  %v2952 = vpack.c.b16 %v2792, %v2784
  %v2953 = vpack.c.b16 %v2793, %v2785
  %v2954 = vpack.c.b16 %v2794, %v2786
  %v2955 = vpack.c.b16 %v2795, %v2787
  %v2956 = vpack.c.b16 %v2796, %v2788
  %v2957 = vpack.c.b16 %v2797, %v2789
  %v2958 = vpack.c.b16 %v2798, %v2790
  %v2959 = vpack.c.b16 %v2807, %v2799
  %v2960 = vpack.c.b16 %v2808, %v2800
  %v2961 = vpack.c.b16 %v2809, %v2801
  %v2962 = vpack.c.b16 %v2810, %v2802
  %v2963 = vpack.c.b16 %v2811, %v2803
  %v2964 = vpack.c.b16 %v2812, %v2804
  %v2965 = vpack.c.b16 %v2813, %v2805
  %v2966 = vpack.c.b16 %v2814, %v2806
  %v2967 = vpack.c.b16 %v2823, %v2815
  %v2968 = vpack.c.b16 %v2824, %v2816
  %v2969 = vpack.c.b16 %v2825, %v2817
  %v2970 = vpack.c.b16 %v2826, %v2818
  %v2971 = vpack.c.b16 %v2827, %v2819
  %v2972 = vpack.c.b16 %v2828, %v2820
  %v2973 = vpack.c.b16 %v2829, %v2821
  %v2974 = vpack.c.b16 %v2830, %v2822
  %v2975 = vpack.c.b16 %v2839, %v2831
  %v2976 = vpack.c.b16 %v2840, %v2832
  %v2977 = vpack.c.b16 %v2841, %v2833
  %v2978 = vpack.c.b16 %v2842, %v2834
  %v2979 = vpack.c.b16 %v2843, %v2835
  %v2980 = vpack.c.b16 %v2844, %v2836
  %v2981 = vpack.c.b16 %v2845, %v2837
  %v2982 = vpack.c.b16 %v2846, %v2838
  %v2983 = vpack.c.b16 %v2855, %v2847
  %v2984 = vpack.c.b16 %v2856, %v2848
  %v2985 = vpack.c.b16 %v2857, %v2849
  %v2986 = vpack.c.b16 %v2858, %v2850
  %v2987 = vpack.c.b16 %v2859, %v2851
  %v2988 = vpack.c.b16 %v2860, %v2852
  %v2989 = vpack.c.b16 %v2861, %v2853
  %v2990 = vpack.c.b16 %v2862, %v2854
  %3119 = vmatprep.subr.bf16.mxu0 %v2864
  %3120 = vmatpush1.bf16.msra.mxu0 %v2863
  %3121 = vmatprep.subr.bf16.mxu0 %v2872
  %3122 = vmatpush1.bf16.msra.mxu0 %v2871
  %3123 = vmatprep.subr.bf16.mxu0 %v2880
  %3124 = vmatpush1.bf16.msra.mxu0 %v2879
  %3125 = vmatprep.subr.bf16.mxu0 %v2888
  %3126 = vmatpush1.bf16.msra.mxu0 %v2887
  %3127 = vmatprep.subr.bf16.mxu0 %v2896
  %3128 = vmatpush1.bf16.msra.mxu0 %v2895
  %3129 = vmatprep.subr.bf16.mxu0 %v2904
  %3130 = vmatpush1.bf16.msra.mxu0 %v2903
  %3131 = vmatprep.subr.bf16.mxu0 %v2912
  %3132 = vmatpush1.bf16.msra.mxu0 %v2911
  %3133 = vmatprep.subr.bf16.mxu0 %v2920
  %3134 = vmatpush1.bf16.msra.mxu0 %v2919
  %3135 = vmatprep.subr.bf16.mxu0 %v2928
  %3136 = vmatpush1.bf16.msra.mxu0 %v2927
  %3137 = vmatprep.subr.bf16.mxu0 %v2936
  %3138 = vmatpush1.bf16.msra.mxu0 %v2935
  %3139 = vmatprep.subr.bf16.mxu0 %v2944
  %3140 = vmatpush1.bf16.msra.mxu0 %v2943
  %3141 = vmatprep.subr.bf16.mxu0 %v2952
  %3142 = vmatpush1.bf16.msra.mxu0 %v2951
  %3143 = vmatprep.subr.bf16.mxu0 %v2960
  %3144 = vmatpush1.bf16.msra.mxu0 %v2959
  %3145 = vmatprep.subr.bf16.mxu0 %v2968
  %3146 = vmatpush1.bf16.msra.mxu0 %v2967
  %3147 = vmatprep.subr.bf16.mxu0 %v2976
  %3148 = vmatpush1.bf16.msra.mxu0 %v2975
  %3149 = vmatprep.subr.bf16.mxu0 %v2984
  %3150 = vmatpush1.bf16.msra.mxu0 %v2983
  %3151 = vmatprep.mubr.bf16.mxu0 %v2471
  %3152 = vmatmul.mubr.bf16.gmra.mrb[0].mxu0 %v2455
  %v3153 = vpop.f32.mrb[0].mxu0
  %v3154 = vadd.f32 0.0, %v3153
  %v3155 = vpop.f32.mrb[0].mxu0
  %v3156 = vadd.f32 0.0, %v3155
  %v3157 = vpop.f32.mrb[0].mxu0
  %v3158 = vpop.f32.mrb[0].mxu0
  %3159 = vdwg.mxu0
  %3160 = vmatprep.subr.bf16.mxu0 %v2866
  %3161 = vmatpush1.bf16.msra.mxu0 %v2865
  %3162 = vmatprep.subr.bf16.mxu0 %v2874
  %3163 = vmatpush1.bf16.msra.mxu0 %v2873
  %3164 = vmatprep.subr.bf16.mxu0 %v2882
  %3165 = vmatpush1.bf16.msra.mxu0 %v2881
  %3166 = vmatprep.subr.bf16.mxu0 %v2890
  %3167 = vmatpush1.bf16.msra.mxu0 %v2889
  %3168 = vmatprep.subr.bf16.mxu0 %v2898
  %3169 = vmatpush1.bf16.msra.mxu0 %v2897
  %3170 = vmatprep.subr.bf16.mxu0 %v2906
  %3171 = vmatpush1.bf16.msra.mxu0 %v2905
  %3172 = vmatprep.subr.bf16.mxu0 %v2914
  %3173 = vmatpush1.bf16.msra.mxu0 %v2913
  %3174 = vmatprep.subr.bf16.mxu0 %v2922
  %3175 = vmatpush1.bf16.msra.mxu0 %v2921
  %3176 = vmatprep.subr.bf16.mxu0 %v2930
  %3177 = vmatpush1.bf16.msra.mxu0 %v2929
  %3178 = vmatprep.subr.bf16.mxu0 %v2938
  %3179 = vmatpush1.bf16.msra.mxu0 %v2937
  %3180 = vmatprep.subr.bf16.mxu0 %v2946
  %3181 = vmatpush1.bf16.msra.mxu0 %v2945
  %3182 = vmatprep.subr.bf16.mxu0 %v2954
  %3183 = vmatpush1.bf16.msra.mxu0 %v2953
  %3184 = vmatprep.subr.bf16.mxu0 %v2962
  %3185 = vmatpush1.bf16.msra.mxu0 %v2961
  %3186 = vmatprep.subr.bf16.mxu0 %v2970
  %3187 = vmatpush1.bf16.msra.mxu0 %v2969
  %3188 = vmatprep.subr.bf16.mxu0 %v2978
  %3189 = vmatpush1.bf16.msra.mxu0 %v2977
  %3190 = vmatprep.subr.bf16.mxu0 %v2986
  %3191 = vmatpush1.bf16.msra.mxu0 %v2985
  %3192 = vmatprep.mubr.bf16.mxu0 %v2471
  %3193 = vmatmul.mubr.bf16.gmra.mrb[0].mxu0 %v2455
  %v3194 = vpop.f32.mrb[0].mxu0
  %v3195 = vadd.f32 0.0, %v3194
  %v3196 = vpop.f32.mrb[0].mxu0
  %v3197 = vadd.f32 0.0, %v3196
  %v3198 = vpop.f32.mrb[0].mxu0
  %v3199 = vpop.f32.mrb[0].mxu0
  %3200 = vdwg.mxu0
  %3201 = vmatprep.subr.bf16.mxu0 %v2868
  %3202 = vmatpush1.bf16.msra.mxu0 %v2867
  %3203 = vmatprep.subr.bf16.mxu0 %v2876
  %3204 = vmatpush1.bf16.msra.mxu0 %v2875
  %3205 = vmatprep.subr.bf16.mxu0 %v2884
  %3206 = vmatpush1.bf16.msra.mxu0 %v2883
  %3207 = vmatprep.subr.bf16.mxu0 %v2892
  %3208 = vmatpush1.bf16.msra.mxu0 %v2891
  %3209 = vmatprep.subr.bf16.mxu0 %v2900
  %3210 = vmatpush1.bf16.msra.mxu0 %v2899
  %3211 = vmatprep.subr.bf16.mxu0 %v2908
  %3212 = vmatpush1.bf16.msra.mxu0 %v2907
  %3213 = vmatprep.subr.bf16.mxu0 %v2916
  %3214 = vmatpush1.bf16.msra.mxu0 %v2915
  %3215 = vmatprep.subr.bf16.mxu0 %v2924
  %3216 = vmatpush1.bf16.msra.mxu0 %v2923
  %3217 = vmatprep.subr.bf16.mxu0 %v2932
  %3218 = vmatpush1.bf16.msra.mxu0 %v2931
  %3219 = vmatprep.subr.bf16.mxu0 %v2940
  %3220 = vmatpush1.bf16.msra.mxu0 %v2939
  %3221 = vmatprep.subr.bf16.mxu0 %v2948
  %3222 = vmatpush1.bf16.msra.mxu0 %v2947
  %3223 = vmatprep.subr.bf16.mxu0 %v2956
  %3224 = vmatpush1.bf16.msra.mxu0 %v2955
  %3225 = vmatprep.subr.bf16.mxu0 %v2964
  %3226 = vmatpush1.bf16.msra.mxu0 %v2963
  %3227 = vmatprep.subr.bf16.mxu0 %v2972
  %3228 = vmatpush1.bf16.msra.mxu0 %v2971
  %3229 = vmatprep.subr.bf16.mxu0 %v2980
  %3230 = vmatpush1.bf16.msra.mxu0 %v2979
  %3231 = vmatprep.subr.bf16.mxu0 %v2988
  %3232 = vmatpush1.bf16.msra.mxu0 %v2987
  %3233 = vmatprep.mubr.bf16.mxu0 %v2471
  %3234 = vmatmul.mubr.bf16.gmra.mrb[0].mxu0 %v2455
  %v3235 = vpop.f32.mrb[0].mxu0
  %v3236 = vadd.f32 0.0, %v3235
  %v3237 = vpop.f32.mrb[0].mxu0
  %v3238 = vadd.f32 0.0, %v3237
  %v3239 = vpop.f32.mrb[0].mxu0
  %v3240 = vpop.f32.mrb[0].mxu0
  %3241 = vdwg.mxu0
  %3242 = vmatprep.subr.bf16.mxu0 %v2870
  %3243 = vmatpush1.bf16.msra.mxu0 %v2869
  %3244 = vmatprep.subr.bf16.mxu0 %v2878
  %3245 = vmatpush1.bf16.msra.mxu0 %v2877
  %3246 = vmatprep.subr.bf16.mxu0 %v2886
  %3247 = vmatpush1.bf16.msra.mxu0 %v2885
  %3248 = vmatprep.subr.bf16.mxu0 %v2894
  %3249 = vmatpush1.bf16.msra.mxu0 %v2893
  %3250 = vmatprep.subr.bf16.mxu0 %v2902
  %3251 = vmatpush1.bf16.msra.mxu0 %v2901
  %3252 = vmatprep.subr.bf16.mxu0 %v2910
  %3253 = vmatpush1.bf16.msra.mxu0 %v2909
  %3254 = vmatprep.subr.bf16.mxu0 %v2918
  %3255 = vmatpush1.bf16.msra.mxu0 %v2917
  %3256 = vmatprep.subr.bf16.mxu0 %v2926
  %3257 = vmatpush1.bf16.msra.mxu0 %v2925
  %3258 = vmatprep.subr.bf16.mxu0 %v2934
  %3259 = vmatpush1.bf16.msra.mxu0 %v2933
  %3260 = vmatprep.subr.bf16.mxu0 %v2942
  %3261 = vmatpush1.bf16.msra.mxu0 %v2941
  %3262 = vmatprep.subr.bf16.mxu0 %v2950
  %3263 = vmatpush1.bf16.msra.mxu0 %v2949
  %3264 = vmatprep.subr.bf16.mxu0 %v2958
  %3265 = vmatpush1.bf16.msra.mxu0 %v2957
  %3266 = vmatprep.subr.bf16.mxu0 %v2966
  %3267 = vmatpush1.bf16.msra.mxu0 %v2965
  %3268 = vmatprep.subr.bf16.mxu0 %v2974
  %3269 = vmatpush1.bf16.msra.mxu0 %v2973
  %3270 = vmatprep.subr.bf16.mxu0 %v2982
  %3271 = vmatpush1.bf16.msra.mxu0 %v2981
  %3272 = vmatprep.subr.bf16.mxu0 %v2990
  %3273 = vmatpush1.bf16.msra.mxu0 %v2989
  %3274 = vmatprep.mubr.bf16.mxu0 %v2471
  %3275 = vmatmul.mubr.bf16.gmra.mrb[0].mxu0 %v2455
  %v3276 = vpop.f32.mrb[0].mxu0
  %v3277 = vadd.f32 0.0, %v3276
  %v3278 = vpop.f32.mrb[0].mxu0
  %v3279 = vadd.f32 0.0, %v3278
  %v3280 = vpop.f32.mrb[0].mxu0
  %v3281 = vpop.f32.mrb[0].mxu0
  %3282 = vdwg.mxu0
  %3283 = vst [vmem:[%s7] sm:$0x3f] %v3154
  %3284 = vst [vmem:[%s7 + $0x8] sm:$0x3f] %v3156
  %3285 = vst [vmem:[%s7 + $0x10] sm:$0x3f] %v3195
  %3286 = vst [vmem:[%s7 + $0x18] sm:$0x3f] %v3197
  %3287 = vst [vmem:[%s7 + $0x20] sm:$0x3f] %v3236
  %3288 = vst [vmem:[%s7 + $0x28] sm:$0x3f] %v3238
  %3289 = vst [vmem:[%s7 + $0x30] sm:$0x3f] %v3277
  %3290 = vst [vmem:[%s7 + $0x38] sm:$0x3f] %v3279
  %v3291 = vpack.c.bf16 %v2180, %v2177
  %v3292 = vpack.c.bf16 %v2188, %v2185
  %v3293 = vpack.c.bf16 %v2196, %v2193
  %v3294 = vpack.c.bf16 %v2204, %v2201
  %v3295 = vpack.c.bf16 %v2212, %v2209
  %v3296 = vpack.c.bf16 %v2220, %v2217
  %v3297 = vpack.c.bf16 %v2228, %v2225
  %v3298 = vpack.c.bf16 %v2236, %v2233
  %v3299 = vpack.c.bf16 %v2244, %v2241
  %v3300 = vpack.c.bf16 %v2252, %v2249
  %v3301 = vpack.c.bf16 %v2260, %v2257
  %v3302 = vpack.c.bf16 %v2268, %v2265
  %v3303 = vpack.c.bf16 %v2276, %v2273
  %v3304 = vpack.c.bf16 %v2284, %v2281
  %v3305 = vpack.c.bf16 %v2292, %v2289
  %v3306 = vpack.c.bf16 %v2300, %v2297
  %v3307 = vld [vmem:[%s6] sm:$0xff]
  %v3308 = vld [vmem:[%s6 + $0x8] sm:$0xff]
  %v3309 = vld [vmem:[%s6 + $0x10] sm:$0xff]
  %v3310 = vld [vmem:[%s6 + $0x18] sm:$0xff]
  %v3311 = vld [vmem:[%s6 + $0x20] sm:$0xff]
  %v3312 = vld [vmem:[%s6 + $0x28] sm:$0xff]
  %v3313 = vld [vmem:[%s6 + $0x30] sm:$0xff]
  %v3314 = vld [vmem:[%s6 + $0x38] sm:$0xff]
  %v3315 = vld [vmem:[%s6 + $0x40] sm:$0xff]
  %v3316 = vld [vmem:[%s6 + $0x48] sm:$0xff]
  %v3317 = vld [vmem:[%s6 + $0x50] sm:$0xff]
  %v3318 = vld [vmem:[%s6 + $0x58] sm:$0xff]
  %v3319 = vld [vmem:[%s6 + $0x60] sm:$0xff]
  %v3320 = vld [vmem:[%s6 + $0x68] sm:$0xff]
  %v3321 = vld [vmem:[%s6 + $0x70] sm:$0xff]
  %v3322 = vld [vmem:[%s6 + $0x78] sm:$0xff]
  %v3323 = vld [vmem:[%s6 + $0x80] sm:$0xff]
  %v3324 = vld [vmem:[%s6 + $0x88] sm:$0xff]
  %v3325 = vld [vmem:[%s6 + $0x90] sm:$0xff]
  %v3326 = vld [vmem:[%s6 + $0x98] sm:$0xff]
  %v3327 = vld [vmem:[%s6 + $0xa0] sm:$0xff]
  %v3328 = vld [vmem:[%s6 + $0xa8] sm:$0xff]
  %v3329 = vld [vmem:[%s6 + $0xb0] sm:$0xff]
  %v3330 = vld [vmem:[%s6 + $0xb8] sm:$0xff]
  %v3331 = vld [vmem:[%s6 + $0xc0] sm:$0xff]
  %v3332 = vld [vmem:[%s6 + $0xc8] sm:$0xff]
  %v3333 = vld [vmem:[%s6 + $0xd0] sm:$0xff]
  %v3334 = vld [vmem:[%s6 + $0xd8] sm:$0xff]
  %v3335 = vld [vmem:[%s6 + $0xe0] sm:$0xff]
  %v3336 = vld [vmem:[%s6 + $0xe8] sm:$0xff]
  %v3337 = vld [vmem:[%s6 + $0xf0] sm:$0xff]
  %v3338 = vld [vmem:[%s6 + $0xf8] sm:$0xff]
  %v3339 = vld [vmem:[%s6 + $0x100] sm:$0xff]
  %v3340 = vld [vmem:[%s6 + $0x108] sm:$0xff]
  %v3341 = vld [vmem:[%s6 + $0x110] sm:$0xff]
  %v3342 = vld [vmem:[%s6 + $0x118] sm:$0xff]
  %v3343 = vld [vmem:[%s6 + $0x120] sm:$0xff]
  %v3344 = vld [vmem:[%s6 + $0x128] sm:$0xff]
  %v3345 = vld [vmem:[%s6 + $0x130] sm:$0xff]
  %v3346 = vld [vmem:[%s6 + $0x138] sm:$0xff]
  %v3347 = vld [vmem:[%s6 + $0x140] sm:$0xff]
  %v3348 = vld [vmem:[%s6 + $0x148] sm:$0xff]
  %v3349 = vld [vmem:[%s6 + $0x150] sm:$0xff]
  %v3350 = vld [vmem:[%s6 + $0x158] sm:$0xff]
  %v3351 = vld [vmem:[%s6 + $0x160] sm:$0xff]
  %v3352 = vld [vmem:[%s6 + $0x168] sm:$0xff]
  %v3353 = vld [vmem:[%s6 + $0x170] sm:$0xff]
  %v3354 = vld [vmem:[%s6 + $0x178] sm:$0xff]
  %v3355 = vld [vmem:[%s6 + $0x180] sm:$0xff]
  %v3356 = vld [vmem:[%s6 + $0x188] sm:$0xff]
  %v3357 = vld [vmem:[%s6 + $0x190] sm:$0xff]
  %v3358 = vld [vmem:[%s6 + $0x198] sm:$0xff]
  %v3359 = vld [vmem:[%s6 + $0x1a0] sm:$0xff]
  %v3360 = vld [vmem:[%s6 + $0x1a8] sm:$0xff]
  %v3361 = vld [vmem:[%s6 + $0x1b0] sm:$0xff]
  %v3362 = vld [vmem:[%s6 + $0x1b8] sm:$0xff]
  %v3363 = vld [vmem:[%s6 + $0x1c0] sm:$0xff]
  %v3364 = vld [vmem:[%s6 + $0x1c8] sm:$0xff]
  %v3365 = vld [vmem:[%s6 + $0x1d0] sm:$0xff]
  %v3366 = vld [vmem:[%s6 + $0x1d8] sm:$0xff]
  %v3367 = vld [vmem:[%s6 + $0x1e0] sm:$0xff]
  %v3368 = vld [vmem:[%s6 + $0x1e8] sm:$0xff]
  %v3369 = vld [vmem:[%s6 + $0x1f0] sm:$0xff]
  %v3370 = vld [vmem:[%s6 + $0x1f8] sm:$0xff]
  %v3371 = vld [vmem:[%s6 + $0x200] sm:$0xff]
  %v3372 = vld [vmem:[%s6 + $0x208] sm:$0xff]
  %v3373 = vld [vmem:[%s6 + $0x210] sm:$0xff]
  %v3374 = vld [vmem:[%s6 + $0x218] sm:$0xff]
  %v3375 = vld [vmem:[%s6 + $0x220] sm:$0xff]
  %v3376 = vld [vmem:[%s6 + $0x228] sm:$0xff]
  %v3377 = vld [vmem:[%s6 + $0x230] sm:$0xff]
  %v3378 = vld [vmem:[%s6 + $0x238] sm:$0xff]
  %v3379 = vld [vmem:[%s6 + $0x240] sm:$0xff]
  %v3380 = vld [vmem:[%s6 + $0x248] sm:$0xff]
  %v3381 = vld [vmem:[%s6 + $0x250] sm:$0xff]
  %v3382 = vld [vmem:[%s6 + $0x258] sm:$0xff]
  %v3383 = vld [vmem:[%s6 + $0x260] sm:$0xff]
  %v3384 = vld [vmem:[%s6 + $0x268] sm:$0xff]
  %v3385 = vld [vmem:[%s6 + $0x270] sm:$0xff]
  %v3386 = vld [vmem:[%s6 + $0x278] sm:$0xff]
  %v3387 = vld [vmem:[%s6 + $0x280] sm:$0xff]
  %v3388 = vld [vmem:[%s6 + $0x288] sm:$0xff]
  %v3389 = vld [vmem:[%s6 + $0x290] sm:$0xff]
  %v3390 = vld [vmem:[%s6 + $0x298] sm:$0xff]
  %v3391 = vld [vmem:[%s6 + $0x2a0] sm:$0xff]
  %v3392 = vld [vmem:[%s6 + $0x2a8] sm:$0xff]
  %v3393 = vld [vmem:[%s6 + $0x2b0] sm:$0xff]
  %v3394 = vld [vmem:[%s6 + $0x2b8] sm:$0xff]
  %v3395 = vld [vmem:[%s6 + $0x2c0] sm:$0xff]
  %v3396 = vld [vmem:[%s6 + $0x2c8] sm:$0xff]
  %v3397 = vld [vmem:[%s6 + $0x2d0] sm:$0xff]
  %v3398 = vld [vmem:[%s6 + $0x2d8] sm:$0xff]
  %v3399 = vld [vmem:[%s6 + $0x2e0] sm:$0xff]
  %v3400 = vld [vmem:[%s6 + $0x2e8] sm:$0xff]
  %v3401 = vld [vmem:[%s6 + $0x2f0] sm:$0xff]
  %v3402 = vld [vmem:[%s6 + $0x2f8] sm:$0xff]
  %v3403 = vld [vmem:[%s6 + $0x300] sm:$0xff]
  %v3404 = vld [vmem:[%s6 + $0x308] sm:$0xff]
  %v3405 = vld [vmem:[%s6 + $0x310] sm:$0xff]
  %v3406 = vld [vmem:[%s6 + $0x318] sm:$0xff]
  %v3407 = vld [vmem:[%s6 + $0x320] sm:$0xff]
  %v3408 = vld [vmem:[%s6 + $0x328] sm:$0xff]
  %v3409 = vld [vmem:[%s6 + $0x330] sm:$0xff]
  %v3410 = vld [vmem:[%s6 + $0x338] sm:$0xff]
  %v3411 = vld [vmem:[%s6 + $0x340] sm:$0xff]
  %v3412 = vld [vmem:[%s6 + $0x348] sm:$0xff]
  %v3413 = vld [vmem:[%s6 + $0x350] sm:$0xff]
  %v3414 = vld [vmem:[%s6 + $0x358] sm:$0xff]
  %v3415 = vld [vmem:[%s6 + $0x360] sm:$0xff]
  %v3416 = vld [vmem:[%s6 + $0x368] sm:$0xff]
  %v3417 = vld [vmem:[%s6 + $0x370] sm:$0xff]
  %v3418 = vld [vmem:[%s6 + $0x378] sm:$0xff]
  %v3419 = vld [vmem:[%s6 + $0x380] sm:$0xff]
  %v3420 = vld [vmem:[%s6 + $0x388] sm:$0xff]
  %v3421 = vld [vmem:[%s6 + $0x390] sm:$0xff]
  %v3422 = vld [vmem:[%s6 + $0x398] sm:$0xff]
  %v3423 = vld [vmem:[%s6 + $0x3a0] sm:$0xff]
  %v3424 = vld [vmem:[%s6 + $0x3a8] sm:$0xff]
  %v3425 = vld [vmem:[%s6 + $0x3b0] sm:$0xff]
  %v3426 = vld [vmem:[%s6 + $0x3b8] sm:$0xff]
  %v3427 = vld [vmem:[%s6 + $0x3c0] sm:$0xff]
  %v3428 = vld [vmem:[%s6 + $0x3c8] sm:$0xff]
  %v3429 = vld [vmem:[%s6 + $0x3d0] sm:$0xff]
  %v3430 = vld [vmem:[%s6 + $0x3d8] sm:$0xff]
  %v3431 = vld [vmem:[%s6 + $0x3e0] sm:$0xff]
  %v3432 = vld [vmem:[%s6 + $0x3e8] sm:$0xff]
  %v3433 = vld [vmem:[%s6 + $0x3f0] sm:$0xff]
  %v3434 = vld [vmem:[%s6 + $0x3f8] sm:$0xff]
  %3435 = vxpose.xlu0.c.b16.start [1/8] %v3291, 128
  %3436 = vxpose.xlu0.c.b16.cont [2/8] %v3292, 128
  %3437 = vxpose.xlu0.c.b16.cont [3/8] %v3293, 128
  %3438 = vxpose.xlu0.c.b16.cont [4/8] %v3294, 128
  %3439 = vxpose.xlu0.c.b16.cont [5/8] %v3295, 128
  %3440 = vxpose.xlu0.c.b16.cont [6/8] %v3296, 128
  %3441 = vxpose.xlu0.c.b16.cont [7/8] %v3297, 128
  %3442 = vxpose.xlu0.c.b16.end [8/8] %v3298, 128
  %v3443 = vpop.trf.xlu0
  %v3444 = vpop.trf.xlu0
  %v3445 = vpop.trf.xlu0
  %v3446 = vpop.trf.xlu0
  %v3447 = vpop.trf.xlu0
  %v3448 = vpop.trf.xlu0
  %v3449 = vpop.trf.xlu0
  %v3450 = vpop.trf.xlu0
  %3451 = vxpose.xlu0.c.b16.start [1/8] %v3299, 128
  %3452 = vxpose.xlu0.c.b16.cont [2/8] %v3300, 128
  %3453 = vxpose.xlu0.c.b16.cont [3/8] %v3301, 128
  %3454 = vxpose.xlu0.c.b16.cont [4/8] %v3302, 128
  %3455 = vxpose.xlu0.c.b16.cont [5/8] %v3303, 128
  %3456 = vxpose.xlu0.c.b16.cont [6/8] %v3304, 128
  %3457 = vxpose.xlu0.c.b16.cont [7/8] %v3305, 128
  %3458 = vxpose.xlu0.c.b16.end [8/8] %v3306, 128
  %v3459 = vpop.trf.xlu0
  %v3460 = vpop.trf.xlu0
  %v3461 = vpop.trf.xlu0
  %v3462 = vpop.trf.xlu0
  %v3463 = vpop.trf.xlu0
  %v3464 = vpop.trf.xlu0
  %v3465 = vpop.trf.xlu0
  %v3466 = vpop.trf.xlu0
  %v3595 = vunpack.c.l.b16 %v3307
  %v3596 = vunpack.c.h.b16 %v3307
  %v3597 = vunpack.c.l.b16 %v3308
  %v3598 = vunpack.c.h.b16 %v3308
  %v3599 = vunpack.c.l.b16 %v3309
  %v3600 = vunpack.c.h.b16 %v3309
  %v3601 = vunpack.c.l.b16 %v3310
  %v3602 = vunpack.c.h.b16 %v3310
  %v3603 = vunpack.c.l.b16 %v3311
  %v3604 = vunpack.c.h.b16 %v3311
  %v3605 = vunpack.c.l.b16 %v3312
  %v3606 = vunpack.c.h.b16 %v3312
  %v3607 = vunpack.c.l.b16 %v3313
  %v3608 = vunpack.c.h.b16 %v3313
  %v3609 = vunpack.c.l.b16 %v3314
  %v3610 = vunpack.c.h.b16 %v3314
  %v3611 = vunpack.c.l.b16 %v3315
  %v3612 = vunpack.c.h.b16 %v3315
  %v3613 = vunpack.c.l.b16 %v3316
  %v3614 = vunpack.c.h.b16 %v3316
  %v3615 = vunpack.c.l.b16 %v3317
  %v3616 = vunpack.c.h.b16 %v3317
  %v3617 = vunpack.c.l.b16 %v3318
  %v3618 = vunpack.c.h.b16 %v3318
  %v3619 = vunpack.c.l.b16 %v3319
  %v3620 = vunpack.c.h.b16 %v3319
  %v3621 = vunpack.c.l.b16 %v3320
  %v3622 = vunpack.c.h.b16 %v3320
  %v3623 = vunpack.c.l.b16 %v3321
  %v3624 = vunpack.c.h.b16 %v3321
  %v3625 = vunpack.c.l.b16 %v3322
  %v3626 = vunpack.c.h.b16 %v3322
  %v3627 = vunpack.c.l.b16 %v3323
  %v3628 = vunpack.c.h.b16 %v3323
  %v3629 = vunpack.c.l.b16 %v3324
  %v3630 = vunpack.c.h.b16 %v3324
  %v3631 = vunpack.c.l.b16 %v3325
  %v3632 = vunpack.c.h.b16 %v3325
  %v3633 = vunpack.c.l.b16 %v3326
  %v3634 = vunpack.c.h.b16 %v3326
  %v3635 = vunpack.c.l.b16 %v3327
  %v3636 = vunpack.c.h.b16 %v3327
  %v3637 = vunpack.c.l.b16 %v3328
  %v3638 = vunpack.c.h.b16 %v3328
  %v3639 = vunpack.c.l.b16 %v3329
  %v3640 = vunpack.c.h.b16 %v3329
  %v3641 = vunpack.c.l.b16 %v3330
  %v3642 = vunpack.c.h.b16 %v3330
  %v3643 = vunpack.c.l.b16 %v3331
  %v3644 = vunpack.c.h.b16 %v3331
  %v3645 = vunpack.c.l.b16 %v3332
  %v3646 = vunpack.c.h.b16 %v3332
  %v3647 = vunpack.c.l.b16 %v3333
  %v3648 = vunpack.c.h.b16 %v3333
  %v3649 = vunpack.c.l.b16 %v3334
  %v3650 = vunpack.c.h.b16 %v3334
  %v3651 = vunpack.c.l.b16 %v3335
  %v3652 = vunpack.c.h.b16 %v3335
  %v3653 = vunpack.c.l.b16 %v3336
  %v3654 = vunpack.c.h.b16 %v3336
  %v3655 = vunpack.c.l.b16 %v3337
  %v3656 = vunpack.c.h.b16 %v3337
  %v3657 = vunpack.c.l.b16 %v3338
  %v3658 = vunpack.c.h.b16 %v3338
  %v3659 = vunpack.c.l.b16 %v3339
  %v3660 = vunpack.c.h.b16 %v3339
  %v3661 = vunpack.c.l.b16 %v3340
  %v3662 = vunpack.c.h.b16 %v3340
  %v3663 = vunpack.c.l.b16 %v3341
  %v3664 = vunpack.c.h.b16 %v3341
  %v3665 = vunpack.c.l.b16 %v3342
  %v3666 = vunpack.c.h.b16 %v3342
  %v3667 = vunpack.c.l.b16 %v3343
  %v3668 = vunpack.c.h.b16 %v3343
  %v3669 = vunpack.c.l.b16 %v3344
  %v3670 = vunpack.c.h.b16 %v3344
  %v3671 = vunpack.c.l.b16 %v3345
  %v3672 = vunpack.c.h.b16 %v3345
  %v3673 = vunpack.c.l.b16 %v3346
  %v3674 = vunpack.c.h.b16 %v3346
  %v3675 = vunpack.c.l.b16 %v3347
  %v3676 = vunpack.c.h.b16 %v3347
  %v3677 = vunpack.c.l.b16 %v3348
  %v3678 = vunpack.c.h.b16 %v3348
  %v3679 = vunpack.c.l.b16 %v3349
  %v3680 = vunpack.c.h.b16 %v3349
  %v3681 = vunpack.c.l.b16 %v3350
  %v3682 = vunpack.c.h.b16 %v3350
  %v3683 = vunpack.c.l.b16 %v3351
  %v3684 = vunpack.c.h.b16 %v3351
  %v3685 = vunpack.c.l.b16 %v3352
  %v3686 = vunpack.c.h.b16 %v3352
  %v3687 = vunpack.c.l.b16 %v3353
  %v3688 = vunpack.c.h.b16 %v3353
  %v3689 = vunpack.c.l.b16 %v3354
  %v3690 = vunpack.c.h.b16 %v3354
  %v3691 = vunpack.c.l.b16 %v3355
  %v3692 = vunpack.c.h.b16 %v3355
  %v3693 = vunpack.c.l.b16 %v3356
  %v3694 = vunpack.c.h.b16 %v3356
  %v3695 = vunpack.c.l.b16 %v3357
  %v3696 = vunpack.c.h.b16 %v3357
  %v3697 = vunpack.c.l.b16 %v3358
  %v3698 = vunpack.c.h.b16 %v3358
  %v3699 = vunpack.c.l.b16 %v3359
  %v3700 = vunpack.c.h.b16 %v3359
  %v3701 = vunpack.c.l.b16 %v3360
  %v3702 = vunpack.c.h.b16 %v3360
  %v3703 = vunpack.c.l.b16 %v3361
  %v3704 = vunpack.c.h.b16 %v3361
  %v3705 = vunpack.c.l.b16 %v3362
  %v3706 = vunpack.c.h.b16 %v3362
  %v3707 = vunpack.c.l.b16 %v3363
  %v3708 = vunpack.c.h.b16 %v3363
  %v3709 = vunpack.c.l.b16 %v3364
  %v3710 = vunpack.c.h.b16 %v3364
  %v3711 = vunpack.c.l.b16 %v3365
  %v3712 = vunpack.c.h.b16 %v3365
  %v3713 = vunpack.c.l.b16 %v3366
  %v3714 = vunpack.c.h.b16 %v3366
  %v3715 = vunpack.c.l.b16 %v3367
  %v3716 = vunpack.c.h.b16 %v3367
  %v3717 = vunpack.c.l.b16 %v3368
  %v3718 = vunpack.c.h.b16 %v3368
  %v3719 = vunpack.c.l.b16 %v3369
  %v3720 = vunpack.c.h.b16 %v3369
  %v3721 = vunpack.c.l.b16 %v3370
  %v3722 = vunpack.c.h.b16 %v3370
  %v3723 = vunpack.c.l.b16 %v3371
  %v3724 = vunpack.c.h.b16 %v3371
  %v3725 = vunpack.c.l.b16 %v3372
  %v3726 = vunpack.c.h.b16 %v3372
  %v3727 = vunpack.c.l.b16 %v3373
  %v3728 = vunpack.c.h.b16 %v3373
  %v3729 = vunpack.c.l.b16 %v3374
  %v3730 = vunpack.c.h.b16 %v3374
  %v3731 = vunpack.c.l.b16 %v3375
  %v3732 = vunpack.c.h.b16 %v3375
  %v3733 = vunpack.c.l.b16 %v3376
  %v3734 = vunpack.c.h.b16 %v3376
  %v3735 = vunpack.c.l.b16 %v3377
  %v3736 = vunpack.c.h.b16 %v3377
  %v3737 = vunpack.c.l.b16 %v3378
  %v3738 = vunpack.c.h.b16 %v3378
  %v3739 = vunpack.c.l.b16 %v3379
  %v3740 = vunpack.c.h.b16 %v3379
  %v3741 = vunpack.c.l.b16 %v3380
  %v3742 = vunpack.c.h.b16 %v3380
  %v3743 = vunpack.c.l.b16 %v3381
  %v3744 = vunpack.c.h.b16 %v3381
  %v3745 = vunpack.c.l.b16 %v3382
  %v3746 = vunpack.c.h.b16 %v3382
  %v3747 = vunpack.c.l.b16 %v3383
  %v3748 = vunpack.c.h.b16 %v3383
  %v3749 = vunpack.c.l.b16 %v3384
  %v3750 = vunpack.c.h.b16 %v3384
  %v3751 = vunpack.c.l.b16 %v3385
  %v3752 = vunpack.c.h.b16 %v3385
  %v3753 = vunpack.c.l.b16 %v3386
  %v3754 = vunpack.c.h.b16 %v3386
  %v3755 = vunpack.c.l.b16 %v3387
  %v3756 = vunpack.c.h.b16 %v3387
  %v3757 = vunpack.c.l.b16 %v3388
  %v3758 = vunpack.c.h.b16 %v3388
  %v3759 = vunpack.c.l.b16 %v3389
  %v3760 = vunpack.c.h.b16 %v3389
  %v3761 = vunpack.c.l.b16 %v3390
  %v3762 = vunpack.c.h.b16 %v3390
  %v3763 = vunpack.c.l.b16 %v3391
  %v3764 = vunpack.c.h.b16 %v3391
  %v3765 = vunpack.c.l.b16 %v3392
  %v3766 = vunpack.c.h.b16 %v3392
  %v3767 = vunpack.c.l.b16 %v3393
  %v3768 = vunpack.c.h.b16 %v3393
  %v3769 = vunpack.c.l.b16 %v3394
  %v3770 = vunpack.c.h.b16 %v3394
  %v3771 = vunpack.c.l.b16 %v3395
  %v3772 = vunpack.c.h.b16 %v3395
  %v3773 = vunpack.c.l.b16 %v3396
  %v3774 = vunpack.c.h.b16 %v3396
  %v3775 = vunpack.c.l.b16 %v3397
  %v3776 = vunpack.c.h.b16 %v3397
  %v3777 = vunpack.c.l.b16 %v3398
  %v3778 = vunpack.c.h.b16 %v3398
  %v3779 = vunpack.c.l.b16 %v3399
  %v3780 = vunpack.c.h.b16 %v3399
  %v3781 = vunpack.c.l.b16 %v3400
  %v3782 = vunpack.c.h.b16 %v3400
  %v3783 = vunpack.c.l.b16 %v3401
  %v3784 = vunpack.c.h.b16 %v3401
  %v3785 = vunpack.c.l.b16 %v3402
  %v3786 = vunpack.c.h.b16 %v3402
  %v3787 = vunpack.c.l.b16 %v3403
  %v3788 = vunpack.c.h.b16 %v3403
  %v3789 = vunpack.c.l.b16 %v3404
  %v3790 = vunpack.c.h.b16 %v3404
  %v3791 = vunpack.c.l.b16 %v3405
  %v3792 = vunpack.c.h.b16 %v3405
  %v3793 = vunpack.c.l.b16 %v3406
  %v3794 = vunpack.c.h.b16 %v3406
  %v3795 = vunpack.c.l.b16 %v3407
  %v3796 = vunpack.c.h.b16 %v3407
  %v3797 = vunpack.c.l.b16 %v3408
  %v3798 = vunpack.c.h.b16 %v3408
  %v3799 = vunpack.c.l.b16 %v3409
  %v3800 = vunpack.c.h.b16 %v3409
  %v3801 = vunpack.c.l.b16 %v3410
  %v3802 = vunpack.c.h.b16 %v3410
  %v3803 = vunpack.c.l.b16 %v3411
  %v3804 = vunpack.c.h.b16 %v3411
  %v3805 = vunpack.c.l.b16 %v3412
  %v3806 = vunpack.c.h.b16 %v3412
  %v3807 = vunpack.c.l.b16 %v3413
  %v3808 = vunpack.c.h.b16 %v3413
  %v3809 = vunpack.c.l.b16 %v3414
  %v3810 = vunpack.c.h.b16 %v3414
  %v3811 = vunpack.c.l.b16 %v3415
  %v3812 = vunpack.c.h.b16 %v3415
  %v3813 = vunpack.c.l.b16 %v3416
  %v3814 = vunpack.c.h.b16 %v3416
  %v3815 = vunpack.c.l.b16 %v3417
  %v3816 = vunpack.c.h.b16 %v3417
  %v3817 = vunpack.c.l.b16 %v3418
  %v3818 = vunpack.c.h.b16 %v3418
  %v3819 = vunpack.c.l.b16 %v3419
  %v3820 = vunpack.c.h.b16 %v3419
  %v3821 = vunpack.c.l.b16 %v3420
  %v3822 = vunpack.c.h.b16 %v3420
  %v3823 = vunpack.c.l.b16 %v3421
  %v3824 = vunpack.c.h.b16 %v3421
  %v3825 = vunpack.c.l.b16 %v3422
  %v3826 = vunpack.c.h.b16 %v3422
  %v3827 = vunpack.c.l.b16 %v3423
  %v3828 = vunpack.c.h.b16 %v3423
  %v3829 = vunpack.c.l.b16 %v3424
  %v3830 = vunpack.c.h.b16 %v3424
  %v3831 = vunpack.c.l.b16 %v3425
  %v3832 = vunpack.c.h.b16 %v3425
  %v3833 = vunpack.c.l.b16 %v3426
  %v3834 = vunpack.c.h.b16 %v3426
  %v3835 = vunpack.c.l.b16 %v3427
  %v3836 = vunpack.c.h.b16 %v3427
  %v3837 = vunpack.c.l.b16 %v3428
  %v3838 = vunpack.c.h.b16 %v3428
  %v3839 = vunpack.c.l.b16 %v3429
  %v3840 = vunpack.c.h.b16 %v3429
  %v3841 = vunpack.c.l.b16 %v3430
  %v3842 = vunpack.c.h.b16 %v3430
  %v3843 = vunpack.c.l.b16 %v3431
  %v3844 = vunpack.c.h.b16 %v3431
  %v3845 = vunpack.c.l.b16 %v3432
  %v3846 = vunpack.c.h.b16 %v3432
  %v3847 = vunpack.c.l.b16 %v3433
  %v3848 = vunpack.c.h.b16 %v3433
  %v3849 = vunpack.c.l.b16 %v3434
  %v3850 = vunpack.c.h.b16 %v3434
  %v3851 = vpack.c.b16 %v3603, %v3595
  %v3852 = vpack.c.b16 %v3604, %v3596
  %v3853 = vpack.c.b16 %v3605, %v3597
  %v3854 = vpack.c.b16 %v3606, %v3598
  %v3855 = vpack.c.b16 %v3607, %v3599
  %v3856 = vpack.c.b16 %v3608, %v3600
  %v3857 = vpack.c.b16 %v3609, %v3601
  %v3858 = vpack.c.b16 %v3610, %v3602
  %v3859 = vpack.c.b16 %v3619, %v3611
  %v3860 = vpack.c.b16 %v3620, %v3612
  %v3861 = vpack.c.b16 %v3621, %v3613
  %v3862 = vpack.c.b16 %v3622, %v3614
  %v3863 = vpack.c.b16 %v3623, %v3615
  %v3864 = vpack.c.b16 %v3624, %v3616
  %v3865 = vpack.c.b16 %v3625, %v3617
  %v3866 = vpack.c.b16 %v3626, %v3618
  %v3867 = vpack.c.b16 %v3635, %v3627
  %v3868 = vpack.c.b16 %v3636, %v3628
  %v3869 = vpack.c.b16 %v3637, %v3629
  %v3870 = vpack.c.b16 %v3638, %v3630
  %v3871 = vpack.c.b16 %v3639, %v3631
  %v3872 = vpack.c.b16 %v3640, %v3632
  %v3873 = vpack.c.b16 %v3641, %v3633
  %v3874 = vpack.c.b16 %v3642, %v3634
  %v3875 = vpack.c.b16 %v3651, %v3643
  %v3876 = vpack.c.b16 %v3652, %v3644
  %v3877 = vpack.c.b16 %v3653, %v3645
  %v3878 = vpack.c.b16 %v3654, %v3646
  %v3879 = vpack.c.b16 %v3655, %v3647
  %v3880 = vpack.c.b16 %v3656, %v3648
  %v3881 = vpack.c.b16 %v3657, %v3649
  %v3882 = vpack.c.b16 %v3658, %v3650
  %v3883 = vpack.c.b16 %v3667, %v3659
  %v3884 = vpack.c.b16 %v3668, %v3660
  %v3885 = vpack.c.b16 %v3669, %v3661
  %v3886 = vpack.c.b16 %v3670, %v3662
  %v3887 = vpack.c.b16 %v3671, %v3663
  %v3888 = vpack.c.b16 %v3672, %v3664
  %v3889 = vpack.c.b16 %v3673, %v3665
  %v3890 = vpack.c.b16 %v3674, %v3666
  %v3891 = vpack.c.b16 %v3683, %v3675
  %v3892 = vpack.c.b16 %v3684, %v3676
  %v3893 = vpack.c.b16 %v3685, %v3677
  %v3894 = vpack.c.b16 %v3686, %v3678
  %v3895 = vpack.c.b16 %v3687, %v3679
  %v3896 = vpack.c.b16 %v3688, %v3680
  %v3897 = vpack.c.b16 %v3689, %v3681
  %v3898 = vpack.c.b16 %v3690, %v3682
  %v3899 = vpack.c.b16 %v3699, %v3691
  %v3900 = vpack.c.b16 %v3700, %v3692
  %v3901 = vpack.c.b16 %v3701, %v3693
  %v3902 = vpack.c.b16 %v3702, %v3694
  %v3903 = vpack.c.b16 %v3703, %v3695
  %v3904 = vpack.c.b16 %v3704, %v3696
  %v3905 = vpack.c.b16 %v3705, %v3697
  %v3906 = vpack.c.b16 %v3706, %v3698
  %v3907 = vpack.c.b16 %v3715, %v3707
  %v3908 = vpack.c.b16 %v3716, %v3708
  %v3909 = vpack.c.b16 %v3717, %v3709
  %v3910 = vpack.c.b16 %v3718, %v3710
  %v3911 = vpack.c.b16 %v3719, %v3711
  %v3912 = vpack.c.b16 %v3720, %v3712
  %v3913 = vpack.c.b16 %v3721, %v3713
  %v3914 = vpack.c.b16 %v3722, %v3714
  %v3915 = vpack.c.b16 %v3731, %v3723
  %v3916 = vpack.c.b16 %v3732, %v3724
  %v3917 = vpack.c.b16 %v3733, %v3725
  %v3918 = vpack.c.b16 %v3734, %v3726
  %v3919 = vpack.c.b16 %v3735, %v3727
  %v3920 = vpack.c.b16 %v3736, %v3728
  %v3921 = vpack.c.b16 %v3737, %v3729
  %v3922 = vpack.c.b16 %v3738, %v3730
  %v3923 = vpack.c.b16 %v3747, %v3739
  %v3924 = vpack.c.b16 %v3748, %v3740
  %v3925 = vpack.c.b16 %v3749, %v3741
  %v3926 = vpack.c.b16 %v3750, %v3742
  %v3927 = vpack.c.b16 %v3751, %v3743
  %v3928 = vpack.c.b16 %v3752, %v3744
  %v3929 = vpack.c.b16 %v3753, %v3745
  %v3930 = vpack.c.b16 %v3754, %v3746
  %v3931 = vpack.c.b16 %v3763, %v3755
  %v3932 = vpack.c.b16 %v3764, %v3756
  %v3933 = vpack.c.b16 %v3765, %v3757
  %v3934 = vpack.c.b16 %v3766, %v3758
  %v3935 = vpack.c.b16 %v3767, %v3759
  %v3936 = vpack.c.b16 %v3768, %v3760
  %v3937 = vpack.c.b16 %v3769, %v3761
  %v3938 = vpack.c.b16 %v3770, %v3762
  %v3939 = vpack.c.b16 %v3779, %v3771
  %v3940 = vpack.c.b16 %v3780, %v3772
  %v3941 = vpack.c.b16 %v3781, %v3773
  %v3942 = vpack.c.b16 %v3782, %v3774
  %v3943 = vpack.c.b16 %v3783, %v3775
  %v3944 = vpack.c.b16 %v3784, %v3776
  %v3945 = vpack.c.b16 %v3785, %v3777
  %v3946 = vpack.c.b16 %v3786, %v3778
  %v3947 = vpack.c.b16 %v3795, %v3787
  %v3948 = vpack.c.b16 %v3796, %v3788
  %v3949 = vpack.c.b16 %v3797, %v3789
  %v3950 = vpack.c.b16 %v3798, %v3790
  %v3951 = vpack.c.b16 %v3799, %v3791
  %v3952 = vpack.c.b16 %v3800, %v3792
  %v3953 = vpack.c.b16 %v3801, %v3793
  %v3954 = vpack.c.b16 %v3802, %v3794
  %v3955 = vpack.c.b16 %v3811, %v3803
  %v3956 = vpack.c.b16 %v3812, %v3804
  %v3957 = vpack.c.b16 %v3813, %v3805
  %v3958 = vpack.c.b16 %v3814, %v3806
  %v3959 = vpack.c.b16 %v3815, %v3807
  %v3960 = vpack.c.b16 %v3816, %v3808
  %v3961 = vpack.c.b16 %v3817, %v3809
  %v3962 = vpack.c.b16 %v3818, %v3810
  %v3963 = vpack.c.b16 %v3827, %v3819
  %v3964 = vpack.c.b16 %v3828, %v3820
  %v3965 = vpack.c.b16 %v3829, %v3821
  %v3966 = vpack.c.b16 %v3830, %v3822
  %v3967 = vpack.c.b16 %v3831, %v3823
  %v3968 = vpack.c.b16 %v3832, %v3824
  %v3969 = vpack.c.b16 %v3833, %v3825
  %v3970 = vpack.c.b16 %v3834, %v3826
  %v3971 = vpack.c.b16 %v3843, %v3835
  %v3972 = vpack.c.b16 %v3844, %v3836
  %v3973 = vpack.c.b16 %v3845, %v3837
  %v3974 = vpack.c.b16 %v3846, %v3838
  %v3975 = vpack.c.b16 %v3847, %v3839
  %v3976 = vpack.c.b16 %v3848, %v3840
  %v3977 = vpack.c.b16 %v3849, %v3841
  %v3978 = vpack.c.b16 %v3850, %v3842
  %4107 = vmatprep.subr.bf16.mxu0 %v3852
  %4108 = vmatpush1.bf16.msra.mxu0 %v3851
  %4109 = vmatprep.subr.bf16.mxu0 %v3860
  %4110 = vmatpush1.bf16.msra.mxu0 %v3859
  %4111 = vmatprep.subr.bf16.mxu0 %v3868
  %4112 = vmatpush1.bf16.msra.mxu0 %v3867
  %4113 = vmatprep.subr.bf16.mxu0 %v3876
  %4114 = vmatpush1.bf16.msra.mxu0 %v3875
  %4115 = vmatprep.subr.bf16.mxu0 %v3884
  %4116 = vmatpush1.bf16.msra.mxu0 %v3883
  %4117 = vmatprep.subr.bf16.mxu0 %v3892
  %4118 = vmatpush1.bf16.msra.mxu0 %v3891
  %4119 = vmatprep.subr.bf16.mxu0 %v3900
  %4120 = vmatpush1.bf16.msra.mxu0 %v3899
  %4121 = vmatprep.subr.bf16.mxu0 %v3908
  %4122 = vmatpush1.bf16.msra.mxu0 %v3907
  %4123 = vmatprep.subr.bf16.mxu0 %v3916
  %4124 = vmatpush1.bf16.msra.mxu0 %v3915
  %4125 = vmatprep.subr.bf16.mxu0 %v3924
  %4126 = vmatpush1.bf16.msra.mxu0 %v3923
  %4127 = vmatprep.subr.bf16.mxu0 %v3932
  %4128 = vmatpush1.bf16.msra.mxu0 %v3931
  %4129 = vmatprep.subr.bf16.mxu0 %v3940
  %4130 = vmatpush1.bf16.msra.mxu0 %v3939
  %4131 = vmatprep.subr.bf16.mxu0 %v3948
  %4132 = vmatpush1.bf16.msra.mxu0 %v3947
  %4133 = vmatprep.subr.bf16.mxu0 %v3956
  %4134 = vmatpush1.bf16.msra.mxu0 %v3955
  %4135 = vmatprep.subr.bf16.mxu0 %v3964
  %4136 = vmatpush1.bf16.msra.mxu0 %v3963
  %4137 = vmatprep.subr.bf16.mxu0 %v3972
  %4138 = vmatpush1.bf16.msra.mxu0 %v3971
  %4139 = vmatprep.mubr.bf16.mxu0 %v3459
  %4140 = vmatmul.mubr.bf16.gmra.mrb[0].mxu0 %v3443
  %v4141 = vpop.f32.mrb[0].mxu0
  %v4142 = vadd.f32 0.0, %v4141
  %v4143 = vpop.f32.mrb[0].mxu0
  %v4144 = vadd.f32 0.0, %v4143
  %v4145 = vpop.f32.mrb[0].mxu0
  %v4146 = vpop.f32.mrb[0].mxu0
  %4147 = vdwg.mxu0
  %4148 = vmatprep.subr.bf16.mxu0 %v3854
  %4149 = vmatpush1.bf16.msra.mxu0 %v3853
  %4150 = vmatprep.subr.bf16.mxu0 %v3862
  %4151 = vmatpush1.bf16.msra.mxu0 %v3861
  %4152 = vmatprep.subr.bf16.mxu0 %v3870
  %4153 = vmatpush1.bf16.msra.mxu0 %v3869
  %4154 = vmatprep.subr.bf16.mxu0 %v3878
  %4155 = vmatpush1.bf16.msra.mxu0 %v3877
  %4156 = vmatprep.subr.bf16.mxu0 %v3886
  %4157 = vmatpush1.bf16.msra.mxu0 %v3885
  %4158 = vmatprep.subr.bf16.mxu0 %v3894
  %4159 = vmatpush1.bf16.msra.mxu0 %v3893
  %4160 = vmatprep.subr.bf16.mxu0 %v3902
  %4161 = vmatpush1.bf16.msra.mxu0 %v3901
  %4162 = vmatprep.subr.bf16.mxu0 %v3910
  %4163 = vmatpush1.bf16.msra.mxu0 %v3909
  %4164 = vmatprep.subr.bf16.mxu0 %v3918
  %4165 = vmatpush1.bf16.msra.mxu0 %v3917
  %4166 = vmatprep.subr.bf16.mxu0 %v3926
  %4167 = vmatpush1.bf16.msra.mxu0 %v3925
  %4168 = vmatprep.subr.bf16.mxu0 %v3934
  %4169 = vmatpush1.bf16.msra.mxu0 %v3933
  %4170 = vmatprep.subr.bf16.mxu0 %v3942
  %4171 = vmatpush1.bf16.msra.mxu0 %v3941
  %4172 = vmatprep.subr.bf16.mxu0 %v3950
  %4173 = vmatpush1.bf16.msra.mxu0 %v3949
  %4174 = vmatprep.subr.bf16.mxu0 %v3958
  %4175 = vmatpush1.bf16.msra.mxu0 %v3957
  %4176 = vmatprep.subr.bf16.mxu0 %v3966
  %4177 = vmatpush1.bf16.msra.mxu0 %v3965
  %4178 = vmatprep.subr.bf16.mxu0 %v3974
  %4179 = vmatpush1.bf16.msra.mxu0 %v3973
  %4180 = vmatprep.mubr.bf16.mxu0 %v3459
  %4181 = vmatmul.mubr.bf16.gmra.mrb[0].mxu0 %v3443
  %v4182 = vpop.f32.mrb[0].mxu0
  %v4183 = vadd.f32 0.0, %v4182
  %v4184 = vpop.f32.mrb[0].mxu0
  %v4185 = vadd.f32 0.0, %v4184
  %v4186 = vpop.f32.mrb[0].mxu0
  %v4187 = vpop.f32.mrb[0].mxu0
  %4188 = vdwg.mxu0
  %4189 = vmatprep.subr.bf16.mxu0 %v3856
  %4190 = vmatpush1.bf16.msra.mxu0 %v3855
  %4191 = vmatprep.subr.bf16.mxu0 %v3864
  %4192 = vmatpush1.bf16.msra.mxu0 %v3863
  %4193 = vmatprep.subr.bf16.mxu0 %v3872
  %4194 = vmatpush1.bf16.msra.mxu0 %v3871
  %4195 = vmatprep.subr.bf16.mxu0 %v3880
  %4196 = vmatpush1.bf16.msra.mxu0 %v3879
  %4197 = vmatprep.subr.bf16.mxu0 %v3888
  %4198 = vmatpush1.bf16.msra.mxu0 %v3887
  %4199 = vmatprep.subr.bf16.mxu0 %v3896
  %4200 = vmatpush1.bf16.msra.mxu0 %v3895
  %4201 = vmatprep.subr.bf16.mxu0 %v3904
  %4202 = vmatpush1.bf16.msra.mxu0 %v3903
  %4203 = vmatprep.subr.bf16.mxu0 %v3912
  %4204 = vmatpush1.bf16.msra.mxu0 %v3911
  %4205 = vmatprep.subr.bf16.mxu0 %v3920
  %4206 = vmatpush1.bf16.msra.mxu0 %v3919
  %4207 = vmatprep.subr.bf16.mxu0 %v3928
  %4208 = vmatpush1.bf16.msra.mxu0 %v3927
  %4209 = vmatprep.subr.bf16.mxu0 %v3936
  %4210 = vmatpush1.bf16.msra.mxu0 %v3935
  %4211 = vmatprep.subr.bf16.mxu0 %v3944
  %4212 = vmatpush1.bf16.msra.mxu0 %v3943
  %4213 = vmatprep.subr.bf16.mxu0 %v3952
  %4214 = vmatpush1.bf16.msra.mxu0 %v3951
  %4215 = vmatprep.subr.bf16.mxu0 %v3960
  %4216 = vmatpush1.bf16.msra.mxu0 %v3959
  %4217 = vmatprep.subr.bf16.mxu0 %v3968
  %4218 = vmatpush1.bf16.msra.mxu0 %v3967
  %4219 = vmatprep.subr.bf16.mxu0 %v3976
  %4220 = vmatpush1.bf16.msra.mxu0 %v3975
  %4221 = vmatprep.mubr.bf16.mxu0 %v3459
  %4222 = vmatmul.mubr.bf16.gmra.mrb[0].mxu0 %v3443
  %v4223 = vpop.f32.mrb[0].mxu0
  %v4224 = vadd.f32 0.0, %v4223
  %v4225 = vpop.f32.mrb[0].mxu0
  %v4226 = vadd.f32 0.0, %v4225
  %v4227 = vpop.f32.mrb[0].mxu0
  %v4228 = vpop.f32.mrb[0].mxu0
  %4229 = vdwg.mxu0
  %4230 = vmatprep.subr.bf16.mxu0 %v3858
  %4231 = vmatpush1.bf16.msra.mxu0 %v3857
  %4232 = vmatprep.subr.bf16.mxu0 %v3866
  %4233 = vmatpush1.bf16.msra.mxu0 %v3865
  %4234 = vmatprep.subr.bf16.mxu0 %v3874
  %4235 = vmatpush1.bf16.msra.mxu0 %v3873
  %4236 = vmatprep.subr.bf16.mxu0 %v3882
  %4237 = vmatpush1.bf16.msra.mxu0 %v3881
  %4238 = vmatprep.subr.bf16.mxu0 %v3890
  %4239 = vmatpush1.bf16.msra.mxu0 %v3889
  %4240 = vmatprep.subr.bf16.mxu0 %v3898
  %4241 = vmatpush1.bf16.msra.mxu0 %v3897
  %4242 = vmatprep.subr.bf16.mxu0 %v3906
  %4243 = vmatpush1.bf16.msra.mxu0 %v3905
  %4244 = vmatprep.subr.bf16.mxu0 %v3914
  %4245 = vmatpush1.bf16.msra.mxu0 %v3913
  %4246 = vmatprep.subr.bf16.mxu0 %v3922
  %4247 = vmatpush1.bf16.msra.mxu0 %v3921
  %4248 = vmatprep.subr.bf16.mxu0 %v3930
  %4249 = vmatpush1.bf16.msra.mxu0 %v3929
  %4250 = vmatprep.subr.bf16.mxu0 %v3938
  %4251 = vmatpush1.bf16.msra.mxu0 %v3937
  %4252 = vmatprep.subr.bf16.mxu0 %v3946
  %4253 = vmatpush1.bf16.msra.mxu0 %v3945
  %4254 = vmatprep.subr.bf16.mxu0 %v3954
  %4255 = vmatpush1.bf16.msra.mxu0 %v3953
  %4256 = vmatprep.subr.bf16.mxu0 %v3962
  %4257 = vmatpush1.bf16.msra.mxu0 %v3961
  %4258 = vmatprep.subr.bf16.mxu0 %v3970
  %4259 = vmatpush1.bf16.msra.mxu0 %v3969
  %4260 = vmatprep.subr.bf16.mxu0 %v3978
  %4261 = vmatpush1.bf16.msra.mxu0 %v3977
  %4262 = vmatprep.mubr.bf16.mxu0 %v3459
  %4263 = vmatmul.mubr.bf16.gmra.mrb[0].mxu0 %v3443
  %v4264 = vpop.f32.mrb[0].mxu0
  %v4265 = vadd.f32 0.0, %v4264
  %v4266 = vpop.f32.mrb[0].mxu0
  %v4267 = vadd.f32 0.0, %v4266
  %v4268 = vpop.f32.mrb[0].mxu0
  %v4269 = vpop.f32.mrb[0].mxu0
  %4270 = vdwg.mxu0
  %s4271 = scalar_lea.vmem %s7, 64
  %4272 = vst [vmem:[%s4271] sm:$0x3f] %v4142
  %4273 = vst [vmem:[%s4271 + $0x8] sm:$0x3f] %v4144
  %4274 = vst [vmem:[%s4271 + $0x10] sm:$0x3f] %v4183
  %4275 = vst [vmem:[%s4271 + $0x18] sm:$0x3f] %v4185
  %4276 = vst [vmem:[%s4271 + $0x20] sm:$0x3f] %v4224
  %4277 = vst [vmem:[%s4271 + $0x28] sm:$0x3f] %v4226
  %4278 = vst [vmem:[%s4271 + $0x30] sm:$0x3f] %v4265
  %4279 = vst [vmem:[%s4271 + $0x38] sm:$0x3f] %v4267
  // Predicated region
  $region30: #{jvp__.1} parent=0 // pred_check
    _
  $region31: #{jvp__.1} parent=0 // pred_check_branch
    %4281 = sbr.rel (0) target = $region33
  $region32: #{jvp__.1} parent=0 // pred_region
    _
  $region33: #{jvp__.1} parent=0 // pred_fallthru
    _
  // Predicated region
  $region34: #{jvp__.1} parent=0 // pred_check
    _
  $region35: #{jvp__.1} parent=0 // pred_check_branch
    %4283 = sbr.rel (0) target = $region37
  $region36: #{jvp__.1} parent=0 // pred_region
    _
  $region37: #{jvp__.1} parent=0 // pred_fallthru
    _

</llo_original>
